<compile_context>
chip_gen: v5e
topology: v5e:2x2
jax: 0.10.0
libtpu: 0.0.40
codegen_flags: <defaults>
</compile_context>

<pallas_src>
import numpy as np

import jax
import jax.numpy as jnp
from jax.experimental import pallas as pl
from jax.experimental.pallas import tpu as pltpu


# ---------------------------------------------------------------------------
# Fused Pallas kernel: whole network forward for one image per grid step.
# ---------------------------------------------------------------------------

def _lenet_fused_kernel(x_ref, m1_ref, b1_ref, pr_ref, cs_ref,
                        m2_ref, b2_ref, qr_ref, ds_ref,
                        w1c_ref, fb1_ref, w2_ref, fb2_ref, w3_ref, fb3_ref,
                        out_ref):
    def mm(a, b):
        return jnp.dot(a, b, preferred_element_type=jnp.float32)

    x = x_ref[...]                                               # (32, 32)

    # conv1 (1->6, 3x3) + bias + relu.   z1[oc*30 + r, c] = conv1[oc, r, c]
    z1 = b1_ref[...]                                             # (180, 1)
    for dj in range(3):
        z1 = z1 + mm(m1_ref[dj], x)[:, dj:dj + 30]               # (180, 30)
    z1 = jnp.maximum(z1, 0.0)

    # 2x2 max pool (30 -> 15) via exact 0/1 selection matmuls.
    rmax = jnp.maximum(mm(pr_ref[0], z1), mm(pr_ref[1], z1))     # (90, 30)
    p1 = jnp.maximum(mm(rmax, cs_ref[0]), mm(rmax, cs_ref[1]))   # (90, 15)

    # conv2 (6->16, 3x3) + bias + relu.  z2[oc*13 + r, c] = conv2[oc, r, c]
    z2 = b2_ref[...]                                             # (208, 1)
    for dj in range(3):
        z2 = z2 + mm(m2_ref[dj], p1)[:, dj:dj + 13]              # (208, 13)
    z2 = jnp.maximum(z2, 0.0)

    # 2x2 max pool with floor (13 -> 6).
    rmax2 = jnp.maximum(mm(qr_ref[0], z2), mm(qr_ref[1], z2))    # (96, 13)
    p2 = jnp.maximum(mm(rmax2, ds_ref[0]), mm(rmax2, ds_ref[1]))  # (96, 6)
    # p2[oc*6 + i, j] == NCHW-flattened feature (oc, i, j): exactly PyTorch's
    # x.view(-1, 16*6*6) ordering, so fc1 needs no in-kernel flatten.

    # fc1 + relu (column-vector activations; fc1 weight pre-split by w-phase).
    h1 = fb1_ref[...]                                            # (120, 1)
    for j in range(6):
        h1 = h1 + mm(w1c_ref[j], p2[:, j:j + 1])                 # (120,96)@(96,1)
    h1 = jnp.maximum(h1, 0.0)

    # fc2 + relu, fc3.
    h2 = jnp.maximum(fb2_ref[...] + mm(w2_ref[...], h1), 0.0)    # (84, 1)
    out = fb3_ref[...] + mm(w3_ref[...], h2)                     # (10, 1)
    out_ref[...] = out.astype(out_ref.dtype)


def net_forward(prep, x_nchw):
    """Forward pass: x_nchw [B, 1, 32, 32] f32 -> logits [B, 10]."""
    B = x_nchw.shape[0]
    x = x_nchw.reshape(B, 32, 32).astype(jnp.float32)

    res2 = lambda b: (0, 0)          # VMEM-resident weights (never re-fetched)
    res3 = lambda b: (0, 0, 0)

    out = pl.pallas_call(
        _lenet_fused_kernel,
        out_shape=jax.ShapeDtypeStruct((B, 10, 1), jnp.float32),
        grid=(B,),
        in_specs=[
            pl.BlockSpec((None, 32, 32), lambda b: (b, 0, 0)),   # image b
            pl.BlockSpec((3, 180, 32), res3),    # conv1 banded matrices
            pl.BlockSpec((180, 1), res2),        # conv1 bias (stacked)
            pl.BlockSpec((2, 90, 180), res3),    # pool1 row selectors
            pl.BlockSpec((2, 30, 15), res3),     # pool1 col selectors
            pl.BlockSpec((3, 208, 90), res3),    # conv2 banded matrices
            pl.BlockSpec((208, 1), res2),        # conv2 bias (stacked)
            pl.BlockSpec((2, 96, 208), res3),    # pool2 row selectors
            pl.BlockSpec((2, 13, 6), res3),      # pool2 col selectors
            pl.BlockSpec((6, 120, 96), res3),    # fc1 weight (column groups)
            pl.BlockSpec((120, 1), res2),        # fc1 bias
            pl.BlockSpec((84, 120), res2),       # fc2 weight
            pl.BlockSpec((84, 1), res2),         # fc2 bias
            pl.BlockSpec((10, 84), res2),        # fc3 weight
            pl.BlockSpec((10, 1), res2),         # fc3 bias
        ],
        out_specs=pl.BlockSpec((None, 10, 1), lambda b: (b, 0, 0)),
        compiler_params=pltpu.CompilerParams(
            dimension_semantics=("parallel",)),
    )(x, prep["m1"], prep["b1s"], prep["pr"], prep["cs"],
      prep["m2"], prep["b2s"], prep["qr"], prep["ds"],
      prep["w1c"], prep["fb1"], prep["fc2_w"], prep["fb2"],
      prep["fc3_w"], prep["fb3"])
    return out.reshape(B, 10)


# ---------------------------------------------------------------------------
# One-time (init-time) weight preprocessing -- hoisted out of the forward.
# ---------------------------------------------------------------------------

def prepare_params(params):
    w1 = np.asarray(params["w1"], np.float32)        # (6, 1, 3, 3)
    b1 = np.asarray(params["b1"], np.float32)
    w2 = np.asarray(params["w2"], np.float32)        # (16, 6, 3, 3)
    b2 = np.asarray(params["b2"], np.float32)
    fc1_w = np.asarray(params["fc1_w"], np.float32)  # (120, 576)
    fc1_b = np.asarray(params["fc1_b"], np.float32)
    fc2_w = np.asarray(params["fc2_w"], np.float32)  # (84, 120)
    fc2_b = np.asarray(params["fc2_b"], np.float32)
    fc3_w = np.asarray(params["fc3_w"], np.float32)  # (10, 84)
    fc3_b = np.asarray(params["fc3_b"], np.float32)

    # conv1 as 3 banded matrices (one per kernel column dj):
    #   (m1[dj] @ x)[oc*30 + r, w] = sum_di w1[oc,0,di,dj] * x[r+di, w]
    r30 = np.arange(30)
    m1 = np.zeros((3, 6 * 30, 32), np.float32)
    for dj in range(3):
        for oc in range(6):
            for di in range(3):
                m1[dj, oc * 30 + r30, r30 + di] += w1[oc, 0, di, dj]
    b1s = np.repeat(b1, 30).reshape(180, 1)

    # pool1 selectors (exact 0/1 gathers): rows 30->15 per channel, cols 30->15.
    i15 = np.arange(15)
    pr = np.zeros((2, 6 * 15, 6 * 30), np.float32)
    for a in range(2):
        for oc in range(6):
            pr[a, oc * 15 + i15, oc * 30 + 2 * i15 + a] = 1.0
    cs = np.zeros((2, 30, 15), np.float32)
    for b in range(2):
        cs[b, 2 * i15 + b, i15] = 1.0

    # conv2 as 3 banded matrices over channel-stacked rows (6*15 -> 16*13).
    r13 = np.arange(13)
    m2 = np.zeros((3, 16 * 13, 6 * 15), np.float32)
    for dj in range(3):
        for oc in range(16):
            for ic in range(6):
                for di in range(3):
                    m2[dj, oc * 13 + r13, ic * 15 + r13 + di] += w2[oc, ic, di, dj]
    b2s = np.repeat(b2, 13).reshape(208, 1)

    # pool2 selectors with floor (13 -> 6, rows/cols 0..11 only).
    i6 = np.arange(6)
    qr = np.zeros((2, 16 * 6, 16 * 13), np.float32)
    for a in range(2):
        for oc in range(16):
            qr[a, oc * 6 + i6, oc * 13 + 2 * i6 + a] = 1.0
    ds = np.zeros((2, 13, 6), np.float32)
    for b in range(2):
        ds[b, 2 * i6 + b, i6] = 1.0

    # fc1 regrouped by flattened "w" phase: flat index k = (oc*6 + i)*6 + j.
    w1c = np.stack([fc1_w[:, j::6] for j in range(6)], axis=0)   # (6, 120, 96)

    prep = {
        "m1": m1, "b1s": b1s, "pr": pr, "cs": cs,
        "m2": m2, "b2s": b2s, "qr": qr, "ds": ds,
        "w1c": w1c, "fb1": fc1_b.reshape(120, 1),
        "fc2_w": fc2_w, "fb2": fc2_b.reshape(84, 1),
        "fc3_w": fc3_w, "fb3": fc3_b.reshape(10, 1),
    }
    return {k: jnp.asarray(v) for k, v in prep.items()}


def init_params(key):
    """PyTorch-default-style uniform(+-1/sqrt(fan_in)) init."""
    def uniform(key, shape, fan_in):
        bound = 1.0 / float(np.sqrt(fan_in))
        return jax.random.uniform(key, shape, jnp.float32, -bound, bound)

    ks = jax.random.split(key, 10)
    return {
        "w1": uniform(ks[0], (6, 1, 3, 3), 1 * 3 * 3),
        "b1": uniform(ks[1], (6,), 1 * 3 * 3),
        "w2": uniform(ks[2], (16, 6, 3, 3), 6 * 3 * 3),
        "b2": uniform(ks[3], (16,), 6 * 3 * 3),
        "fc1_w": uniform(ks[4], (120, 16 * 6 * 6), 16 * 6 * 6),
        "fc1_b": uniform(ks[5], (120,), 16 * 6 * 6),
        "fc2_w": uniform(ks[6], (84, 120), 120),
        "fc2_b": uniform(ks[7], (84,), 120),
        "fc3_w": uniform(ks[8], (10, 84), 84),
        "fc3_b": uniform(ks[9], (10,), 84),
    }


# ---------------------------------------------------------------------------
# Pure-JAX reference (self-check only).
# ---------------------------------------------------------------------------

def net_forward_reference(params, x_nchw):
    dn = ("NCHW", "OIHW", "NCHW")
    y = jax.lax.conv_general_dilated(x_nchw, params["w1"], (1, 1), "VALID",
                                     dimension_numbers=dn)
    y = jax.nn.relu(y + params["b1"].reshape(1, -1, 1, 1))
    y = jax.lax.reduce_window(y, -jnp.inf, jax.lax.max,
                              (1, 1, 2, 2), (1, 1, 2, 2), "VALID")
    y = jax.lax.conv_general_dilated(y, params["w2"], (1, 1), "VALID",
                                     dimension_numbers=dn)
    y = jax.nn.relu(y + params["b2"].reshape(1, -1, 1, 1))
    y = jax.lax.reduce_window(y, -jnp.inf, jax.lax.max,
                              (1, 1, 2, 2), (1, 1, 2, 2), "VALID")
    flat = y.reshape(y.shape[0], -1)                       # NCHW flatten
    h = jax.nn.relu(flat @ params["fc1_w"].T + params["fc1_b"])
    h = jax.nn.relu(h @ params["fc2_w"].T + params["fc2_b"])
    return h @ params["fc3_w"].T + params["fc3_b"]


if __name__ == "__main__":
    key = jax.random.PRNGKey(0)
    k_in, k_par = jax.random.split(key)
    # Input must be 32x32 so the conv stack reaches fc1's 16*6*6 features.
    x = jax.random.normal(k_in, (2, 1, 32, 32), dtype=jnp.float32)
    params = init_params(k_par)
    prep = prepare_params(params)          # one-time weight preprocessing

    out = jax.jit(net_forward)(prep, x)
    out = jax.block_until_ready(out)
    assert out.shape == (2, 10), out.shape

    # Self-check vs a high-precision pure-JAX reference (tolerance covers the
    # MXU's default f32->bf16 input rounding inside the kernel's matmuls).
    with jax.default_matmul_precision("highest"):
        ref = net_forward_reference(params, x)
    err = float(jnp.max(jnp.abs(out - ref)))
    assert err < 5e-2, f"max abs error vs reference: {err}"
    print("KERNEL_OK")
</pallas_src>

<mosaic_0001>
module attributes {stable_mosaic.version = 11 : i64} {
  func.func @_lenet_fused_kernel(%arg0: i32, %arg1: memref<1x32x32xf32, #tpu.memory_space<vmem>>, %arg2: memref<3x180x32xf32, #tpu.memory_space<vmem>>, %arg3: memref<180x1xf32, #tpu.memory_space<vmem>>, %arg4: memref<2x90x180xf32, #tpu.memory_space<vmem>>, %arg5: memref<2x30x15xf32, #tpu.memory_space<vmem>>, %arg6: memref<3x208x90xf32, #tpu.memory_space<vmem>>, %arg7: memref<208x1xf32, #tpu.memory_space<vmem>>, %arg8: memref<2x96x208xf32, #tpu.memory_space<vmem>>, %arg9: memref<2x13x6xf32, #tpu.memory_space<vmem>>, %arg10: memref<6x120x96xf32, #tpu.memory_space<vmem>>, %arg11: memref<120x1xf32, #tpu.memory_space<vmem>>, %arg12: memref<84x120xf32, #tpu.memory_space<vmem>>, %arg13: memref<84x1xf32, #tpu.memory_space<vmem>>, %arg14: memref<10x84xf32, #tpu.memory_space<vmem>>, %arg15: memref<10x1xf32, #tpu.memory_space<vmem>>, %arg16: memref<1x10x1xf32, #tpu.memory_space<vmem>>) attributes {dimension_semantics = [#tpu.dimension_semantics<parallel>], iteration_bounds = array<i64: 2>, scalar_prefetch = 0 : i64, scratch_operands = 0 : i64, tpu.core_type = #tpu.core_type<tc>, window_params = [{transform_indices = @transform_0, window_bounds = array<i64: 1, 32, 32>}, {pipeline_mode = #tpu.pipeline_mode<synchronous>, transform_indices = @transform_1, window_bounds = array<i64: 3, 180, 32>}, {pipeline_mode = #tpu.pipeline_mode<synchronous>, transform_indices = @transform_2, window_bounds = array<i64: 180, 1>}, {pipeline_mode = #tpu.pipeline_mode<synchronous>, transform_indices = @transform_3, window_bounds = array<i64: 2, 90, 180>}, {pipeline_mode = #tpu.pipeline_mode<synchronous>, transform_indices = @transform_4, window_bounds = array<i64: 2, 30, 15>}, {pipeline_mode = #tpu.pipeline_mode<synchronous>, transform_indices = @transform_5, window_bounds = array<i64: 3, 208, 90>}, {pipeline_mode = #tpu.pipeline_mode<synchronous>, transform_indices = @transform_6, window_bounds = array<i64: 208, 1>}, {pipeline_mode = #tpu.pipeline_mode<synchronous>, transform_indices = @transform_7, window_bounds = array<i64: 2, 96, 208>}, {pipeline_mode = #tpu.pipeline_mode<synchronous>, transform_indices = @transform_8, window_bounds = array<i64: 2, 13, 6>}, {pipeline_mode = #tpu.pipeline_mode<synchronous>, transform_indices = @transform_9, window_bounds = array<i64: 6, 120, 96>}, {pipeline_mode = #tpu.pipeline_mode<synchronous>, transform_indices = @transform_10, window_bounds = array<i64: 120, 1>}, {pipeline_mode = #tpu.pipeline_mode<synchronous>, transform_indices = @transform_11, window_bounds = array<i64: 84, 120>}, {pipeline_mode = #tpu.pipeline_mode<synchronous>, transform_indices = @transform_12, window_bounds = array<i64: 84, 1>}, {pipeline_mode = #tpu.pipeline_mode<synchronous>, transform_indices = @transform_13, window_bounds = array<i64: 10, 84>}, {pipeline_mode = #tpu.pipeline_mode<synchronous>, transform_indices = @transform_14, window_bounds = array<i64: 10, 1>}, {transform_indices = @transform_15, window_bounds = array<i64: 1, 10, 1>}]} {
    %c0 = arith.constant 0 : index
    %c0_0 = arith.constant 0 : index
    %c0_1 = arith.constant 0 : index
    %0 = vector.load %arg1[%c0, %c0_0, %c0_1] : memref<1x32x32xf32, #tpu.memory_space<vmem>>, vector<1x32x32xf32>
    %1 = vector.shape_cast %0 : vector<1x32x32xf32> to vector<32x32xf32>
    %c0_2 = arith.constant 0 : index
    %c0_3 = arith.constant 0 : index
    %2 = vector.load %arg3[%c0_2, %c0_3] : memref<180x1xf32, #tpu.memory_space<vmem>>, vector<180x1xf32>
    %c0_4 = arith.constant 0 : index
    %c0_5 = arith.constant 0 : index
    %c0_6 = arith.constant 0 : index
    %3 = vector.load %arg2[%c0_4, %c0_5, %c0_6] : memref<3x180x32xf32, #tpu.memory_space<vmem>>, vector<1x180x32xf32>
    %4 = vector.shape_cast %3 : vector<1x180x32xf32> to vector<180x32xf32>
    %cst = arith.constant dense<0.000000e+00> : vector<180x32xf32>
    %5 = tpu.matmul %4, %1, %cst {dimension_numbers = #tpu.dot_dimension_numbers<[1], [0], [0], [1], [0, 0, 1, 1], [], []>} : vector<180x32xf32>, vector<32x32xf32>, vector<180x32xf32> -> vector<180x32xf32>
    %6 = vector.extract_strided_slice %5 {offsets = [0, 0], sizes = [180, 30], strides = [1, 1]} : vector<180x32xf32> to vector<180x30xf32>
    %7 = vector.broadcast %2 : vector<180x1xf32> to vector<180x30xf32>
    %8 = arith.addf %7, %6 : vector<180x30xf32>
    %c1 = arith.constant 1 : index
    %c0_7 = arith.constant 0 : index
    %c0_8 = arith.constant 0 : index
    %9 = vector.load %arg2[%c1, %c0_7, %c0_8] : memref<3x180x32xf32, #tpu.memory_space<vmem>>, vector<1x180x32xf32>
    %10 = vector.shape_cast %9 : vector<1x180x32xf32> to vector<180x32xf32>
    %cst_9 = arith.constant dense<0.000000e+00> : vector<180x32xf32>
    %11 = tpu.matmul %10, %1, %cst_9 {dimension_numbers = #tpu.dot_dimension_numbers<[1], [0], [0], [1], [0, 0, 1, 1], [], []>} : vector<180x32xf32>, vector<32x32xf32>, vector<180x32xf32> -> vector<180x32xf32>
    %12 = vector.extract_strided_slice %11 {offsets = [0, 1], sizes = [180, 30], strides = [1, 1]} : vector<180x32xf32> to vector<180x30xf32>
    %13 = arith.addf %8, %12 : vector<180x30xf32>
    %c2 = arith.constant 2 : index
    %c0_10 = arith.constant 0 : index
    %c0_11 = arith.constant 0 : index
    %14 = vector.load %arg2[%c2, %c0_10, %c0_11] : memref<3x180x32xf32, #tpu.memory_space<vmem>>, vector<1x180x32xf32>
    %15 = vector.shape_cast %14 : vector<1x180x32xf32> to vector<180x32xf32>
    %cst_12 = arith.constant dense<0.000000e+00> : vector<180x32xf32>
    %16 = tpu.matmul %15, %1, %cst_12 {dimension_numbers = #tpu.dot_dimension_numbers<[1], [0], [0], [1], [0, 0, 1, 1], [], []>} : vector<180x32xf32>, vector<32x32xf32>, vector<180x32xf32> -> vector<180x32xf32>
    %17 = vector.extract_strided_slice %16 {offsets = [0, 2], sizes = [180, 30], strides = [1, 1]} : vector<180x32xf32> to vector<180x30xf32>
    %18 = arith.addf %13, %17 : vector<180x30xf32>
    %cst_13 = arith.constant 0.000000e+00 : f32
    %19 = vector.broadcast %cst_13 : f32 to vector<180x30xf32>
    %20 = arith.maximumf %18, %19 : vector<180x30xf32>
    %c0_14 = arith.constant 0 : index
    %c0_15 = arith.constant 0 : index
    %c0_16 = arith.constant 0 : index
    %21 = vector.load %arg4[%c0_14, %c0_15, %c0_16] : memref<2x90x180xf32, #tpu.memory_space<vmem>>, vector<1x90x180xf32>
    %22 = vector.shape_cast %21 : vector<1x90x180xf32> to vector<90x180xf32>
    %cst_17 = arith.constant dense<0.000000e+00> : vector<90x30xf32>
    %23 = tpu.matmul %22, %20, %cst_17 {dimension_numbers = #tpu.dot_dimension_numbers<[1], [0], [0], [1], [0, 0, 1, 1], [], []>} : vector<90x180xf32>, vector<180x30xf32>, vector<90x30xf32> -> vector<90x30xf32>
    %c1_18 = arith.constant 1 : index
    %c0_19 = arith.constant 0 : index
    %c0_20 = arith.constant 0 : index
    %24 = vector.load %arg4[%c1_18, %c0_19, %c0_20] : memref<2x90x180xf32, #tpu.memory_space<vmem>>, vector<1x90x180xf32>
    %25 = vector.shape_cast %24 : vector<1x90x180xf32> to vector<90x180xf32>
    %cst_21 = arith.constant dense<0.000000e+00> : vector<90x30xf32>
    %26 = tpu.matmul %25, %20, %cst_21 {dimension_numbers = #tpu.dot_dimension_numbers<[1], [0], [0], [1], [0, 0, 1, 1], [], []>} : vector<90x180xf32>, vector<180x30xf32>, vector<90x30xf32> -> vector<90x30xf32>
    %27 = arith.maximumf %23, %26 : vector<90x30xf32>
    %c0_22 = arith.constant 0 : index
    %c0_23 = arith.constant 0 : index
    %c0_24 = arith.constant 0 : index
    %28 = vector.load %arg5[%c0_22, %c0_23, %c0_24] : memref<2x30x15xf32, #tpu.memory_space<vmem>>, vector<1x30x15xf32>
    %29 = vector.shape_cast %28 : vector<1x30x15xf32> to vector<30x15xf32>
    %cst_25 = arith.constant dense<0.000000e+00> : vector<90x15xf32>
    %30 = tpu.matmul %27, %29, %cst_25 {dimension_numbers = #tpu.dot_dimension_numbers<[1], [0], [0], [1], [0, 0, 1, 1], [], []>} : vector<90x30xf32>, vector<30x15xf32>, vector<90x15xf32> -> vector<90x15xf32>
    %c1_26 = arith.constant 1 : index
    %c0_27 = arith.constant 0 : index
    %c0_28 = arith.constant 0 : index
    %31 = vector.load %arg5[%c1_26, %c0_27, %c0_28] : memref<2x30x15xf32, #tpu.memory_space<vmem>>, vector<1x30x15xf32>
    %32 = vector.shape_cast %31 : vector<1x30x15xf32> to vector<30x15xf32>
    %cst_29 = arith.constant dense<0.000000e+00> : vector<90x15xf32>
    %33 = tpu.matmul %27, %32, %cst_29 {dimension_numbers = #tpu.dot_dimension_numbers<[1], [0], [0], [1], [0, 0, 1, 1], [], []>} : vector<90x30xf32>, vector<30x15xf32>, vector<90x15xf32> -> vector<90x15xf32>
    %34 = arith.maximumf %30, %33 : vector<90x15xf32>
    %c0_30 = arith.constant 0 : index
    %c0_31 = arith.constant 0 : index
    %35 = vector.load %arg7[%c0_30, %c0_31] : memref<208x1xf32, #tpu.memory_space<vmem>>, vector<208x1xf32>
    %c0_32 = arith.constant 0 : index
    %c0_33 = arith.constant 0 : index
    %c0_34 = arith.constant 0 : index
    %36 = vector.load %arg6[%c0_32, %c0_33, %c0_34] : memref<3x208x90xf32, #tpu.memory_space<vmem>>, vector<1x208x90xf32>
    %37 = vector.shape_cast %36 : vector<1x208x90xf32> to vector<208x90xf32>
    %cst_35 = arith.constant dense<0.000000e+00> : vector<208x15xf32>
    %38 = tpu.matmul %37, %34, %cst_35 {dimension_numbers = #tpu.dot_dimension_numbers<[1], [0], [0], [1], [0, 0, 1, 1], [], []>} : vector<208x90xf32>, vector<90x15xf32>, vector<208x15xf32> -> vector<208x15xf32>
    %39 = vector.extract_strided_slice %38 {offsets = [0, 0], sizes = [208, 13], strides = [1, 1]} : vector<208x15xf32> to vector<208x13xf32>
    %40 = vector.broadcast %35 : vector<208x1xf32> to vector<208x13xf32>
    %41 = arith.addf %40, %39 : vector<208x13xf32>
    %c1_36 = arith.constant 1 : index
    %c0_37 = arith.constant 0 : index
    %c0_38 = arith.constant 0 : index
    %42 = vector.load %arg6[%c1_36, %c0_37, %c0_38] : memref<3x208x90xf32, #tpu.memory_space<vmem>>, vector<1x208x90xf32>
    %43 = vector.shape_cast %42 : vector<1x208x90xf32> to vector<208x90xf32>
    %cst_39 = arith.constant dense<0.000000e+00> : vector<208x15xf32>
    %44 = tpu.matmul %43, %34, %cst_39 {dimension_numbers = #tpu.dot_dimension_numbers<[1], [0], [0], [1], [0, 0, 1, 1], [], []>} : vector<208x90xf32>, vector<90x15xf32>, vector<208x15xf32> -> vector<208x15xf32>
    %45 = vector.extract_strided_slice %44 {offsets = [0, 1], sizes = [208, 13], strides = [1, 1]} : vector<208x15xf32> to vector<208x13xf32>
    %46 = arith.addf %41, %45 : vector<208x13xf32>
    %c2_40 = arith.constant 2 : index
    %c0_41 = arith.constant 0 : index
    %c0_42 = arith.constant 0 : index
    %47 = vector.load %arg6[%c2_40, %c0_41, %c0_42] : memref<3x208x90xf32, #tpu.memory_space<vmem>>, vector<1x208x90xf32>
    %48 = vector.shape_cast %47 : vector<1x208x90xf32> to vector<208x90xf32>
    %cst_43 = arith.constant dense<0.000000e+00> : vector<208x15xf32>
    %49 = tpu.matmul %48, %34, %cst_43 {dimension_numbers = #tpu.dot_dimension_numbers<[1], [0], [0], [1], [0, 0, 1, 1], [], []>} : vector<208x90xf32>, vector<90x15xf32>, vector<208x15xf32> -> vector<208x15xf32>
    %50 = vector.extract_strided_slice %49 {offsets = [0, 2], sizes = [208, 13], strides = [1, 1]} : vector<208x15xf32> to vector<208x13xf32>
    %51 = arith.addf %46, %50 : vector<208x13xf32>
    %cst_44 = arith.constant 0.000000e+00 : f32
    %52 = vector.broadcast %cst_44 : f32 to vector<208x13xf32>
    %53 = arith.maximumf %51, %52 : vector<208x13xf32>
    %c0_45 = arith.constant 0 : index
    %c0_46 = arith.constant 0 : index
    %c0_47 = arith.constant 0 : index
    %54 = vector.load %arg8[%c0_45, %c0_46, %c0_47] : memref<2x96x208xf32, #tpu.memory_space<vmem>>, vector<1x96x208xf32>
    %55 = vector.shape_cast %54 : vector<1x96x208xf32> to vector<96x208xf32>
    %cst_48 = arith.constant dense<0.000000e+00> : vector<96x13xf32>
    %56 = tpu.matmul %55, %53, %cst_48 {dimension_numbers = #tpu.dot_dimension_numbers<[1], [0], [0], [1], [0, 0, 1, 1], [], []>} : vector<96x208xf32>, vector<208x13xf32>, vector<96x13xf32> -> vector<96x13xf32>
    %c1_49 = arith.constant 1 : index
    %c0_50 = arith.constant 0 : index
    %c0_51 = arith.constant 0 : index
    %57 = vector.load %arg8[%c1_49, %c0_50, %c0_51] : memref<2x96x208xf32, #tpu.memory_space<vmem>>, vector<1x96x208xf32>
    %58 = vector.shape_cast %57 : vector<1x96x208xf32> to vector<96x208xf32>
    %cst_52 = arith.constant dense<0.000000e+00> : vector<96x13xf32>
    %59 = tpu.matmul %58, %53, %cst_52 {dimension_numbers = #tpu.dot_dimension_numbers<[1], [0], [0], [1], [0, 0, 1, 1], [], []>} : vector<96x208xf32>, vector<208x13xf32>, vector<96x13xf32> -> vector<96x13xf32>
    %60 = arith.maximumf %56, %59 : vector<96x13xf32>
    %c0_53 = arith.constant 0 : index
    %c0_54 = arith.constant 0 : index
    %c0_55 = arith.constant 0 : index
    %61 = vector.load %arg9[%c0_53, %c0_54, %c0_55] : memref<2x13x6xf32, #tpu.memory_space<vmem>>, vector<1x13x6xf32>
    %62 = vector.shape_cast %61 : vector<1x13x6xf32> to vector<13x6xf32>
    %cst_56 = arith.constant dense<0.000000e+00> : vector<96x6xf32>
    %63 = tpu.matmul %60, %62, %cst_56 {dimension_numbers = #tpu.dot_dimension_numbers<[1], [0], [0], [1], [0, 0, 1, 1], [], []>} : vector<96x13xf32>, vector<13x6xf32>, vector<96x6xf32> -> vector<96x6xf32>
    %c1_57 = arith.constant 1 : index
    %c0_58 = arith.constant 0 : index
    %c0_59 = arith.constant 0 : index
    %64 = vector.load %arg9[%c1_57, %c0_58, %c0_59] : memref<2x13x6xf32, #tpu.memory_space<vmem>>, vector<1x13x6xf32>
    %65 = vector.shape_cast %64 : vector<1x13x6xf32> to vector<13x6xf32>
    %cst_60 = arith.constant dense<0.000000e+00> : vector<96x6xf32>
    %66 = tpu.matmul %60, %65, %cst_60 {dimension_numbers = #tpu.dot_dimension_numbers<[1], [0], [0], [1], [0, 0, 1, 1], [], []>} : vector<96x13xf32>, vector<13x6xf32>, vector<96x6xf32> -> vector<96x6xf32>
    %67 = arith.maximumf %63, %66 : vector<96x6xf32>
    %c0_61 = arith.constant 0 : index
    %c0_62 = arith.constant 0 : index
    %68 = vector.load %arg11[%c0_61, %c0_62] : memref<120x1xf32, #tpu.memory_space<vmem>>, vector<120x1xf32>
    %c0_63 = arith.constant 0 : index
    %c0_64 = arith.constant 0 : index
    %c0_65 = arith.constant 0 : index
    %69 = vector.load %arg10[%c0_63, %c0_64, %c0_65] : memref<6x120x96xf32, #tpu.memory_space<vmem>>, vector<1x120x96xf32>
    %70 = vector.shape_cast %69 : vector<1x120x96xf32> to vector<120x96xf32>
    %71 = vector.extract_strided_slice %67 {offsets = [0, 0], sizes = [96, 1], strides = [1, 1]} : vector<96x6xf32> to vector<96x1xf32>
    %cst_66 = arith.constant dense<0.000000e+00> : vector<120x1xf32>
    %72 = tpu.matmul %70, %71, %cst_66 {dimension_numbers = #tpu.dot_dimension_numbers<[1], [0], [0], [1], [0, 0, 1, 1], [], []>} : vector<120x96xf32>, vector<96x1xf32>, vector<120x1xf32> -> vector<120x1xf32>
    %73 = arith.addf %68, %72 : vector<120x1xf32>
    %c1_67 = arith.constant 1 : index
    %c0_68 = arith.constant 0 : index
    %c0_69 = arith.constant 0 : index
    %74 = vector.load %arg10[%c1_67, %c0_68, %c0_69] : memref<6x120x96xf32, #tpu.memory_space<vmem>>, vector<1x120x96xf32>
    %75 = vector.shape_cast %74 : vector<1x120x96xf32> to vector<120x96xf32>
    %76 = vector.extract_strided_slice %67 {offsets = [0, 1], sizes = [96, 1], strides = [1, 1]} : vector<96x6xf32> to vector<96x1xf32>
    %cst_70 = arith.constant dense<0.000000e+00> : vector<120x1xf32>
    %77 = tpu.matmul %75, %76, %cst_70 {dimension_numbers = #tpu.dot_dimension_numbers<[1], [0], [0], [1], [0, 0, 1, 1], [], []>} : vector<120x96xf32>, vector<96x1xf32>, vector<120x1xf32> -> vector<120x1xf32>
    %78 = arith.addf %73, %77 : vector<120x1xf32>
    %c2_71 = arith.constant 2 : index
    %c0_72 = arith.constant 0 : index
    %c0_73 = arith.constant 0 : index
    %79 = vector.load %arg10[%c2_71, %c0_72, %c0_73] : memref<6x120x96xf32, #tpu.memory_space<vmem>>, vector<1x120x96xf32>
    %80 = vector.shape_cast %79 : vector<1x120x96xf32> to vector<120x96xf32>
    %81 = vector.extract_strided_slice %67 {offsets = [0, 2], sizes = [96, 1], strides = [1, 1]} : vector<96x6xf32> to vector<96x1xf32>
    %cst_74 = arith.constant dense<0.000000e+00> : vector<120x1xf32>
    %82 = tpu.matmul %80, %81, %cst_74 {dimension_numbers = #tpu.dot_dimension_numbers<[1], [0], [0], [1], [0, 0, 1, 1], [], []>} : vector<120x96xf32>, vector<96x1xf32>, vector<120x1xf32> -> vector<120x1xf32>
    %83 = arith.addf %78, %82 : vector<120x1xf32>
    %c3 = arith.constant 3 : index
    %c0_75 = arith.constant 0 : index
    %c0_76 = arith.constant 0 : index
    %84 = vector.load %arg10[%c3, %c0_75, %c0_76] : memref<6x120x96xf32, #tpu.memory_space<vmem>>, vector<1x120x96xf32>
    %85 = vector.shape_cast %84 : vector<1x120x96xf32> to vector<120x96xf32>
    %86 = vector.extract_strided_slice %67 {offsets = [0, 3], sizes = [96, 1], strides = [1, 1]} : vector<96x6xf32> to vector<96x1xf32>
    %cst_77 = arith.constant dense<0.000000e+00> : vector<120x1xf32>
    %87 = tpu.matmul %85, %86, %cst_77 {dimension_numbers = #tpu.dot_dimension_numbers<[1], [0], [0], [1], [0, 0, 1, 1], [], []>} : vector<120x96xf32>, vector<96x1xf32>, vector<120x1xf32> -> vector<120x1xf32>
    %88 = arith.addf %83, %87 : vector<120x1xf32>
    %c4 = arith.constant 4 : index
    %c0_78 = arith.constant 0 : index
    %c0_79 = arith.constant 0 : index
    %89 = vector.load %arg10[%c4, %c0_78, %c0_79] : memref<6x120x96xf32, #tpu.memory_space<vmem>>, vector<1x120x96xf32>
    %90 = vector.shape_cast %89 : vector<1x120x96xf32> to vector<120x96xf32>
    %91 = vector.extract_strided_slice %67 {offsets = [0, 4], sizes = [96, 1], strides = [1, 1]} : vector<96x6xf32> to vector<96x1xf32>
    %cst_80 = arith.constant dense<0.000000e+00> : vector<120x1xf32>
    %92 = tpu.matmul %90, %91, %cst_80 {dimension_numbers = #tpu.dot_dimension_numbers<[1], [0], [0], [1], [0, 0, 1, 1], [], []>} : vector<120x96xf32>, vector<96x1xf32>, vector<120x1xf32> -> vector<120x1xf32>
    %93 = arith.addf %88, %92 : vector<120x1xf32>
    %c5 = arith.constant 5 : index
    %c0_81 = arith.constant 0 : index
    %c0_82 = arith.constant 0 : index
    %94 = vector.load %arg10[%c5, %c0_81, %c0_82] : memref<6x120x96xf32, #tpu.memory_space<vmem>>, vector<1x120x96xf32>
    %95 = vector.shape_cast %94 : vector<1x120x96xf32> to vector<120x96xf32>
    %96 = vector.extract_strided_slice %67 {offsets = [0, 5], sizes = [96, 1], strides = [1, 1]} : vector<96x6xf32> to vector<96x1xf32>
    %cst_83 = arith.constant dense<0.000000e+00> : vector<120x1xf32>
    %97 = tpu.matmul %95, %96, %cst_83 {dimension_numbers = #tpu.dot_dimension_numbers<[1], [0], [0], [1], [0, 0, 1, 1], [], []>} : vector<120x96xf32>, vector<96x1xf32>, vector<120x1xf32> -> vector<120x1xf32>
    %98 = arith.addf %93, %97 : vector<120x1xf32>
    %cst_84 = arith.constant 0.000000e+00 : f32
    %99 = vector.broadcast %cst_84 : f32 to vector<120x1xf32>
    %100 = arith.maximumf %98, %99 : vector<120x1xf32>
    %c0_85 = arith.constant 0 : index
    %c0_86 = arith.constant 0 : index
    %101 = vector.load %arg13[%c0_85, %c0_86] : memref<84x1xf32, #tpu.memory_space<vmem>>, vector<84x1xf32>
    %c0_87 = arith.constant 0 : index
    %c0_88 = arith.constant 0 : index
    %102 = vector.load %arg12[%c0_87, %c0_88] : memref<84x120xf32, #tpu.memory_space<vmem>>, vector<84x120xf32>
    %cst_89 = arith.constant dense<0.000000e+00> : vector<84x1xf32>
    %103 = tpu.matmul %102, %100, %cst_89 {dimension_numbers = #tpu.dot_dimension_numbers<[1], [0], [0], [1], [0, 0, 1, 1], [], []>} : vector<84x120xf32>, vector<120x1xf32>, vector<84x1xf32> -> vector<84x1xf32>
    %104 = arith.addf %101, %103 : vector<84x1xf32>
    %cst_90 = arith.constant 0.000000e+00 : f32
    %105 = vector.broadcast %cst_90 : f32 to vector<84x1xf32>
    %106 = arith.maximumf %104, %105 : vector<84x1xf32>
    %c0_91 = arith.constant 0 : index
    %c0_92 = arith.constant 0 : index
    %107 = vector.load %arg15[%c0_91, %c0_92] : memref<10x1xf32, #tpu.memory_space<vmem>>, vector<10x1xf32>
    %c0_93 = arith.constant 0 : index
    %c0_94 = arith.constant 0 : index
    %108 = vector.load %arg14[%c0_93, %c0_94] : memref<10x84xf32, #tpu.memory_space<vmem>>, vector<10x84xf32>
    %cst_95 = arith.constant dense<0.000000e+00> : vector<10x1xf32>
    %109 = tpu.matmul %108, %106, %cst_95 {dimension_numbers = #tpu.dot_dimension_numbers<[1], [0], [0], [1], [0, 0, 1, 1], [], []>} : vector<10x84xf32>, vector<84x1xf32>, vector<10x1xf32> -> vector<10x1xf32>
    %110 = arith.addf %107, %109 : vector<10x1xf32>
    %c0_96 = arith.constant 0 : index
    %c0_97 = arith.constant 0 : index
    %c0_98 = arith.constant 0 : index
    %111 = vector.load %arg16[%c0_96, %c0_97, %c0_98] : memref<1x10x1xf32, #tpu.memory_space<vmem>>, vector<1x10x1xf32>
    %112 = vector.shape_cast %111 : vector<1x10x1xf32> to vector<10x1xf32>
    %113 = vector.shape_cast %110 : vector<10x1xf32> to vector<1x10x1xf32>
    tpu.vector_store %arg16[%c0_96, %c0_97, %c0_98], %113 {strides = array<i32>} : memref<1x10x1xf32, #tpu.memory_space<vmem>>, vector<1x10x1xf32>,
    return
  }
  func.func @transform_0(%arg0: i32) -> (i32, i32, i32) {
    %c0_i32 = arith.constant 0 : i32
    %c0_i32_0 = arith.constant 0 : i32
    %c0_i32_1 = arith.constant 0 : i32
    return %arg0, %c0_i32, %c0_i32_0 : i32, i32, i32
  }
  func.func @transform_1(%arg0: i32) -> (i32, i32, i32) {
    %c0_i32 = arith.constant 0 : i32
    %c0_i32_0 = arith.constant 0 : i32
    %c0_i32_1 = arith.constant 0 : i32
    %c0_i32_2 = arith.constant 0 : i32
    return %c0_i32, %c0_i32_0, %c0_i32_1 : i32, i32, i32
  }
  func.func @transform_2(%arg0: i32) -> (i32, i32) {
    %c0_i32 = arith.constant 0 : i32
    %c0_i32_0 = arith.constant 0 : i32
    %c0_i32_1 = arith.constant 0 : i32
    return %c0_i32, %c0_i32_0 : i32, i32
  }
  func.func @transform_3(%arg0: i32) -> (i32, i32, i32) {
    %c0_i32 = arith.constant 0 : i32
    %c0_i32_0 = arith.constant 0 : i32
    %c0_i32_1 = arith.constant 0 : i32
    %c0_i32_2 = arith.constant 0 : i32
    return %c0_i32, %c0_i32_0, %c0_i32_1 : i32, i32, i32
  }
  func.func @transform_4(%arg0: i32) -> (i32, i32, i32) {
    %c0_i32 = arith.constant 0 : i32
    %c0_i32_0 = arith.constant 0 : i32
    %c0_i32_1 = arith.constant 0 : i32
    %c0_i32_2 = arith.constant 0 : i32
    return %c0_i32, %c0_i32_0, %c0_i32_1 : i32, i32, i32
  }
  func.func @transform_5(%arg0: i32) -> (i32, i32, i32) {
    %c0_i32 = arith.constant 0 : i32
    %c0_i32_0 = arith.constant 0 : i32
    %c0_i32_1 = arith.constant 0 : i32
    %c0_i32_2 = arith.constant 0 : i32
    return %c0_i32, %c0_i32_0, %c0_i32_1 : i32, i32, i32
  }
  func.func @transform_6(%arg0: i32) -> (i32, i32) {
    %c0_i32 = arith.constant 0 : i32
    %c0_i32_0 = arith.constant 0 : i32
    %c0_i32_1 = arith.constant 0 : i32
    return %c0_i32, %c0_i32_0 : i32, i32
  }
  func.func @transform_7(%arg0: i32) -> (i32, i32, i32) {
    %c0_i32 = arith.constant 0 : i32
    %c0_i32_0 = arith.constant 0 : i32
    %c0_i32_1 = arith.constant 0 : i32
    %c0_i32_2 = arith.constant 0 : i32
    return %c0_i32, %c0_i32_0, %c0_i32_1 : i32, i32, i32
  }
  func.func @transform_8(%arg0: i32) -> (i32, i32, i32) {
    %c0_i32 = arith.constant 0 : i32
    %c0_i32_0 = arith.constant 0 : i32
    %c0_i32_1 = arith.constant 0 : i32
    %c0_i32_2 = arith.constant 0 : i32
    return %c0_i32, %c0_i32_0, %c0_i32_1 : i32, i32, i32
  }
  func.func @transform_9(%arg0: i32) -> (i32, i32, i32) {
    %c0_i32 = arith.constant 0 : i32
    %c0_i32_0 = arith.constant 0 : i32
    %c0_i32_1 = arith.constant 0 : i32
    %c0_i32_2 = arith.constant 0 : i32
    return %c0_i32, %c0_i32_0, %c0_i32_1 : i32, i32, i32
  }
  func.func @transform_10(%arg0: i32) -> (i32, i32) {
    %c0_i32 = arith.constant 0 : i32
    %c0_i32_0 = arith.constant 0 : i32
    %c0_i32_1 = arith.constant 0 : i32
    return %c0_i32, %c0_i32_0 : i32, i32
  }
  func.func @transform_11(%arg0: i32) -> (i32, i32) {
    %c0_i32 = arith.constant 0 : i32
    %c0_i32_0 = arith.constant 0 : i32
    %c0_i32_1 = arith.constant 0 : i32
    return %c0_i32, %c0_i32_0 : i32, i32
  }
  func.func @transform_12(%arg0: i32) -> (i32, i32) {
    %c0_i32 = arith.constant 0 : i32
    %c0_i32_0 = arith.constant 0 : i32
    %c0_i32_1 = arith.constant 0 : i32
    return %c0_i32, %c0_i32_0 : i32, i32
  }
  func.func @transform_13(%arg0: i32) -> (i32, i32) {
    %c0_i32 = arith.constant 0 : i32
    %c0_i32_0 = arith.constant 0 : i32
    %c0_i32_1 = arith.constant 0 : i32
    return %c0_i32, %c0_i32_0 : i32, i32
  }
  func.func @transform_14(%arg0: i32) -> (i32, i32) {
    %c0_i32 = arith.constant 0 : i32
    %c0_i32_0 = arith.constant 0 : i32
    %c0_i32_1 = arith.constant 0 : i32
    return %c0_i32, %c0_i32_0 : i32, i32
  }
  func.func @transform_15(%arg0: i32) -> (i32, i32, i32) {
    %c0_i32 = arith.constant 0 : i32
    %c0_i32_0 = arith.constant 0 : i32
    %c0_i32_1 = arith.constant 0 : i32
    return %arg0, %c0_i32, %c0_i32_0 : i32, i32, i32
  }
}

</mosaic_0001>

<llo_original>
// kernel: net_forward.1
$region0: #{net_forward.1}
  #allocation0 [shape = 'u32[]', space=smem, size = 0x4, offset = 0x4, fixed_abs, tag = 'smem constant byte address 0x4 - core index']
  #allocation1 [shape = 'u32[72,128]{1,0:T(1,128)}', space=vmem, size = 0x9000, scoped, tag = 'internal scratch']
  %s0 = inlined_call_operand.vmem [shape: f32[2,32,32], index: 0, kind: input, shape index: {}]
  %s1 = inlined_call_operand.vmem [shape: f32[3,180,32], index: 1, kind: input, shape index: {}]
  %s2 = inlined_call_operand.vmem [shape: f32[180,1], index: 2, kind: input, shape index: {}]
  %s3 = inlined_call_operand.vmem [shape: f32[2,90,180], index: 3, kind: input, shape index: {}]
  %s4 = inlined_call_operand.vmem [shape: f32[2,30,15], index: 4, kind: input, shape index: {}]
  %s5 = inlined_call_operand.vmem [shape: f32[3,208,90], index: 5, kind: input, shape index: {}]
  %s6 = inlined_call_operand.vmem [shape: f32[208,1], index: 6, kind: input, shape index: {}]
  %s7 = inlined_call_operand.vmem [shape: f32[2,96,208], index: 7, kind: input, shape index: {}]
  %s8 = inlined_call_operand.vmem [shape: f32[2,13,6], index: 8, kind: input, shape index: {}]
  %s9 = inlined_call_operand.vmem [shape: f32[6,120,96], index: 9, kind: input, shape index: {}]
  %s10 = inlined_call_operand.vmem [shape: f32[120,1], index: 10, kind: input, shape index: {}]
  %s11 = inlined_call_operand.vmem [shape: f32[84,120], index: 11, kind: input, shape index: {}]
  %s12 = inlined_call_operand.vmem [shape: f32[84,1], index: 12, kind: input, shape index: {}]
  %s13 = inlined_call_operand.vmem [shape: f32[10,84], index: 13, kind: input, shape index: {}]
  %s14 = inlined_call_operand.vmem [shape: f32[10,1], index: 14, kind: input, shape index: {}]
  %s15 = inlined_call_operand.vmem [shape: f32[2,10,1], index: 15, kind: output, shape index: {}]
  %s16 = sld [smem:[#allocation0]]
  $region93: #{net_forward.1} parent=0
    _
  %s18 = ssub.s32 1, %s16
  %s19 = scalar_select 0, %s18, %s16
  loop: start=0, step=1, limit=4
  $region2: #{net_forward.1} parent=0 // loop_pre_header
    _
  $region3: #{net_forward.1} parent=0 // loop_header
    %s21 = sphi 0, %s25
    %p22 = scmp.ge.s32.totalorder %s21, 4
    %s31 = sphi 0, %s33
    %s34 = sphi 0, %s31
    %s35 = sphi 0, %s34
    %s51 = sphi 0, %s35
    %s55 = sphi 0, %s55
    %s57 = sphi 0, %s55
    %s58 = sphi 0, %s57
    %s72 = sphi 0, %s58
    %s76 = sphi 0, %s76
    %s78 = sphi 0, %s76
    %s79 = sphi 0, %s78
    %s93 = sphi 0, %s79
    %s97 = sphi 0, %s97
    %s99 = sphi 0, %s97
    %s100 = sphi 0, %s99
    %s114 = sphi 0, %s100
    %s118 = sphi 0, %s118
    %s120 = sphi 0, %s118
    %s121 = sphi 0, %s120
    %s135 = sphi 0, %s121
    %s139 = sphi 0, %s139
    %s141 = sphi 0, %s139
    %s142 = sphi 0, %s141
    %s156 = sphi 0, %s142
    %s160 = sphi 0, %s160
    %s162 = sphi 0, %s160
    %s163 = sphi 0, %s162
    %s177 = sphi 0, %s163
    %s181 = sphi 0, %s181
    %s183 = sphi 0, %s181
    %s184 = sphi 0, %s183
    %s198 = sphi 0, %s184
    %s202 = sphi 0, %s202
    %s204 = sphi 0, %s202
    %s205 = sphi 0, %s204
    %s219 = sphi 0, %s205
    %s223 = sphi 0, %s223
    %s225 = sphi 0, %s223
    %s226 = sphi 0, %s225
    %s240 = sphi 0, %s226
    %s244 = sphi 0, %s244
    %s246 = sphi 0, %s244
    %s247 = sphi 0, %s246
    %s261 = sphi 0, %s247
    %s265 = sphi 0, %s265
    %s267 = sphi 0, %s265
    %s268 = sphi 0, %s267
    %s282 = sphi 0, %s268
    %s286 = sphi 0, %s286
    %s288 = sphi 0, %s286
    %s289 = sphi 0, %s288
    %s303 = sphi 0, %s289
    %s307 = sphi 0, %s307
    %s309 = sphi 0, %s307
    %s310 = sphi 0, %s309
    %s324 = sphi 0, %s310
    %s328 = sphi 0, %s328
    %s330 = sphi 0, %s328
    %s331 = sphi 0, %s330
    %s345 = sphi 0, %s331
    %s351 = sphi 0, %s353
    %s354 = sphi 0, %s351
    %s355 = sphi 0, %s354
    %s371 = sphi 0, %s355
  $region4: #{net_forward.1} parent=0 // loop_header_branch
    %24 = sbr.rel (%p22) target = $region8
  $region5: #{net_forward.1} parent=0 // loop_body
    %s26 = ssub.s32 %s21, 1
    %s27 = ssub.s32 %s21, 2
    %s28 = sadd.s32 %s21, 1
    %s29 = ssub.s32 %s21, %s28
    %p30 = scmp.eq.s32.totalorder %s29, 0
    %s32 = sadd.s32 %s31, 1
    %s33 = scalar_select %p30, %s31, %s32
    %p36 = pneg %p30
    %p37 = scmp.eq.s32.totalorder %s21, 1
    %p38 = por %p36, %p37
    %p39 = scmp.ne.s32.totalorder %s31, %s34
    %p40 = scmp.eq.s32.totalorder %s21, 0
    %p41 = por %p39, %p40
    %p42 = scmp.ne.s32.totalorder %s31, %s34
    %p43 = scmp.eq.s32.totalorder %s26, 1
    %p44 = por %p42, %p43
    %p45 = scmp.ne.s32.totalorder %s34, %s35
    %p46 = scmp.eq.s32.totalorder %s26, 0
    %p47 = por %p45, %p46
    %p48 = scmp.ne.s32.totalorder %s34, %s35
    %p49 = scmp.eq.s32.totalorder %s27, 1
    %p50 = por %p48, %p49
    %p52 = scmp.ne.s32.totalorder %s35, %s51
    %p53 = scmp.eq.s32.totalorder %s27, 0
    %p54 = por %p52, %p53
    %s56 = sadd.s32 %s55, 1
    %p59 = scmp.eq.s32.totalorder %s21, 1
    %p60 = scmp.ne.s32.totalorder %s55, %s57
    %p61 = scmp.eq.s32.totalorder %s21, 0
    %p62 = por %p60, %p61
    %p63 = scmp.ne.s32.totalorder %s55, %s57
    %p64 = scmp.eq.s32.totalorder %s26, 1
    %p65 = por %p63, %p64
    %p66 = scmp.ne.s32.totalorder %s57, %s58
    %p67 = scmp.eq.s32.totalorder %s26, 0
    %p68 = por %p66, %p67
    %p69 = scmp.ne.s32.totalorder %s57, %s58
    %p70 = scmp.eq.s32.totalorder %s27, 1
    %p71 = por %p69, %p70
    %p73 = scmp.ne.s32.totalorder %s58, %s72
    %p74 = scmp.eq.s32.totalorder %s27, 0
    %p75 = por %p73, %p74
    %s77 = sadd.s32 %s76, 1
    %p80 = scmp.eq.s32.totalorder %s21, 1
    %p81 = scmp.ne.s32.totalorder %s76, %s78
    %p82 = scmp.eq.s32.totalorder %s21, 0
    %p83 = por %p81, %p82
    %p84 = scmp.ne.s32.totalorder %s76, %s78
    %p85 = scmp.eq.s32.totalorder %s26, 1
    %p86 = por %p84, %p85
    %p87 = scmp.ne.s32.totalorder %s78, %s79
    %p88 = scmp.eq.s32.totalorder %s26, 0
    %p89 = por %p87, %p88
    %p90 = scmp.ne.s32.totalorder %s78, %s79
    %p91 = scmp.eq.s32.totalorder %s27, 1
    %p92 = por %p90, %p91
    %p94 = scmp.ne.s32.totalorder %s79, %s93
    %p95 = scmp.eq.s32.totalorder %s27, 0
    %p96 = por %p94, %p95
    %s98 = sadd.s32 %s97, 1
    %p101 = scmp.eq.s32.totalorder %s21, 1
    %p102 = scmp.ne.s32.totalorder %s97, %s99
    %p103 = scmp.eq.s32.totalorder %s21, 0
    %p104 = por %p102, %p103
    %p105 = scmp.ne.s32.totalorder %s97, %s99
    %p106 = scmp.eq.s32.totalorder %s26, 1
    %p107 = por %p105, %p106
    %p108 = scmp.ne.s32.totalorder %s99, %s100
    %p109 = scmp.eq.s32.totalorder %s26, 0
    %p110 = por %p108, %p109
    %p111 = scmp.ne.s32.totalorder %s99, %s100
    %p112 = scmp.eq.s32.totalorder %s27, 1
    %p113 = por %p111, %p112
    %p115 = scmp.ne.s32.totalorder %s100, %s114
    %p116 = scmp.eq.s32.totalorder %s27, 0
    %p117 = por %p115, %p116
    %s119 = sadd.s32 %s118, 1
    %p122 = scmp.eq.s32.totalorder %s21, 1
    %p123 = scmp.ne.s32.totalorder %s118, %s120
    %p124 = scmp.eq.s32.totalorder %s21, 0
    %p125 = por %p123, %p124
    %p126 = scmp.ne.s32.totalorder %s118, %s120
    %p127 = scmp.eq.s32.totalorder %s26, 1
    %p128 = por %p126, %p127
    %p129 = scmp.ne.s32.totalorder %s120, %s121
    %p130 = scmp.eq.s32.totalorder %s26, 0
    %p131 = por %p129, %p130
    %p132 = scmp.ne.s32.totalorder %s120, %s121
    %p133 = scmp.eq.s32.totalorder %s27, 1
    %p134 = por %p132, %p133
    %p136 = scmp.ne.s32.totalorder %s121, %s135
    %p137 = scmp.eq.s32.totalorder %s27, 0
    %p138 = por %p136, %p137
    %s140 = sadd.s32 %s139, 1
    %p143 = scmp.eq.s32.totalorder %s21, 1
    %p144 = scmp.ne.s32.totalorder %s139, %s141
    %p145 = scmp.eq.s32.totalorder %s21, 0
    %p146 = por %p144, %p145
    %p147 = scmp.ne.s32.totalorder %s139, %s141
    %p148 = scmp.eq.s32.totalorder %s26, 1
    %p149 = por %p147, %p148
    %p150 = scmp.ne.s32.totalorder %s141, %s142
    %p151 = scmp.eq.s32.totalorder %s26, 0
    %p152 = por %p150, %p151
    %p153 = scmp.ne.s32.totalorder %s141, %s142
    %p154 = scmp.eq.s32.totalorder %s27, 1
    %p155 = por %p153, %p154
    %p157 = scmp.ne.s32.totalorder %s142, %s156
    %p158 = scmp.eq.s32.totalorder %s27, 0
    %p159 = por %p157, %p158
    %s161 = sadd.s32 %s160, 1
    %p164 = scmp.eq.s32.totalorder %s21, 1
    %p165 = scmp.ne.s32.totalorder %s160, %s162
    %p166 = scmp.eq.s32.totalorder %s21, 0
    %p167 = por %p165, %p166
    %p168 = scmp.ne.s32.totalorder %s160, %s162
    %p169 = scmp.eq.s32.totalorder %s26, 1
    %p170 = por %p168, %p169
    %p171 = scmp.ne.s32.totalorder %s162, %s163
    %p172 = scmp.eq.s32.totalorder %s26, 0
    %p173 = por %p171, %p172
    %p174 = scmp.ne.s32.totalorder %s162, %s163
    %p175 = scmp.eq.s32.totalorder %s27, 1
    %p176 = por %p174, %p175
    %p178 = scmp.ne.s32.totalorder %s163, %s177
    %p179 = scmp.eq.s32.totalorder %s27, 0
    %p180 = por %p178, %p179
    %s182 = sadd.s32 %s181, 1
    %p185 = scmp.eq.s32.totalorder %s21, 1
    %p186 = scmp.ne.s32.totalorder %s181, %s183
    %p187 = scmp.eq.s32.totalorder %s21, 0
    %p188 = por %p186, %p187
    %p189 = scmp.ne.s32.totalorder %s181, %s183
    %p190 = scmp.eq.s32.totalorder %s26, 1
    %p191 = por %p189, %p190
    %p192 = scmp.ne.s32.totalorder %s183, %s184
    %p193 = scmp.eq.s32.totalorder %s26, 0
    %p194 = por %p192, %p193
    %p195 = scmp.ne.s32.totalorder %s183, %s184
    %p196 = scmp.eq.s32.totalorder %s27, 1
    %p197 = por %p195, %p196
    %p199 = scmp.ne.s32.totalorder %s184, %s198
    %p200 = scmp.eq.s32.totalorder %s27, 0
    %p201 = por %p199, %p200
    %s203 = sadd.s32 %s202, 1
    %p206 = scmp.eq.s32.totalorder %s21, 1
    %p207 = scmp.ne.s32.totalorder %s202, %s204
    %p208 = scmp.eq.s32.totalorder %s21, 0
    %p209 = por %p207, %p208
    %p210 = scmp.ne.s32.totalorder %s202, %s204
    %p211 = scmp.eq.s32.totalorder %s26, 1
    %p212 = por %p210, %p211
    %p213 = scmp.ne.s32.totalorder %s204, %s205
    %p214 = scmp.eq.s32.totalorder %s26, 0
    %p215 = por %p213, %p214
    %p216 = scmp.ne.s32.totalorder %s204, %s205
    %p217 = scmp.eq.s32.totalorder %s27, 1
    %p218 = por %p216, %p217
    %p220 = scmp.ne.s32.totalorder %s205, %s219
    %p221 = scmp.eq.s32.totalorder %s27, 0
    %p222 = por %p220, %p221
    %s224 = sadd.s32 %s223, 1
    %p227 = scmp.eq.s32.totalorder %s21, 1
    %p228 = scmp.ne.s32.totalorder %s223, %s225
    %p229 = scmp.eq.s32.totalorder %s21, 0
    %p230 = por %p228, %p229
    %p231 = scmp.ne.s32.totalorder %s223, %s225
    %p232 = scmp.eq.s32.totalorder %s26, 1
    %p233 = por %p231, %p232
    %p234 = scmp.ne.s32.totalorder %s225, %s226
    %p235 = scmp.eq.s32.totalorder %s26, 0
    %p236 = por %p234, %p235
    %p237 = scmp.ne.s32.totalorder %s225, %s226
    %p238 = scmp.eq.s32.totalorder %s27, 1
    %p239 = por %p237, %p238
    %p241 = scmp.ne.s32.totalorder %s226, %s240
    %p242 = scmp.eq.s32.totalorder %s27, 0
    %p243 = por %p241, %p242
    %s245 = sadd.s32 %s244, 1
    %p248 = scmp.eq.s32.totalorder %s21, 1
    %p249 = scmp.ne.s32.totalorder %s244, %s246
    %p250 = scmp.eq.s32.totalorder %s21, 0
    %p251 = por %p249, %p250
    %p252 = scmp.ne.s32.totalorder %s244, %s246
    %p253 = scmp.eq.s32.totalorder %s26, 1
    %p254 = por %p252, %p253
    %p255 = scmp.ne.s32.totalorder %s246, %s247
    %p256 = scmp.eq.s32.totalorder %s26, 0
    %p257 = por %p255, %p256
    %p258 = scmp.ne.s32.totalorder %s246, %s247
    %p259 = scmp.eq.s32.totalorder %s27, 1
    %p260 = por %p258, %p259
    %p262 = scmp.ne.s32.totalorder %s247, %s261
    %p263 = scmp.eq.s32.totalorder %s27, 0
    %p264 = por %p262, %p263
    %s266 = sadd.s32 %s265, 1
    %p269 = scmp.eq.s32.totalorder %s21, 1
    %p270 = scmp.ne.s32.totalorder %s265, %s267
    %p271 = scmp.eq.s32.totalorder %s21, 0
    %p272 = por %p270, %p271
    %p273 = scmp.ne.s32.totalorder %s265, %s267
    %p274 = scmp.eq.s32.totalorder %s26, 1
    %p275 = por %p273, %p274
    %p276 = scmp.ne.s32.totalorder %s267, %s268
    %p277 = scmp.eq.s32.totalorder %s26, 0
    %p278 = por %p276, %p277
    %p279 = scmp.ne.s32.totalorder %s267, %s268
    %p280 = scmp.eq.s32.totalorder %s27, 1
    %p281 = por %p279, %p280
    %p283 = scmp.ne.s32.totalorder %s268, %s282
    %p284 = scmp.eq.s32.totalorder %s27, 0
    %p285 = por %p283, %p284
    %s287 = sadd.s32 %s286, 1
    %p290 = scmp.eq.s32.totalorder %s21, 1
    %p291 = scmp.ne.s32.totalorder %s286, %s288
    %p292 = scmp.eq.s32.totalorder %s21, 0
    %p293 = por %p291, %p292
    %p294 = scmp.ne.s32.totalorder %s286, %s288
    %p295 = scmp.eq.s32.totalorder %s26, 1
    %p296 = por %p294, %p295
    %p297 = scmp.ne.s32.totalorder %s288, %s289
    %p298 = scmp.eq.s32.totalorder %s26, 0
    %p299 = por %p297, %p298
    %p300 = scmp.ne.s32.totalorder %s288, %s289
    %p301 = scmp.eq.s32.totalorder %s27, 1
    %p302 = por %p300, %p301
    %p304 = scmp.ne.s32.totalorder %s289, %s303
    %p305 = scmp.eq.s32.totalorder %s27, 0
    %p306 = por %p304, %p305
    %s308 = sadd.s32 %s307, 1
    %p311 = scmp.eq.s32.totalorder %s21, 1
    %p312 = scmp.ne.s32.totalorder %s307, %s309
    %p313 = scmp.eq.s32.totalorder %s21, 0
    %p314 = por %p312, %p313
    %p315 = scmp.ne.s32.totalorder %s307, %s309
    %p316 = scmp.eq.s32.totalorder %s26, 1
    %p317 = por %p315, %p316
    %p318 = scmp.ne.s32.totalorder %s309, %s310
    %p319 = scmp.eq.s32.totalorder %s26, 0
    %p320 = por %p318, %p319
    %p321 = scmp.ne.s32.totalorder %s309, %s310
    %p322 = scmp.eq.s32.totalorder %s27, 1
    %p323 = por %p321, %p322
    %p325 = scmp.ne.s32.totalorder %s310, %s324
    %p326 = scmp.eq.s32.totalorder %s27, 0
    %p327 = por %p325, %p326
    %s329 = sadd.s32 %s328, 1
    %p332 = scmp.eq.s32.totalorder %s21, 1
    %p333 = scmp.ne.s32.totalorder %s328, %s330
    %p334 = scmp.eq.s32.totalorder %s21, 0
    %p335 = por %p333, %p334
    %p336 = scmp.ne.s32.totalorder %s328, %s330
    %p337 = scmp.eq.s32.totalorder %s26, 1
    %p338 = por %p336, %p337
    %p339 = scmp.ne.s32.totalorder %s330, %s331
    %p340 = scmp.eq.s32.totalorder %s26, 0
    %p341 = por %p339, %p340
    %p342 = scmp.ne.s32.totalorder %s330, %s331
    %p343 = scmp.eq.s32.totalorder %s27, 1
    %p344 = por %p342, %p343
    %p346 = scmp.ne.s32.totalorder %s331, %s345
    %p347 = scmp.eq.s32.totalorder %s27, 0
    %p348 = por %p346, %p347
    %s349 = ssub.s32 %s21, %s28
    %p350 = scmp.eq.s32.totalorder %s349, 0
    %s352 = sadd.s32 %s351, 1
    %s353 = scalar_select %p350, %s351, %s352
    %p356 = pneg %p350
    %p357 = scmp.eq.s32.totalorder %s21, 1
    %p358 = por %p356, %p357
    %p359 = scmp.ne.s32.totalorder %s351, %s354
    %p360 = scmp.eq.s32.totalorder %s21, 0
    %p361 = por %p359, %p360
    %p362 = scmp.ne.s32.totalorder %s351, %s354
    %p363 = scmp.eq.s32.totalorder %s26, 1
    %p364 = por %p362, %p363
    %p365 = scmp.ne.s32.totalorder %s354, %s355
    %p366 = scmp.eq.s32.totalorder %s26, 0
    %p367 = por %p365, %p366
    %p368 = scmp.ne.s32.totalorder %s354, %s355
    %p369 = scmp.eq.s32.totalorder %s27, 1
    %p370 = por %p368, %p369
    %p372 = scmp.ne.s32.totalorder %s355, %s371
    %p373 = scmp.eq.s32.totalorder %s27, 0
    %p374 = por %p372, %p373
    %p375 = scmp.le.s32.totalorder 1, %s21
    %p376 = scmp.lt.s32.totalorder %s21, 3
    %p377 = pnand %p375, %p376
    %p378 = pneg %p377
    // Predicated region
    $region9: #{net_forward.1} parent=5 // pred_check
      _
    $region10: #{net_forward.1} parent=5 // pred_check_branch
      %380 = sbr.rel (%p377) target = $region12
    $region11: #{net_forward.1} parent=5 // pred_region
      %s381 = ssub.s32 %s21, 1
      // Predicated region
      $region13: #{net_forward.1} parent=11 // pred_check
        %p382 = pneg %p68
      $region14: #{net_forward.1} parent=11 // pred_check_branch
        %384 = sbr.rel (%p382) target = $region16
      $region15: #{net_forward.1} parent=11 // pred_region
        _
      $region16: #{net_forward.1} parent=11 // pred_fallthru
        _
      // Predicated region
      $region17: #{net_forward.1} parent=11 // pred_check
        %p385 = pneg %p89
      $region18: #{net_forward.1} parent=11 // pred_check_branch
        %387 = sbr.rel (%p385) target = $region20
      $region19: #{net_forward.1} parent=11 // pred_region
        _
      $region20: #{net_forward.1} parent=11 // pred_fallthru
        _
      // Predicated region
      $region21: #{net_forward.1} parent=11 // pred_check
        %p388 = pneg %p110
      $region22: #{net_forward.1} parent=11 // pred_check_branch
        %390 = sbr.rel (%p388) target = $region24
      $region23: #{net_forward.1} parent=11 // pred_region
        _
      $region24: #{net_forward.1} parent=11 // pred_fallthru
        _
      // Predicated region
      $region25: #{net_forward.1} parent=11 // pred_check
        %p391 = pneg %p131
      $region26: #{net_forward.1} parent=11 // pred_check_branch
        %393 = sbr.rel (%p391) target = $region28
      $region27: #{net_forward.1} parent=11 // pred_region
        _
      $region28: #{net_forward.1} parent=11 // pred_fallthru
        _
      // Predicated region
      $region29: #{net_forward.1} parent=11 // pred_check
        %p394 = pneg %p152
      $region30: #{net_forward.1} parent=11 // pred_check_branch
        %396 = sbr.rel (%p394) target = $region32
      $region31: #{net_forward.1} parent=11 // pred_region
        _
      $region32: #{net_forward.1} parent=11 // pred_fallthru
        _
      // Predicated region
      $region33: #{net_forward.1} parent=11 // pred_check
        %p397 = pneg %p173
      $region34: #{net_forward.1} parent=11 // pred_check_branch
        %399 = sbr.rel (%p397) target = $region36
      $region35: #{net_forward.1} parent=11 // pred_region
        _
      $region36: #{net_forward.1} parent=11 // pred_fallthru
        _
      // Predicated region
      $region37: #{net_forward.1} parent=11 // pred_check
        %p400 = pneg %p194
      $region38: #{net_forward.1} parent=11 // pred_check_branch
        %402 = sbr.rel (%p400) target = $region40
      $region39: #{net_forward.1} parent=11 // pred_region
        _
      $region40: #{net_forward.1} parent=11 // pred_fallthru
        _
      // Predicated region
      $region41: #{net_forward.1} parent=11 // pred_check
        %p403 = pneg %p215
      $region42: #{net_forward.1} parent=11 // pred_check_branch
        %405 = sbr.rel (%p403) target = $region44
      $region43: #{net_forward.1} parent=11 // pred_region
        _
      $region44: #{net_forward.1} parent=11 // pred_fallthru
        _
      // Predicated region
      $region45: #{net_forward.1} parent=11 // pred_check
        %p406 = pneg %p236
      $region46: #{net_forward.1} parent=11 // pred_check_branch
        %408 = sbr.rel (%p406) target = $region48
      $region47: #{net_forward.1} parent=11 // pred_region
        _
      $region48: #{net_forward.1} parent=11 // pred_fallthru
        _
      // Predicated region
      $region49: #{net_forward.1} parent=11 // pred_check
        %p409 = pneg %p257
      $region50: #{net_forward.1} parent=11 // pred_check_branch
        %411 = sbr.rel (%p409) target = $region52
      $region51: #{net_forward.1} parent=11 // pred_region
        _
      $region52: #{net_forward.1} parent=11 // pred_fallthru
        _
      // Predicated region
      $region53: #{net_forward.1} parent=11 // pred_check
        %p412 = pneg %p278
      $region54: #{net_forward.1} parent=11 // pred_check_branch
        %414 = sbr.rel (%p412) target = $region56
      $region55: #{net_forward.1} parent=11 // pred_region
        _
      $region56: #{net_forward.1} parent=11 // pred_fallthru
        _
      // Predicated region
      $region57: #{net_forward.1} parent=11 // pred_check
        %p415 = pneg %p299
      $region58: #{net_forward.1} parent=11 // pred_check_branch
        %417 = sbr.rel (%p415) target = $region60
      $region59: #{net_forward.1} parent=11 // pred_region
        _
      $region60: #{net_forward.1} parent=11 // pred_fallthru
        _
      // Predicated region
      $region61: #{net_forward.1} parent=11 // pred_check
        %p418 = pneg %p320
      $region62: #{net_forward.1} parent=11 // pred_check_branch
        %420 = sbr.rel (%p418) target = $region64
      $region63: #{net_forward.1} parent=11 // pred_region
        _
      $region64: #{net_forward.1} parent=11 // pred_fallthru
        _
      // Predicated region
      $region65: #{net_forward.1} parent=11 // pred_check
        %p421 = pneg %p341
      $region66: #{net_forward.1} parent=11 // pred_check_branch
        %423 = sbr.rel (%p421) target = $region68
      $region67: #{net_forward.1} parent=11 // pred_region
        _
      $region68: #{net_forward.1} parent=11 // pred_fallthru
        _
    $region12: #{net_forward.1} parent=5 // pred_fallthru
      _
    %p424 = scmp.lt.s32.totalorder %s21, 2
    // Predicated region
    $region69: #{net_forward.1} parent=5 // pred_check
      %p425 = pneg %p424
    $region70: #{net_forward.1} parent=5 // pred_check_branch
      %427 = sbr.rel (%p425) target = $region72
    $region71: #{net_forward.1} parent=5 // pred_region
      // Predicated region
      $region73: #{net_forward.1} parent=71 // pred_check
        %p428 = pneg %p41
      $region74: #{net_forward.1} parent=71 // pred_check_branch
        %430 = sbr.rel (%p428) target = $region76
      $region75: #{net_forward.1} parent=71 // pred_region
        %p431 = scmp.lt.s32.totalorder %s21, 1
        %s432 = scalar_select %p431, %s21, 1
        %s433 = smul.addr %s432, 4
        %s434 = smul.addr %s433, 8
        %s435 = scalar_lea.vmem %s0, %s434
      $region76: #{net_forward.1} parent=71 // pred_fallthru
        _
    $region72: #{net_forward.1} parent=5 // pred_fallthru
      _
    %p436 = scmp.le.s32.totalorder 1, %s21
    %p437 = scmp.lt.s32.totalorder %s21, 3
    %p438 = pnand %p436, %p437
    %p439 = pneg %p438
    // Predicated region
    $region77: #{net_forward.1} parent=5 // pred_check
      _
    $region78: #{net_forward.1} parent=5 // pred_check_branch
      %441 = sbr.rel (%p438) target = $region80
    $region79: #{net_forward.1} parent=5 // pred_region
      %s442 = ssub.s32 %s21, 1
      %p443 = scmp.lt.s32.totalorder %s26, 1
      %s444 = scalar_select %p443, %s26, 1
      %s445 = smul.addr %s444, 4
      %s446 = smul.addr %s445, 8
      %s447 = scalar_lea.vmem %s0, %s446
      %p448 = pneg %p47
      %p449 = pneg %p44
      %p450 = pneg %p68
      %p451 = pneg %p65
      %p452 = pneg %p89
      %p453 = pneg %p86
      %p454 = pneg %p110
      %p455 = pneg %p107
      %p456 = pneg %p131
      %p457 = pneg %p128
      %p458 = pneg %p152
      %p459 = pneg %p149
      %p460 = pneg %p173
      %p461 = pneg %p170
      %p462 = pneg %p194
      %p463 = pneg %p191
      %p464 = pneg %p215
      %p465 = pneg %p212
      %p466 = pneg %p236
      %p467 = pneg %p233
      %p468 = pneg %p257
      %p469 = pneg %p254
      %p470 = pneg %p278
      %p471 = pneg %p275
      %p472 = pneg %p299
      %p473 = pneg %p296
      %p474 = pneg %p320
      %p475 = pneg %p317
      %p476 = pneg %p341
      %p477 = pneg %p338
      %p478 = pneg %p367
      %p479 = pneg %p364
      %p480 = scmp.lt.s32.totalorder %s26, 1
      %s481 = scalar_select %p480, %s26, 1
      %s482 = smul.addr %s481, 2
      %s483 = smul.addr %s482, 8
      %s484 = scalar_lea.vmem %s15, %s483
      %p485 = scmp.lt.s32.totalorder %s26, 1
      %s486 = scalar_select %p485, %s26, 1
      %s487 = smul.addr %s486, 4
      %s488 = smul.addr %s487, 8
      %s489 = scalar_lea.vmem %s0, %s488
      %p490 = scmp.lt.s32.totalorder %s26, 1
      %s491 = scalar_select %p490, %s26, 1
      %s492 = smul.addr %s491, 2
      %s493 = smul.addr %s492, 8
      %s494 = scalar_lea.vmem %s15, %s493
      %v495 = vld [vmem:[%s489] sm:$0xff]
      %v496 = vld [vmem:[%s489 + $0x8] sm:$0xff]
      %v497 = vld [vmem:[%s489 + $0x10] sm:$0xff]
      %v498 = vld [vmem:[%s489 + $0x18] sm:$0xff]
      %v499 = vld [vmem:[%s2] sm:$0xff]
      %v500 = vld [vmem:[%s2 + $0x8] sm:$0xff]
      %v501 = vld [vmem:[%s2 + $0x10] sm:$0xff]
      %v502 = vld [vmem:[%s2 + $0x18] sm:$0xff]
      %v503 = vld [vmem:[%s2 + $0x20] sm:$0xff]
      %v504 = vld [vmem:[%s2 + $0x28] sm:$0xff]
      %v505 = vld [vmem:[%s2 + $0x30] sm:$0xff]
      %v506 = vld [vmem:[%s2 + $0x38] sm:$0xff]
      %v507 = vld [vmem:[%s2 + $0x40] sm:$0xff]
      %v508 = vld [vmem:[%s2 + $0x48] sm:$0xff]
      %v509 = vld [vmem:[%s2 + $0x50] sm:$0xff]
      %v510 = vld [vmem:[%s2 + $0x58] sm:$0xff]
      %v511 = vld [vmem:[%s2 + $0x60] sm:$0xff]
      %v512 = vld [vmem:[%s2 + $0x68] sm:$0xff]
      %v513 = vld [vmem:[%s2 + $0x70] sm:$0xff]
      %v514 = vld [vmem:[%s2 + $0x78] sm:$0xff]
      %v515 = vld [vmem:[%s2 + $0x80] sm:$0xff]
      %v516 = vld [vmem:[%s2 + $0x88] sm:$0xff]
      %v517 = vld [vmem:[%s2 + $0x90] sm:$0xff]
      %v518 = vld [vmem:[%s2 + $0x98] sm:$0xff]
      %v519 = vld [vmem:[%s2 + $0xa0] sm:$0xff]
      %v520 = vld [vmem:[%s2 + $0xa8] sm:$0xff]
      %v521 = vld [vmem:[%s2 + $0xb0] sm:$0xf]
      %v522 = vld [vmem:[%s1] sm:$0xff]
      %v523 = vld [vmem:[%s1 + $0x8] sm:$0xff]
      %v524 = vld [vmem:[%s1 + $0x10] sm:$0xff]
      %v525 = vld [vmem:[%s1 + $0x18] sm:$0xff]
      %v526 = vld [vmem:[%s1 + $0x20] sm:$0xff]
      %v527 = vld [vmem:[%s1 + $0x28] sm:$0xff]
      %v528 = vld [vmem:[%s1 + $0x30] sm:$0xff]
      %v529 = vld [vmem:[%s1 + $0x38] sm:$0xff]
      %v530 = vld [vmem:[%s1 + $0x40] sm:$0xff]
      %v531 = vld [vmem:[%s1 + $0x48] sm:$0xff]
      %v532 = vld [vmem:[%s1 + $0x50] sm:$0xff]
      %v533 = vld [vmem:[%s1 + $0x58] sm:$0xff]
      %v534 = vld [vmem:[%s1 + $0x60] sm:$0xff]
      %v535 = vld [vmem:[%s1 + $0x68] sm:$0xff]
      %v536 = vld [vmem:[%s1 + $0x70] sm:$0xff]
      %v537 = vld [vmem:[%s1 + $0x78] sm:$0xff]
      %v538 = vld [vmem:[%s1 + $0x80] sm:$0xff]
      %v539 = vld [vmem:[%s1 + $0x88] sm:$0xff]
      %v540 = vld [vmem:[%s1 + $0x90] sm:$0xff]
      %v541 = vld [vmem:[%s1 + $0x98] sm:$0xff]
      %v542 = vld [vmem:[%s1 + $0xa0] sm:$0xff]
      %v543 = vld [vmem:[%s1 + $0xa8] sm:$0xff]
      %v544 = vld [vmem:[%s1 + $0xb0] sm:$0xf]
      %vm545 = vcmask 261120
      %v547 = vsel %vm545, %v522, 0
      %v550 = vsel %vm545, %v523, 0
      %v553 = vsel %vm545, %v524, 0
      %v556 = vsel %vm545, %v525, 0
      %v559 = vsel %vm545, %v526, 0
      %v562 = vsel %vm545, %v527, 0
      %v565 = vsel %vm545, %v528, 0
      %v568 = vsel %vm545, %v529, 0
      %v571 = vsel %vm545, %v530, 0
      %v574 = vsel %vm545, %v531, 0
      %v577 = vsel %vm545, %v532, 0
      %v580 = vsel %vm545, %v533, 0
      %v583 = vsel %vm545, %v534, 0
      %v586 = vsel %vm545, %v535, 0
      %v589 = vsel %vm545, %v536, 0
      %v592 = vsel %vm545, %v537, 0
      %v595 = vsel %vm545, %v538, 0
      %v598 = vsel %vm545, %v539, 0
      %v601 = vsel %vm545, %v540, 0
      %v604 = vsel %vm545, %v541, 0
      %v607 = vsel %vm545, %v542, 0
      %v610 = vsel %vm545, %v543, 0
      %v613 = vsel %vm545, %v544, 0
      %615 = vmatpush.msra.mxu0 0.0
      %616 = vmatpush.msra.mxu0 0.0
      %617 = vmatpush.msra.mxu0 0.0
      %618 = vmatpush.msra.mxu0 0.0
      %619 = vmatpush.msra.mxu0 0.0
      %620 = vmatpush.msra.mxu0 0.0
      %621 = vmatpush.msra.mxu0 0.0
      %622 = vmatpush.msra.mxu0 0.0
      %623 = vmatpush.msra.mxu0 0.0
      %624 = vmatpush.msra.mxu0 0.0
      %625 = vmatpush.msra.mxu0 0.0
      %626 = vmatpush.msra.mxu0 0.0
      %627 = vmatpush.msra.mxu0 %v498
      %628 = vmatpush.msra.mxu0 %v497
      %629 = vmatpush.msra.mxu0 %v496
      %630 = vmatpush.msra.mxu0 %v495
      %631 = vmatmul.f32.gmra.mxu0 %v547
      %v632 = vpop.f32.mrf.mxu0
      %v633 = vadd.f32 0.0, %v632
      %634 = vmatmul.f32.gmra.mxu0 %v550
      %v635 = vpop.f32.mrf.mxu0
      %v636 = vadd.f32 0.0, %v635
      %637 = vmatmul.f32.gmra.mxu0 %v553
      %v638 = vpop.f32.mrf.mxu0
      %v639 = vadd.f32 0.0, %v638
      %640 = vmatmul.f32.gmra.mxu0 %v556
      %v641 = vpop.f32.mrf.mxu0
      %v642 = vadd.f32 0.0, %v641
      %643 = vmatmul.f32.gmra.mxu0 %v559
      %v644 = vpop.f32.mrf.mxu0
      %v645 = vadd.f32 0.0, %v644
      %646 = vmatmul.f32.gmra.mxu0 %v562
      %v647 = vpop.f32.mrf.mxu0
      %v648 = vadd.f32 0.0, %v647
      %649 = vmatmul.f32.gmra.mxu0 %v565
      %v650 = vpop.f32.mrf.mxu0
      %v651 = vadd.f32 0.0, %v650
      %652 = vmatmul.f32.gmra.mxu0 %v568
      %v653 = vpop.f32.mrf.mxu0
      %v654 = vadd.f32 0.0, %v653
      %655 = vmatmul.f32.gmra.mxu0 %v571
      %v656 = vpop.f32.mrf.mxu0
      %v657 = vadd.f32 0.0, %v656
      %658 = vmatmul.f32.gmra.mxu0 %v574
      %v659 = vpop.f32.mrf.mxu0
      %v660 = vadd.f32 0.0, %v659
      %661 = vmatmul.f32.gmra.mxu0 %v577
      %v662 = vpop.f32.mrf.mxu0
      %v663 = vadd.f32 0.0, %v662
      %664 = vmatmul.f32.gmra.mxu0 %v580
      %v665 = vpop.f32.mrf.mxu0
      %v666 = vadd.f32 0.0, %v665
      %667 = vmatmul.f32.gmra.mxu0 %v583
      %v668 = vpop.f32.mrf.mxu0
      %v669 = vadd.f32 0.0, %v668
      %670 = vmatmul.f32.gmra.mxu0 %v586
      %v671 = vpop.f32.mrf.mxu0
      %v672 = vadd.f32 0.0, %v671
      %673 = vmatmul.f32.gmra.mxu0 %v589
      %v674 = vpop.f32.mrf.mxu0
      %v675 = vadd.f32 0.0, %v674
      %676 = vmatmul.f32.gmra.mxu0 %v592
      %v677 = vpop.f32.mrf.mxu0
      %v678 = vadd.f32 0.0, %v677
      %679 = vmatmul.f32.gmra.mxu0 %v595
      %v680 = vpop.f32.mrf.mxu0
      %v681 = vadd.f32 0.0, %v680
      %682 = vmatmul.f32.gmra.mxu0 %v598
      %v683 = vpop.f32.mrf.mxu0
      %v684 = vadd.f32 0.0, %v683
      %685 = vmatmul.f32.gmra.mxu0 %v601
      %v686 = vpop.f32.mrf.mxu0
      %v687 = vadd.f32 0.0, %v686
      %688 = vmatmul.f32.gmra.mxu0 %v604
      %v689 = vpop.f32.mrf.mxu0
      %v690 = vadd.f32 0.0, %v689
      %691 = vmatmul.f32.gmra.mxu0 %v607
      %v692 = vpop.f32.mrf.mxu0
      %v693 = vadd.f32 0.0, %v692
      %694 = vmatmul.f32.gmra.mxu0 %v610
      %v695 = vpop.f32.mrf.mxu0
      %v696 = vadd.f32 0.0, %v695
      %697 = vmatmul.f32.gmra.mxu0 %v613
      %v698 = vpop.f32.mrf.mxu0
      %v699 = vadd.f32 0.0, %v698
      %700 = vdwg.mxu0
      %702 = vset.pattern.permute.xlu0 0
      %703 = vperm.xlu0 %702, %v499
      %v704 = vpop.permute.xlu0 %703
      %707 = vset.pattern.permute.xlu0 0
      %708 = vperm.xlu0 %707, %v500
      %v709 = vpop.permute.xlu0 %708
      %712 = vset.pattern.permute.xlu0 0
      %713 = vperm.xlu0 %712, %v501
      %v714 = vpop.permute.xlu0 %713
      %717 = vset.pattern.permute.xlu0 0
      %718 = vperm.xlu0 %717, %v502
      %v719 = vpop.permute.xlu0 %718
      %722 = vset.pattern.permute.xlu0 0
      %723 = vperm.xlu0 %722, %v503
      %v724 = vpop.permute.xlu0 %723
      %727 = vset.pattern.permute.xlu0 0
      %728 = vperm.xlu0 %727, %v504
      %v729 = vpop.permute.xlu0 %728
      %732 = vset.pattern.permute.xlu0 0
      %733 = vperm.xlu0 %732, %v505
      %v734 = vpop.permute.xlu0 %733
      %737 = vset.pattern.permute.xlu0 0
      %738 = vperm.xlu0 %737, %v506
      %v739 = vpop.permute.xlu0 %738
      %742 = vset.pattern.permute.xlu0 0
      %743 = vperm.xlu0 %742, %v507
      %v744 = vpop.permute.xlu0 %743
      %747 = vset.pattern.permute.xlu0 0
      %748 = vperm.xlu0 %747, %v508
      %v749 = vpop.permute.xlu0 %748
      %752 = vset.pattern.permute.xlu0 0
      %753 = vperm.xlu0 %752, %v509
      %v754 = vpop.permute.xlu0 %753
      %757 = vset.pattern.permute.xlu0 0
      %758 = vperm.xlu0 %757, %v510
      %v759 = vpop.permute.xlu0 %758
      %762 = vset.pattern.permute.xlu0 0
      %763 = vperm.xlu0 %762, %v511
      %v764 = vpop.permute.xlu0 %763
      %767 = vset.pattern.permute.xlu0 0
      %768 = vperm.xlu0 %767, %v512
      %v769 = vpop.permute.xlu0 %768
      %772 = vset.pattern.permute.xlu0 0
      %773 = vperm.xlu0 %772, %v513
      %v774 = vpop.permute.xlu0 %773
      %777 = vset.pattern.permute.xlu0 0
      %778 = vperm.xlu0 %777, %v514
      %v779 = vpop.permute.xlu0 %778
      %782 = vset.pattern.permute.xlu0 0
      %783 = vperm.xlu0 %782, %v515
      %v784 = vpop.permute.xlu0 %783
      %787 = vset.pattern.permute.xlu0 0
      %788 = vperm.xlu0 %787, %v516
      %v789 = vpop.permute.xlu0 %788
      %792 = vset.pattern.permute.xlu0 0
      %793 = vperm.xlu0 %792, %v517
      %v794 = vpop.permute.xlu0 %793
      %797 = vset.pattern.permute.xlu0 0
      %798 = vperm.xlu0 %797, %v518
      %v799 = vpop.permute.xlu0 %798
      %802 = vset.pattern.permute.xlu0 0
      %803 = vperm.xlu0 %802, %v519
      %v804 = vpop.permute.xlu0 %803
      %807 = vset.pattern.permute.xlu0 0
      %808 = vperm.xlu0 %807, %v520
      %v809 = vpop.permute.xlu0 %808
      %812 = vset.pattern.permute.xlu0 0
      %813 = vperm.xlu0 %812, %v521
      %v814 = vpop.permute.xlu0 %813
      %v816 = vadd.f32 %v704, %v633
      %v817 = vadd.f32 %v709, %v636
      %v818 = vadd.f32 %v714, %v639
      %v819 = vadd.f32 %v719, %v642
      %v820 = vadd.f32 %v724, %v645
      %v821 = vadd.f32 %v729, %v648
      %v822 = vadd.f32 %v734, %v651
      %v823 = vadd.f32 %v739, %v654
      %v824 = vadd.f32 %v744, %v657
      %v825 = vadd.f32 %v749, %v660
      %v826 = vadd.f32 %v754, %v663
      %v827 = vadd.f32 %v759, %v666
      %v828 = vadd.f32 %v764, %v669
      %v829 = vadd.f32 %v769, %v672
      %v830 = vadd.f32 %v774, %v675
      %v831 = vadd.f32 %v779, %v678
      %v832 = vadd.f32 %v784, %v681
      %v833 = vadd.f32 %v789, %v684
      %v834 = vadd.f32 %v794, %v687
      %v835 = vadd.f32 %v799, %v690
      %v836 = vadd.f32 %v804, %v693
      %v837 = vadd.f32 %v809, %v696
      %v838 = vadd.f32 %v814, %v699
      %s839 = scalar_lea.vmem %s1, 184
      %v840 = vld [vmem:[%s839] sm:$0xff]
      %v841 = vld [vmem:[%s839 + $0x8] sm:$0xff]
      %v842 = vld [vmem:[%s839 + $0x10] sm:$0xff]
      %v843 = vld [vmem:[%s839 + $0x18] sm:$0xff]
      %v844 = vld [vmem:[%s839 + $0x20] sm:$0xff]
      %v845 = vld [vmem:[%s839 + $0x28] sm:$0xff]
      %v846 = vld [vmem:[%s839 + $0x30] sm:$0xff]
      %v847 = vld [vmem:[%s839 + $0x38] sm:$0xff]
      %v848 = vld [vmem:[%s839 + $0x40] sm:$0xff]
      %v849 = vld [vmem:[%s839 + $0x48] sm:$0xff]
      %v850 = vld [vmem:[%s839 + $0x50] sm:$0xff]
      %v851 = vld [vmem:[%s839 + $0x58] sm:$0xff]
      %v852 = vld [vmem:[%s839 + $0x60] sm:$0xff]
      %v853 = vld [vmem:[%s839 + $0x68] sm:$0xff]
      %v854 = vld [vmem:[%s839 + $0x70] sm:$0xff]
      %v855 = vld [vmem:[%s839 + $0x78] sm:$0xff]
      %v856 = vld [vmem:[%s839 + $0x80] sm:$0xff]
      %v857 = vld [vmem:[%s839 + $0x88] sm:$0xff]
      %v858 = vld [vmem:[%s839 + $0x90] sm:$0xff]
      %v859 = vld [vmem:[%s839 + $0x98] sm:$0xff]
      %v860 = vld [vmem:[%s839 + $0xa0] sm:$0xff]
      %v861 = vld [vmem:[%s839 + $0xa8] sm:$0xff]
      %v862 = vld [vmem:[%s839 + $0xb0] sm:$0xf]
      %v864 = vsel %vm545, %v840, 0
      %v867 = vsel %vm545, %v841, 0
      %v870 = vsel %vm545, %v842, 0
      %v873 = vsel %vm545, %v843, 0
      %v876 = vsel %vm545, %v844, 0
      %v879 = vsel %vm545, %v845, 0
      %v882 = vsel %vm545, %v846, 0
      %v885 = vsel %vm545, %v847, 0
      %v888 = vsel %vm545, %v848, 0
      %v891 = vsel %vm545, %v849, 0
      %v894 = vsel %vm545, %v850, 0
      %v897 = vsel %vm545, %v851, 0
      %v900 = vsel %vm545, %v852, 0
      %v903 = vsel %vm545, %v853, 0
      %v906 = vsel %vm545, %v854, 0
      %v909 = vsel %vm545, %v855, 0
      %v912 = vsel %vm545, %v856, 0
      %v915 = vsel %vm545, %v857, 0
      %v918 = vsel %vm545, %v858, 0
      %v921 = vsel %vm545, %v859, 0
      %v924 = vsel %vm545, %v860, 0
      %v927 = vsel %vm545, %v861, 0
      %v930 = vsel %vm545, %v862, 0
      %932 = vmatpush.msra.mxu0 0.0
      %933 = vmatpush.msra.mxu0 0.0
      %934 = vmatpush.msra.mxu0 0.0
      %935 = vmatpush.msra.mxu0 0.0
      %936 = vmatpush.msra.mxu0 0.0
      %937 = vmatpush.msra.mxu0 0.0
      %938 = vmatpush.msra.mxu0 0.0
      %939 = vmatpush.msra.mxu0 0.0
      %940 = vmatpush.msra.mxu0 0.0
      %941 = vmatpush.msra.mxu0 0.0
      %942 = vmatpush.msra.mxu0 0.0
      %943 = vmatpush.msra.mxu0 0.0
      %944 = vmatpush.msra.mxu0 %v498
      %945 = vmatpush.msra.mxu0 %v497
      %946 = vmatpush.msra.mxu0 %v496
      %947 = vmatpush.msra.mxu0 %v495
      %948 = vmatmul.f32.gmra.mxu0 %v864
      %v949 = vpop.f32.mrf.mxu0
      %v950 = vadd.f32 0.0, %v949
      %951 = vmatmul.f32.gmra.mxu0 %v867
      %v952 = vpop.f32.mrf.mxu0
      %v953 = vadd.f32 0.0, %v952
      %954 = vmatmul.f32.gmra.mxu0 %v870
      %v955 = vpop.f32.mrf.mxu0
      %v956 = vadd.f32 0.0, %v955
      %957 = vmatmul.f32.gmra.mxu0 %v873
      %v958 = vpop.f32.mrf.mxu0
      %v959 = vadd.f32 0.0, %v958
      %960 = vmatmul.f32.gmra.mxu0 %v876
      %v961 = vpop.f32.mrf.mxu0
      %v962 = vadd.f32 0.0, %v961
      %963 = vmatmul.f32.gmra.mxu0 %v879
      %v964 = vpop.f32.mrf.mxu0
      %v965 = vadd.f32 0.0, %v964
      %966 = vmatmul.f32.gmra.mxu0 %v882
      %v967 = vpop.f32.mrf.mxu0
      %v968 = vadd.f32 0.0, %v967
      %969 = vmatmul.f32.gmra.mxu0 %v885
      %v970 = vpop.f32.mrf.mxu0
      %v971 = vadd.f32 0.0, %v970
      %972 = vmatmul.f32.gmra.mxu0 %v888
      %v973 = vpop.f32.mrf.mxu0
      %v974 = vadd.f32 0.0, %v973
      %975 = vmatmul.f32.gmra.mxu0 %v891
      %v976 = vpop.f32.mrf.mxu0
      %v977 = vadd.f32 0.0, %v976
      %978 = vmatmul.f32.gmra.mxu0 %v894
      %v979 = vpop.f32.mrf.mxu0
      %v980 = vadd.f32 0.0, %v979
      %981 = vmatmul.f32.gmra.mxu0 %v897
      %v982 = vpop.f32.mrf.mxu0
      %v983 = vadd.f32 0.0, %v982
      %984 = vmatmul.f32.gmra.mxu0 %v900
      %v985 = vpop.f32.mrf.mxu0
      %v986 = vadd.f32 0.0, %v985
      %987 = vmatmul.f32.gmra.mxu0 %v903
      %v988 = vpop.f32.mrf.mxu0
      %v989 = vadd.f32 0.0, %v988
      %990 = vmatmul.f32.gmra.mxu0 %v906
      %v991 = vpop.f32.mrf.mxu0
      %v992 = vadd.f32 0.0, %v991
      %993 = vmatmul.f32.gmra.mxu0 %v909
      %v994 = vpop.f32.mrf.mxu0
      %v995 = vadd.f32 0.0, %v994
      %996 = vmatmul.f32.gmra.mxu0 %v912
      %v997 = vpop.f32.mrf.mxu0
      %v998 = vadd.f32 0.0, %v997
      %999 = vmatmul.f32.gmra.mxu0 %v915
      %v1000 = vpop.f32.mrf.mxu0
      %v1001 = vadd.f32 0.0, %v1000
      %1002 = vmatmul.f32.gmra.mxu0 %v918
      %v1003 = vpop.f32.mrf.mxu0
      %v1004 = vadd.f32 0.0, %v1003
      %1005 = vmatmul.f32.gmra.mxu0 %v921
      %v1006 = vpop.f32.mrf.mxu0
      %v1007 = vadd.f32 0.0, %v1006
      %1008 = vmatmul.f32.gmra.mxu0 %v924
      %v1009 = vpop.f32.mrf.mxu0
      %v1010 = vadd.f32 0.0, %v1009
      %1011 = vmatmul.f32.gmra.mxu0 %v927
      %v1012 = vpop.f32.mrf.mxu0
      %v1013 = vadd.f32 0.0, %v1012
      %1014 = vmatmul.f32.gmra.mxu0 %v930
      %v1015 = vpop.f32.mrf.mxu0
      %v1016 = vadd.f32 0.0, %v1015
      %1017 = vdwg.mxu0
      %1041 = vrot.lane.b32.xlu0 %v950, 127
      %v1042 = vpop.permute.xlu0 %1041
      %1043 = vrot.lane.b32.xlu0 %v953, 127
      %v1044 = vpop.permute.xlu0 %1043
      %1045 = vrot.lane.b32.xlu0 %v956, 127
      %v1046 = vpop.permute.xlu0 %1045
      %1047 = vrot.lane.b32.xlu0 %v959, 127
      %v1048 = vpop.permute.xlu0 %1047
      %1049 = vrot.lane.b32.xlu0 %v962, 127
      %v1050 = vpop.permute.xlu0 %1049
      %1051 = vrot.lane.b32.xlu0 %v965, 127
      %v1052 = vpop.permute.xlu0 %1051
      %1053 = vrot.lane.b32.xlu0 %v968, 127
      %v1054 = vpop.permute.xlu0 %1053
      %1055 = vrot.lane.b32.xlu0 %v971, 127
      %v1056 = vpop.permute.xlu0 %1055
      %1057 = vrot.lane.b32.xlu0 %v974, 127
      %v1058 = vpop.permute.xlu0 %1057
      %1059 = vrot.lane.b32.xlu0 %v977, 127
      %v1060 = vpop.permute.xlu0 %1059
      %1061 = vrot.lane.b32.xlu0 %v980, 127
      %v1062 = vpop.permute.xlu0 %1061
      %1063 = vrot.lane.b32.xlu0 %v983, 127
      %v1064 = vpop.permute.xlu0 %1063
      %1065 = vrot.lane.b32.xlu0 %v986, 127
      %v1066 = vpop.permute.xlu0 %1065
      %1067 = vrot.lane.b32.xlu0 %v989, 127
      %v1068 = vpop.permute.xlu0 %1067
      %1069 = vrot.lane.b32.xlu0 %v992, 127
      %v1070 = vpop.permute.xlu0 %1069
      %1071 = vrot.lane.b32.xlu0 %v995, 127
      %v1072 = vpop.permute.xlu0 %1071
      %1073 = vrot.lane.b32.xlu0 %v998, 127
      %v1074 = vpop.permute.xlu0 %1073
      %1075 = vrot.lane.b32.xlu0 %v1001, 127
      %v1076 = vpop.permute.xlu0 %1075
      %1077 = vrot.lane.b32.xlu0 %v1004, 127
      %v1078 = vpop.permute.xlu0 %1077
      %1079 = vrot.lane.b32.xlu0 %v1007, 127
      %v1080 = vpop.permute.xlu0 %1079
      %1081 = vrot.lane.b32.xlu0 %v1010, 127
      %v1082 = vpop.permute.xlu0 %1081
      %1083 = vrot.lane.b32.xlu0 %v1013, 127
      %v1084 = vpop.permute.xlu0 %1083
      %1085 = vrot.lane.b32.xlu0 %v1016, 127
      %v1086 = vpop.permute.xlu0 %1085
      %v1110 = vadd.f32 %v816, %v1042
      %v1111 = vadd.f32 %v817, %v1044
      %v1112 = vadd.f32 %v818, %v1046
      %v1113 = vadd.f32 %v819, %v1048
      %v1114 = vadd.f32 %v820, %v1050
      %v1115 = vadd.f32 %v821, %v1052
      %v1116 = vadd.f32 %v822, %v1054
      %v1117 = vadd.f32 %v823, %v1056
      %v1118 = vadd.f32 %v824, %v1058
      %v1119 = vadd.f32 %v825, %v1060
      %v1120 = vadd.f32 %v826, %v1062
      %v1121 = vadd.f32 %v827, %v1064
      %v1122 = vadd.f32 %v828, %v1066
      %v1123 = vadd.f32 %v829, %v1068
      %v1124 = vadd.f32 %v830, %v1070
      %v1125 = vadd.f32 %v831, %v1072
      %v1126 = vadd.f32 %v832, %v1074
      %v1127 = vadd.f32 %v833, %v1076
      %v1128 = vadd.f32 %v834, %v1078
      %v1129 = vadd.f32 %v835, %v1080
      %v1130 = vadd.f32 %v836, %v1082
      %v1131 = vadd.f32 %v837, %v1084
      %v1132 = vadd.f32 %v838, %v1086
      %s1133 = scalar_lea.vmem %s1, 368
      %v1134 = vld [vmem:[%s1133] sm:$0xff]
      %v1135 = vld [vmem:[%s1133 + $0x8] sm:$0xff]
      %v1136 = vld [vmem:[%s1133 + $0x10] sm:$0xff]
      %v1137 = vld [vmem:[%s1133 + $0x18] sm:$0xff]
      %v1138 = vld [vmem:[%s1133 + $0x20] sm:$0xff]
      %v1139 = vld [vmem:[%s1133 + $0x28] sm:$0xff]
      %v1140 = vld [vmem:[%s1133 + $0x30] sm:$0xff]
      %v1141 = vld [vmem:[%s1133 + $0x38] sm:$0xff]
      %v1142 = vld [vmem:[%s1133 + $0x40] sm:$0xff]
      %v1143 = vld [vmem:[%s1133 + $0x48] sm:$0xff]
      %v1144 = vld [vmem:[%s1133 + $0x50] sm:$0xff]
      %v1145 = vld [vmem:[%s1133 + $0x58] sm:$0xff]
      %v1146 = vld [vmem:[%s1133 + $0x60] sm:$0xff]
      %v1147 = vld [vmem:[%s1133 + $0x68] sm:$0xff]
      %v1148 = vld [vmem:[%s1133 + $0x70] sm:$0xff]
      %v1149 = vld [vmem:[%s1133 + $0x78] sm:$0xff]
      %v1150 = vld [vmem:[%s1133 + $0x80] sm:$0xff]
      %v1151 = vld [vmem:[%s1133 + $0x88] sm:$0xff]
      %v1152 = vld [vmem:[%s1133 + $0x90] sm:$0xff]
      %v1153 = vld [vmem:[%s1133 + $0x98] sm:$0xff]
      %v1154 = vld [vmem:[%s1133 + $0xa0] sm:$0xff]
      %v1155 = vld [vmem:[%s1133 + $0xa8] sm:$0xff]
      %v1156 = vld [vmem:[%s1133 + $0xb0] sm:$0xf]
      %v1158 = vsel %vm545, %v1134, 0
      %v1161 = vsel %vm545, %v1135, 0
      %v1164 = vsel %vm545, %v1136, 0
      %v1167 = vsel %vm545, %v1137, 0
      %v1170 = vsel %vm545, %v1138, 0
      %v1173 = vsel %vm545, %v1139, 0
      %v1176 = vsel %vm545, %v1140, 0
      %v1179 = vsel %vm545, %v1141, 0
      %v1182 = vsel %vm545, %v1142, 0
      %v1185 = vsel %vm545, %v1143, 0
      %v1188 = vsel %vm545, %v1144, 0
      %v1191 = vsel %vm545, %v1145, 0
      %v1194 = vsel %vm545, %v1146, 0
      %v1197 = vsel %vm545, %v1147, 0
      %v1200 = vsel %vm545, %v1148, 0
      %v1203 = vsel %vm545, %v1149, 0
      %v1206 = vsel %vm545, %v1150, 0
      %v1209 = vsel %vm545, %v1151, 0
      %v1212 = vsel %vm545, %v1152, 0
      %v1215 = vsel %vm545, %v1153, 0
      %v1218 = vsel %vm545, %v1154, 0
      %v1221 = vsel %vm545, %v1155, 0
      %v1224 = vsel %vm545, %v1156, 0
      %1226 = vmatpush.msra.mxu0 0.0
      %1227 = vmatpush.msra.mxu0 0.0
      %1228 = vmatpush.msra.mxu0 0.0
      %1229 = vmatpush.msra.mxu0 0.0
      %1230 = vmatpush.msra.mxu0 0.0
      %1231 = vmatpush.msra.mxu0 0.0
      %1232 = vmatpush.msra.mxu0 0.0
      %1233 = vmatpush.msra.mxu0 0.0
      %1234 = vmatpush.msra.mxu0 0.0
      %1235 = vmatpush.msra.mxu0 0.0
      %1236 = vmatpush.msra.mxu0 0.0
      %1237 = vmatpush.msra.mxu0 0.0
      %1238 = vmatpush.msra.mxu0 %v498
      %1239 = vmatpush.msra.mxu0 %v497
      %1240 = vmatpush.msra.mxu0 %v496
      %1241 = vmatpush.msra.mxu0 %v495
      %1242 = vmatmul.f32.gmra.mxu0 %v1158
      %v1243 = vpop.f32.mrf.mxu0
      %v1244 = vadd.f32 0.0, %v1243
      %1245 = vmatmul.f32.gmra.mxu0 %v1161
      %v1246 = vpop.f32.mrf.mxu0
      %v1247 = vadd.f32 0.0, %v1246
      %1248 = vmatmul.f32.gmra.mxu0 %v1164
      %v1249 = vpop.f32.mrf.mxu0
      %v1250 = vadd.f32 0.0, %v1249
      %1251 = vmatmul.f32.gmra.mxu0 %v1167
      %v1252 = vpop.f32.mrf.mxu0
      %v1253 = vadd.f32 0.0, %v1252
      %1254 = vmatmul.f32.gmra.mxu0 %v1170
      %v1255 = vpop.f32.mrf.mxu0
      %v1256 = vadd.f32 0.0, %v1255
      %1257 = vmatmul.f32.gmra.mxu0 %v1173
      %v1258 = vpop.f32.mrf.mxu0
      %v1259 = vadd.f32 0.0, %v1258
      %1260 = vmatmul.f32.gmra.mxu0 %v1176
      %v1261 = vpop.f32.mrf.mxu0
      %v1262 = vadd.f32 0.0, %v1261
      %1263 = vmatmul.f32.gmra.mxu0 %v1179
      %v1264 = vpop.f32.mrf.mxu0
      %v1265 = vadd.f32 0.0, %v1264
      %1266 = vmatmul.f32.gmra.mxu0 %v1182
      %v1267 = vpop.f32.mrf.mxu0
      %v1268 = vadd.f32 0.0, %v1267
      %1269 = vmatmul.f32.gmra.mxu0 %v1185
      %v1270 = vpop.f32.mrf.mxu0
      %v1271 = vadd.f32 0.0, %v1270
      %1272 = vmatmul.f32.gmra.mxu0 %v1188
      %v1273 = vpop.f32.mrf.mxu0
      %v1274 = vadd.f32 0.0, %v1273
      %1275 = vmatmul.f32.gmra.mxu0 %v1191
      %v1276 = vpop.f32.mrf.mxu0
      %v1277 = vadd.f32 0.0, %v1276
      %1278 = vmatmul.f32.gmra.mxu0 %v1194
      %v1279 = vpop.f32.mrf.mxu0
      %v1280 = vadd.f32 0.0, %v1279
      %1281 = vmatmul.f32.gmra.mxu0 %v1197
      %v1282 = vpop.f32.mrf.mxu0
      %v1283 = vadd.f32 0.0, %v1282
      %1284 = vmatmul.f32.gmra.mxu0 %v1200
      %v1285 = vpop.f32.mrf.mxu0
      %v1286 = vadd.f32 0.0, %v1285
      %1287 = vmatmul.f32.gmra.mxu0 %v1203
      %v1288 = vpop.f32.mrf.mxu0
      %v1289 = vadd.f32 0.0, %v1288
      %1290 = vmatmul.f32.gmra.mxu0 %v1206
      %v1291 = vpop.f32.mrf.mxu0
      %v1292 = vadd.f32 0.0, %v1291
      %1293 = vmatmul.f32.gmra.mxu0 %v1209
      %v1294 = vpop.f32.mrf.mxu0
      %v1295 = vadd.f32 0.0, %v1294
      %1296 = vmatmul.f32.gmra.mxu0 %v1212
      %v1297 = vpop.f32.mrf.mxu0
      %v1298 = vadd.f32 0.0, %v1297
      %1299 = vmatmul.f32.gmra.mxu0 %v1215
      %v1300 = vpop.f32.mrf.mxu0
      %v1301 = vadd.f32 0.0, %v1300
      %1302 = vmatmul.f32.gmra.mxu0 %v1218
      %v1303 = vpop.f32.mrf.mxu0
      %v1304 = vadd.f32 0.0, %v1303
      %1305 = vmatmul.f32.gmra.mxu0 %v1221
      %v1306 = vpop.f32.mrf.mxu0
      %v1307 = vadd.f32 0.0, %v1306
      %1308 = vmatmul.f32.gmra.mxu0 %v1224
      %v1309 = vpop.f32.mrf.mxu0
      %v1310 = vadd.f32 0.0, %v1309
      %1311 = vdwg.mxu0
      %1335 = vrot.lane.b32.xlu0 %v1244, 126
      %v1336 = vpop.permute.xlu0 %1335
      %1337 = vrot.lane.b32.xlu0 %v1247, 126
      %v1338 = vpop.permute.xlu0 %1337
      %1339 = vrot.lane.b32.xlu0 %v1250, 126
      %v1340 = vpop.permute.xlu0 %1339
      %1341 = vrot.lane.b32.xlu0 %v1253, 126
      %v1342 = vpop.permute.xlu0 %1341
      %1343 = vrot.lane.b32.xlu0 %v1256, 126
      %v1344 = vpop.permute.xlu0 %1343
      %1345 = vrot.lane.b32.xlu0 %v1259, 126
      %v1346 = vpop.permute.xlu0 %1345
      %1347 = vrot.lane.b32.xlu0 %v1262, 126
      %v1348 = vpop.permute.xlu0 %1347
      %1349 = vrot.lane.b32.xlu0 %v1265, 126
      %v1350 = vpop.permute.xlu0 %1349
      %1351 = vrot.lane.b32.xlu0 %v1268, 126
      %v1352 = vpop.permute.xlu0 %1351
      %1353 = vrot.lane.b32.xlu0 %v1271, 126
      %v1354 = vpop.permute.xlu0 %1353
      %1355 = vrot.lane.b32.xlu0 %v1274, 126
      %v1356 = vpop.permute.xlu0 %1355
      %1357 = vrot.lane.b32.xlu0 %v1277, 126
      %v1358 = vpop.permute.xlu0 %1357
      %1359 = vrot.lane.b32.xlu0 %v1280, 126
      %v1360 = vpop.permute.xlu0 %1359
      %1361 = vrot.lane.b32.xlu0 %v1283, 126
      %v1362 = vpop.permute.xlu0 %1361
      %1363 = vrot.lane.b32.xlu0 %v1286, 126
      %v1364 = vpop.permute.xlu0 %1363
      %1365 = vrot.lane.b32.xlu0 %v1289, 126
      %v1366 = vpop.permute.xlu0 %1365
      %1367 = vrot.lane.b32.xlu0 %v1292, 126
      %v1368 = vpop.permute.xlu0 %1367
      %1369 = vrot.lane.b32.xlu0 %v1295, 126
      %v1370 = vpop.permute.xlu0 %1369
      %1371 = vrot.lane.b32.xlu0 %v1298, 126
      %v1372 = vpop.permute.xlu0 %1371
      %1373 = vrot.lane.b32.xlu0 %v1301, 126
      %v1374 = vpop.permute.xlu0 %1373
      %1375 = vrot.lane.b32.xlu0 %v1304, 126
      %v1376 = vpop.permute.xlu0 %1375
      %1377 = vrot.lane.b32.xlu0 %v1307, 126
      %v1378 = vpop.permute.xlu0 %1377
      %1379 = vrot.lane.b32.xlu0 %v1310, 126
      %v1380 = vpop.permute.xlu0 %1379
      %v1404 = vadd.f32 %v1110, %v1336
      %v1405 = vadd.f32 %v1111, %v1338
      %v1406 = vadd.f32 %v1112, %v1340
      %v1407 = vadd.f32 %v1113, %v1342
      %v1408 = vadd.f32 %v1114, %v1344
      %v1409 = vadd.f32 %v1115, %v1346
      %v1410 = vadd.f32 %v1116, %v1348
      %v1411 = vadd.f32 %v1117, %v1350
      %v1412 = vadd.f32 %v1118, %v1352
      %v1413 = vadd.f32 %v1119, %v1354
      %v1414 = vadd.f32 %v1120, %v1356
      %v1415 = vadd.f32 %v1121, %v1358
      %v1416 = vadd.f32 %v1122, %v1360
      %v1417 = vadd.f32 %v1123, %v1362
      %v1418 = vadd.f32 %v1124, %v1364
      %v1419 = vadd.f32 %v1125, %v1366
      %v1420 = vadd.f32 %v1126, %v1368
      %v1421 = vadd.f32 %v1127, %v1370
      %v1422 = vadd.f32 %v1128, %v1372
      %v1423 = vadd.f32 %v1129, %v1374
      %v1424 = vadd.f32 %v1130, %v1376
      %v1425 = vadd.f32 %v1131, %v1378
      %v1426 = vadd.f32 %v1132, %v1380
      %v1427 = vmax.f32 %v1404, 0.0
      %v1428 = vmax.f32 %v1405, 0.0
      %v1429 = vmax.f32 %v1406, 0.0
      %v1430 = vmax.f32 %v1407, 0.0
      %v1431 = vmax.f32 %v1408, 0.0
      %v1432 = vmax.f32 %v1409, 0.0
      %v1433 = vmax.f32 %v1410, 0.0
      %v1434 = vmax.f32 %v1411, 0.0
      %v1435 = vmax.f32 %v1412, 0.0
      %v1436 = vmax.f32 %v1413, 0.0
      %v1437 = vmax.f32 %v1414, 0.0
      %v1438 = vmax.f32 %v1415, 0.0
      %v1439 = vmax.f32 %v1416, 0.0
      %v1440 = vmax.f32 %v1417, 0.0
      %v1441 = vmax.f32 %v1418, 0.0
      %v1442 = vmax.f32 %v1419, 0.0
      %v1443 = vmax.f32 %v1420, 0.0
      %v1444 = vmax.f32 %v1421, 0.0
      %v1445 = vmax.f32 %v1422, 0.0
      %v1446 = vmax.f32 %v1423, 0.0
      %v1447 = vmax.f32 %v1424, 0.0
      %v1448 = vmax.f32 %v1425, 0.0
      %v1449 = vmax.f32 %v1426, 0.0
      %v1450 = vld [vmem:[%s3] sm:$0xff]
      %v1451 = vld [vmem:[%s3 + $0x8] sm:$0xff]
      %v1452 = vld [vmem:[%s3 + $0x10] sm:$0xff]
      %v1453 = vld [vmem:[%s3 + $0x18] sm:$0xff]
      %v1454 = vld [vmem:[%s3 + $0x20] sm:$0xff]
      %v1455 = vld [vmem:[%s3 + $0x28] sm:$0xff]
      %v1456 = vld [vmem:[%s3 + $0x30] sm:$0xff]
      %v1457 = vld [vmem:[%s3 + $0x38] sm:$0xff]
      %v1458 = vld [vmem:[%s3 + $0x40] sm:$0xff]
      %v1459 = vld [vmem:[%s3 + $0x48] sm:$0xff]
      %v1460 = vld [vmem:[%s3 + $0x50] sm:$0xff]
      %v1461 = vld [vmem:[%s3 + $0x58] sm:$0xff]
      %v1462 = vld [vmem:[%s3 + $0x60] sm:$0xff]
      %v1463 = vld [vmem:[%s3 + $0x68] sm:$0xff]
      %v1464 = vld [vmem:[%s3 + $0x70] sm:$0xff]
      %v1465 = vld [vmem:[%s3 + $0x78] sm:$0xff]
      %v1466 = vld [vmem:[%s3 + $0x80] sm:$0xff]
      %v1467 = vld [vmem:[%s3 + $0x88] sm:$0xff]
      %v1468 = vld [vmem:[%s3 + $0x90] sm:$0xff]
      %v1469 = vld [vmem:[%s3 + $0x98] sm:$0xff]
      %v1470 = vld [vmem:[%s3 + $0xa0] sm:$0xff]
      %v1471 = vld [vmem:[%s3 + $0xa8] sm:$0xff]
      %v1472 = vld [vmem:[%s3 + $0xb0] sm:$0x3]
      %v1473 = vld [vmem:[%s3 + $0xb8] sm:$0x3]
      %vm1474 = vcmask 424960
      %v1476 = vsel %vm1474, %v1451, 0
      %v1479 = vsel %vm1474, %v1453, 0
      %v1482 = vsel %vm1474, %v1455, 0
      %v1485 = vsel %vm1474, %v1457, 0
      %v1488 = vsel %vm1474, %v1459, 0
      %v1491 = vsel %vm1474, %v1461, 0
      %v1494 = vsel %vm1474, %v1463, 0
      %v1497 = vsel %vm1474, %v1465, 0
      %v1500 = vsel %vm1474, %v1467, 0
      %v1503 = vsel %vm1474, %v1469, 0
      %v1506 = vsel %vm1474, %v1471, 0
      %v1509 = vsel %vm1474, %v1473, 0
      %vm1511 = vcmask 1043456
      %v1513 = vsel %vm1511, %v1449, 0
      %1515 = vmatpush.msra.mxu0 %v1442
      %1516 = vmatpush.msra.mxu0 %v1441
      %1517 = vmatpush.msra.mxu0 %v1440
      %1518 = vmatpush.msra.mxu0 %v1439
      %1519 = vmatpush.msra.mxu0 %v1438
      %1520 = vmatpush.msra.mxu0 %v1437
      %1521 = vmatpush.msra.mxu0 %v1436
      %1522 = vmatpush.msra.mxu0 %v1435
      %1523 = vmatpush.msra.mxu0 %v1434
      %1524 = vmatpush.msra.mxu0 %v1433
      %1525 = vmatpush.msra.mxu0 %v1432
      %1526 = vmatpush.msra.mxu0 %v1431
      %1527 = vmatpush.msra.mxu0 %v1430
      %1528 = vmatpush.msra.mxu0 %v1429
      %1529 = vmatpush.msra.mxu0 %v1428
      %1530 = vmatpush.msra.mxu0 %v1427
      %1531 = vmatmul.f32.gmra.mxu0 %v1450
      %v1532 = vpop.f32.mrf.mxu0
      %v1533 = vadd.f32 0.0, %v1532
      %1534 = vmatmul.f32.gmra.mxu0 %v1452
      %v1535 = vpop.f32.mrf.mxu0
      %v1536 = vadd.f32 0.0, %v1535
      %1537 = vmatmul.f32.gmra.mxu0 %v1454
      %v1538 = vpop.f32.mrf.mxu0
      %v1539 = vadd.f32 0.0, %v1538
      %1540 = vmatmul.f32.gmra.mxu0 %v1456
      %v1541 = vpop.f32.mrf.mxu0
      %v1542 = vadd.f32 0.0, %v1541
      %1543 = vmatmul.f32.gmra.mxu0 %v1458
      %v1544 = vpop.f32.mrf.mxu0
      %v1545 = vadd.f32 0.0, %v1544
      %1546 = vmatmul.f32.gmra.mxu0 %v1460
      %v1547 = vpop.f32.mrf.mxu0
      %v1548 = vadd.f32 0.0, %v1547
      %1549 = vmatmul.f32.gmra.mxu0 %v1462
      %v1550 = vpop.f32.mrf.mxu0
      %v1551 = vadd.f32 0.0, %v1550
      %1552 = vmatmul.f32.gmra.mxu0 %v1464
      %v1553 = vpop.f32.mrf.mxu0
      %v1554 = vadd.f32 0.0, %v1553
      %1555 = vmatmul.f32.gmra.mxu0 %v1466
      %v1556 = vpop.f32.mrf.mxu0
      %v1557 = vadd.f32 0.0, %v1556
      %1558 = vmatmul.f32.gmra.mxu0 %v1468
      %v1559 = vpop.f32.mrf.mxu0
      %v1560 = vadd.f32 0.0, %v1559
      %1561 = vmatmul.f32.gmra.mxu0 %v1470
      %v1562 = vpop.f32.mrf.mxu0
      %v1563 = vadd.f32 0.0, %v1562
      %1564 = vmatmul.f32.gmra.mxu0 %v1472
      %v1565 = vpop.f32.mrf.mxu0
      %v1566 = vadd.f32 0.0, %v1565
      %1567 = vdwg.mxu0
      %1568 = vmatpush.msra.mxu0 0.0
      %1569 = vmatpush.msra.mxu0 0.0
      %1570 = vmatpush.msra.mxu0 0.0
      %1571 = vmatpush.msra.mxu0 0.0
      %1572 = vmatpush.msra.mxu0 0.0
      %1573 = vmatpush.msra.mxu0 0.0
      %1574 = vmatpush.msra.mxu0 0.0
      %1575 = vmatpush.msra.mxu0 0.0
      %1576 = vmatpush.msra.mxu0 0.0
      %1577 = vmatpush.msra.mxu0 %v1513
      %1578 = vmatpush.msra.mxu0 %v1448
      %1579 = vmatpush.msra.mxu0 %v1447
      %1580 = vmatpush.msra.mxu0 %v1446
      %1581 = vmatpush.msra.mxu0 %v1445
      %1582 = vmatpush.msra.mxu0 %v1444
      %1583 = vmatpush.msra.mxu0 %v1443
      %1584 = vmatmul.f32.gmra.mxu0 %v1476
      %v1585 = vpop.f32.mrf.mxu0
      %v1586 = vadd.f32 %v1533, %v1585
      %1587 = vmatmul.f32.gmra.mxu0 %v1479
      %v1588 = vpop.f32.mrf.mxu0
      %v1589 = vadd.f32 %v1536, %v1588
      %1590 = vmatmul.f32.gmra.mxu0 %v1482
      %v1591 = vpop.f32.mrf.mxu0
      %v1592 = vadd.f32 %v1539, %v1591
      %1593 = vmatmul.f32.gmra.mxu0 %v1485
      %v1594 = vpop.f32.mrf.mxu0
      %v1595 = vadd.f32 %v1542, %v1594
      %1596 = vmatmul.f32.gmra.mxu0 %v1488
      %v1597 = vpop.f32.mrf.mxu0
      %v1598 = vadd.f32 %v1545, %v1597
      %1599 = vmatmul.f32.gmra.mxu0 %v1491
      %v1600 = vpop.f32.mrf.mxu0
      %v1601 = vadd.f32 %v1548, %v1600
      %1602 = vmatmul.f32.gmra.mxu0 %v1494
      %v1603 = vpop.f32.mrf.mxu0
      %v1604 = vadd.f32 %v1551, %v1603
      %1605 = vmatmul.f32.gmra.mxu0 %v1497
      %v1606 = vpop.f32.mrf.mxu0
      %v1607 = vadd.f32 %v1554, %v1606
      %1608 = vmatmul.f32.gmra.mxu0 %v1500
      %v1609 = vpop.f32.mrf.mxu0
      %v1610 = vadd.f32 %v1557, %v1609
      %1611 = vmatmul.f32.gmra.mxu0 %v1503
      %v1612 = vpop.f32.mrf.mxu0
      %v1613 = vadd.f32 %v1560, %v1612
      %1614 = vmatmul.f32.gmra.mxu0 %v1506
      %v1615 = vpop.f32.mrf.mxu0
      %v1616 = vadd.f32 %v1563, %v1615
      %1617 = vmatmul.f32.gmra.mxu0 %v1509
      %v1618 = vpop.f32.mrf.mxu0
      %v1619 = vadd.f32 %v1566, %v1618
      %1620 = vdwg.mxu0
      %s1621 = scalar_lea.vmem %s3, 192
      %v1622 = vld [vmem:[%s1621] sm:$0xff]
      %v1623 = vld [vmem:[%s1621 + $0x8] sm:$0xff]
      %v1624 = vld [vmem:[%s1621 + $0x10] sm:$0xff]
      %v1625 = vld [vmem:[%s1621 + $0x18] sm:$0xff]
      %v1626 = vld [vmem:[%s1621 + $0x20] sm:$0xff]
      %v1627 = vld [vmem:[%s1621 + $0x28] sm:$0xff]
      %v1628 = vld [vmem:[%s1621 + $0x30] sm:$0xff]
      %v1629 = vld [vmem:[%s1621 + $0x38] sm:$0xff]
      %v1630 = vld [vmem:[%s1621 + $0x40] sm:$0xff]
      %v1631 = vld [vmem:[%s1621 + $0x48] sm:$0xff]
      %v1632 = vld [vmem:[%s1621 + $0x50] sm:$0xff]
      %v1633 = vld [vmem:[%s1621 + $0x58] sm:$0xff]
      %v1634 = vld [vmem:[%s1621 + $0x60] sm:$0xff]
      %v1635 = vld [vmem:[%s1621 + $0x68] sm:$0xff]
      %v1636 = vld [vmem:[%s1621 + $0x70] sm:$0xff]
      %v1637 = vld [vmem:[%s1621 + $0x78] sm:$0xff]
      %v1638 = vld [vmem:[%s1621 + $0x80] sm:$0xff]
      %v1639 = vld [vmem:[%s1621 + $0x88] sm:$0xff]
      %v1640 = vld [vmem:[%s1621 + $0x90] sm:$0xff]
      %v1641 = vld [vmem:[%s1621 + $0x98] sm:$0xff]
      %v1642 = vld [vmem:[%s1621 + $0xa0] sm:$0xff]
      %v1643 = vld [vmem:[%s1621 + $0xa8] sm:$0xff]
      %v1644 = vld [vmem:[%s1621 + $0xb0] sm:$0x3]
      %v1645 = vld [vmem:[%s1621 + $0xb8] sm:$0x3]
      %v1647 = vsel %vm1474, %v1623, 0
      %v1650 = vsel %vm1474, %v1625, 0
      %v1653 = vsel %vm1474, %v1627, 0
      %v1656 = vsel %vm1474, %v1629, 0
      %v1659 = vsel %vm1474, %v1631, 0
      %v1662 = vsel %vm1474, %v1633, 0
      %v1665 = vsel %vm1474, %v1635, 0
      %v1668 = vsel %vm1474, %v1637, 0
      %v1671 = vsel %vm1474, %v1639, 0
      %v1674 = vsel %vm1474, %v1641, 0
      %v1677 = vsel %vm1474, %v1643, 0
      %v1680 = vsel %vm1474, %v1645, 0
      %1682 = vmatpush.msra.mxu0 %v1442
      %1683 = vmatpush.msra.mxu0 %v1441
      %1684 = vmatpush.msra.mxu0 %v1440
      %1685 = vmatpush.msra.mxu0 %v1439
      %1686 = vmatpush.msra.mxu0 %v1438
      %1687 = vmatpush.msra.mxu0 %v1437
      %1688 = vmatpush.msra.mxu0 %v1436
      %1689 = vmatpush.msra.mxu0 %v1435
      %1690 = vmatpush.msra.mxu0 %v1434
      %1691 = vmatpush.msra.mxu0 %v1433
      %1692 = vmatpush.msra.mxu0 %v1432
      %1693 = vmatpush.msra.mxu0 %v1431
      %1694 = vmatpush.msra.mxu0 %v1430
      %1695 = vmatpush.msra.mxu0 %v1429
      %1696 = vmatpush.msra.mxu0 %v1428
      %1697 = vmatpush.msra.mxu0 %v1427
      %1698 = vmatmul.f32.gmra.mxu0 %v1622
      %v1699 = vpop.f32.mrf.mxu0
      %v1700 = vadd.f32 0.0, %v1699
      %1701 = vmatmul.f32.gmra.mxu0 %v1624
      %v1702 = vpop.f32.mrf.mxu0
      %v1703 = vadd.f32 0.0, %v1702
      %1704 = vmatmul.f32.gmra.mxu0 %v1626
      %v1705 = vpop.f32.mrf.mxu0
      %v1706 = vadd.f32 0.0, %v1705
      %1707 = vmatmul.f32.gmra.mxu0 %v1628
      %v1708 = vpop.f32.mrf.mxu0
      %v1709 = vadd.f32 0.0, %v1708
      %1710 = vmatmul.f32.gmra.mxu0 %v1630
      %v1711 = vpop.f32.mrf.mxu0
      %v1712 = vadd.f32 0.0, %v1711
      %1713 = vmatmul.f32.gmra.mxu0 %v1632
      %v1714 = vpop.f32.mrf.mxu0
      %v1715 = vadd.f32 0.0, %v1714
      %1716 = vmatmul.f32.gmra.mxu0 %v1634
      %v1717 = vpop.f32.mrf.mxu0
      %v1718 = vadd.f32 0.0, %v1717
      %1719 = vmatmul.f32.gmra.mxu0 %v1636
      %v1720 = vpop.f32.mrf.mxu0
      %v1721 = vadd.f32 0.0, %v1720
      %1722 = vmatmul.f32.gmra.mxu0 %v1638
      %v1723 = vpop.f32.mrf.mxu0
      %v1724 = vadd.f32 0.0, %v1723
      %1725 = vmatmul.f32.gmra.mxu0 %v1640
      %v1726 = vpop.f32.mrf.mxu0
      %v1727 = vadd.f32 0.0, %v1726
      %1728 = vmatmul.f32.gmra.mxu0 %v1642
      %v1729 = vpop.f32.mrf.mxu0
      %v1730 = vadd.f32 0.0, %v1729
      %1731 = vmatmul.f32.gmra.mxu0 %v1644
      %v1732 = vpop.f32.mrf.mxu0
      %v1733 = vadd.f32 0.0, %v1732
      %1734 = vdwg.mxu0
      %1735 = vmatpush.msra.mxu0 0.0
      %1736 = vmatpush.msra.mxu0 0.0
      %1737 = vmatpush.msra.mxu0 0.0
      %1738 = vmatpush.msra.mxu0 0.0
      %1739 = vmatpush.msra.mxu0 0.0
      %1740 = vmatpush.msra.mxu0 0.0
      %1741 = vmatpush.msra.mxu0 0.0
      %1742 = vmatpush.msra.mxu0 0.0
      %1743 = vmatpush.msra.mxu0 0.0
      %1744 = vmatpush.msra.mxu0 %v1513
      %1745 = vmatpush.msra.mxu0 %v1448
      %1746 = vmatpush.msra.mxu0 %v1447
      %1747 = vmatpush.msra.mxu0 %v1446
      %1748 = vmatpush.msra.mxu0 %v1445
      %1749 = vmatpush.msra.mxu0 %v1444
      %1750 = vmatpush.msra.mxu0 %v1443
      %1751 = vmatmul.f32.gmra.mxu0 %v1647
      %v1752 = vpop.f32.mrf.mxu0
      %v1753 = vadd.f32 %v1700, %v1752
      %1754 = vmatmul.f32.gmra.mxu0 %v1650
      %v1755 = vpop.f32.mrf.mxu0
      %v1756 = vadd.f32 %v1703, %v1755
      %1757 = vmatmul.f32.gmra.mxu0 %v1653
      %v1758 = vpop.f32.mrf.mxu0
      %v1759 = vadd.f32 %v1706, %v1758
      %1760 = vmatmul.f32.gmra.mxu0 %v1656
      %v1761 = vpop.f32.mrf.mxu0
      %v1762 = vadd.f32 %v1709, %v1761
      %1763 = vmatmul.f32.gmra.mxu0 %v1659
      %v1764 = vpop.f32.mrf.mxu0
      %v1765 = vadd.f32 %v1712, %v1764
      %1766 = vmatmul.f32.gmra.mxu0 %v1662
      %v1767 = vpop.f32.mrf.mxu0
      %v1768 = vadd.f32 %v1715, %v1767
      %1769 = vmatmul.f32.gmra.mxu0 %v1665
      %v1770 = vpop.f32.mrf.mxu0
      %v1771 = vadd.f32 %v1718, %v1770
      %1772 = vmatmul.f32.gmra.mxu0 %v1668
      %v1773 = vpop.f32.mrf.mxu0
      %v1774 = vadd.f32 %v1721, %v1773
      %1775 = vmatmul.f32.gmra.mxu0 %v1671
      %v1776 = vpop.f32.mrf.mxu0
      %v1777 = vadd.f32 %v1724, %v1776
      %1778 = vmatmul.f32.gmra.mxu0 %v1674
      %v1779 = vpop.f32.mrf.mxu0
      %v1780 = vadd.f32 %v1727, %v1779
      %1781 = vmatmul.f32.gmra.mxu0 %v1677
      %v1782 = vpop.f32.mrf.mxu0
      %v1783 = vadd.f32 %v1730, %v1782
      %1784 = vmatmul.f32.gmra.mxu0 %v1680
      %v1785 = vpop.f32.mrf.mxu0
      %v1786 = vadd.f32 %v1733, %v1785
      %1787 = vdwg.mxu0
      %v1788 = vmax.f32 %v1586, %v1753
      %v1789 = vmax.f32 %v1589, %v1756
      %v1790 = vmax.f32 %v1592, %v1759
      %v1791 = vmax.f32 %v1595, %v1762
      %v1792 = vmax.f32 %v1598, %v1765
      %v1793 = vmax.f32 %v1601, %v1768
      %v1794 = vmax.f32 %v1604, %v1771
      %v1795 = vmax.f32 %v1607, %v1774
      %v1796 = vmax.f32 %v1610, %v1777
      %v1797 = vmax.f32 %v1613, %v1780
      %v1798 = vmax.f32 %v1616, %v1783
      %v1799 = vmax.f32 %v1619, %v1786
      %v1800 = vld [vmem:[%s4] sm:$0xff]
      %v1801 = vld [vmem:[%s4 + $0x8] sm:$0xff]
      %v1802 = vld [vmem:[%s4 + $0x10] sm:$0xff]
      %v1803 = vld [vmem:[%s4 + $0x18] sm:$0x3f]
      %vm1804 = vcmask 244736
      %v1806 = vsel %vm1804, %v1788, 0
      %v1809 = vsel %vm1804, %v1789, 0
      %v1812 = vsel %vm1804, %v1790, 0
      %v1815 = vsel %vm1804, %v1791, 0
      %v1818 = vsel %vm1804, %v1792, 0
      %v1821 = vsel %vm1804, %v1793, 0
      %v1824 = vsel %vm1804, %v1794, 0
      %v1827 = vsel %vm1804, %v1795, 0
      %v1830 = vsel %vm1804, %v1796, 0
      %v1833 = vsel %vm1804, %v1797, 0
      %v1836 = vsel %vm1804, %v1798, 0
      %v1839 = vsel %vm1804, %v1799, 0
      %vm1841 = vcmask 1045504
      %v1843 = vsel %vm1841, %v1803, 0
      %1845 = vmatpush.msra.mxu0 0.0
      %1846 = vmatpush.msra.mxu0 0.0
      %1847 = vmatpush.msra.mxu0 0.0
      %1848 = vmatpush.msra.mxu0 0.0
      %1849 = vmatpush.msra.mxu0 0.0
      %1850 = vmatpush.msra.mxu0 0.0
      %1851 = vmatpush.msra.mxu0 0.0
      %1852 = vmatpush.msra.mxu0 0.0
      %1853 = vmatpush.msra.mxu0 0.0
      %1854 = vmatpush.msra.mxu0 0.0
      %1855 = vmatpush.msra.mxu0 0.0
      %1856 = vmatpush.msra.mxu0 0.0
      %1857 = vmatpush.msra.mxu0 %v1843
      %1858 = vmatpush.msra.mxu0 %v1802
      %1859 = vmatpush.msra.mxu0 %v1801
      %1860 = vmatpush.msra.mxu0 %v1800
      %1861 = vmatmul.f32.gmra.mxu0 %v1806
      %v1862 = vpop.f32.mrf.mxu0
      %v1863 = vadd.f32 0.0, %v1862
      %1864 = vmatmul.f32.gmra.mxu0 %v1809
      %v1865 = vpop.f32.mrf.mxu0
      %v1866 = vadd.f32 0.0, %v1865
      %1867 = vmatmul.f32.gmra.mxu0 %v1812
      %v1868 = vpop.f32.mrf.mxu0
      %v1869 = vadd.f32 0.0, %v1868
      %1870 = vmatmul.f32.gmra.mxu0 %v1815
      %v1871 = vpop.f32.mrf.mxu0
      %v1872 = vadd.f32 0.0, %v1871
      %1873 = vmatmul.f32.gmra.mxu0 %v1818
      %v1874 = vpop.f32.mrf.mxu0
      %v1875 = vadd.f32 0.0, %v1874
      %1876 = vmatmul.f32.gmra.mxu0 %v1821
      %v1877 = vpop.f32.mrf.mxu0
      %v1878 = vadd.f32 0.0, %v1877
      %1879 = vmatmul.f32.gmra.mxu0 %v1824
      %v1880 = vpop.f32.mrf.mxu0
      %v1881 = vadd.f32 0.0, %v1880
      %1882 = vmatmul.f32.gmra.mxu0 %v1827
      %v1883 = vpop.f32.mrf.mxu0
      %v1884 = vadd.f32 0.0, %v1883
      %1885 = vmatmul.f32.gmra.mxu0 %v1830
      %v1886 = vpop.f32.mrf.mxu0
      %v1887 = vadd.f32 0.0, %v1886
      %1888 = vmatmul.f32.gmra.mxu0 %v1833
      %v1889 = vpop.f32.mrf.mxu0
      %v1890 = vadd.f32 0.0, %v1889
      %1891 = vmatmul.f32.gmra.mxu0 %v1836
      %v1892 = vpop.f32.mrf.mxu0
      %v1893 = vadd.f32 0.0, %v1892
      %1894 = vmatmul.f32.gmra.mxu0 %v1839
      %v1895 = vpop.f32.mrf.mxu0
      %v1896 = vadd.f32 0.0, %v1895
      %1897 = vdwg.mxu0
      %s1898 = scalar_lea.vmem %s4, 32
      %v1899 = vld [vmem:[%s1898] sm:$0xff]
      %v1900 = vld [vmem:[%s1898 + $0x8] sm:$0xff]
      %v1901 = vld [vmem:[%s1898 + $0x10] sm:$0xff]
      %v1902 = vld [vmem:[%s1898 + $0x18] sm:$0x3f]
      %v1904 = vsel %vm1841, %v1902, 0
      %1906 = vmatpush.msra.mxu0 0.0
      %1907 = vmatpush.msra.mxu0 0.0
      %1908 = vmatpush.msra.mxu0 0.0
      %1909 = vmatpush.msra.mxu0 0.0
      %1910 = vmatpush.msra.mxu0 0.0
      %1911 = vmatpush.msra.mxu0 0.0
      %1912 = vmatpush.msra.mxu0 0.0
      %1913 = vmatpush.msra.mxu0 0.0
      %1914 = vmatpush.msra.mxu0 0.0
      %1915 = vmatpush.msra.mxu0 0.0
      %1916 = vmatpush.msra.mxu0 0.0
      %1917 = vmatpush.msra.mxu0 0.0
      %1918 = vmatpush.msra.mxu0 %v1904
      %1919 = vmatpush.msra.mxu0 %v1901
      %1920 = vmatpush.msra.mxu0 %v1900
      %1921 = vmatpush.msra.mxu0 %v1899
      %1922 = vmatmul.f32.gmra.mxu0 %v1806
      %v1923 = vpop.f32.mrf.mxu0
      %v1924 = vadd.f32 0.0, %v1923
      %1925 = vmatmul.f32.gmra.mxu0 %v1809
      %v1926 = vpop.f32.mrf.mxu0
      %v1927 = vadd.f32 0.0, %v1926
      %1928 = vmatmul.f32.gmra.mxu0 %v1812
      %v1929 = vpop.f32.mrf.mxu0
      %v1930 = vadd.f32 0.0, %v1929
      %1931 = vmatmul.f32.gmra.mxu0 %v1815
      %v1932 = vpop.f32.mrf.mxu0
      %v1933 = vadd.f32 0.0, %v1932
      %1934 = vmatmul.f32.gmra.mxu0 %v1818
      %v1935 = vpop.f32.mrf.mxu0
      %v1936 = vadd.f32 0.0, %v1935
      %1937 = vmatmul.f32.gmra.mxu0 %v1821
      %v1938 = vpop.f32.mrf.mxu0
      %v1939 = vadd.f32 0.0, %v1938
      %1940 = vmatmul.f32.gmra.mxu0 %v1824
      %v1941 = vpop.f32.mrf.mxu0
      %v1942 = vadd.f32 0.0, %v1941
      %1943 = vmatmul.f32.gmra.mxu0 %v1827
      %v1944 = vpop.f32.mrf.mxu0
      %v1945 = vadd.f32 0.0, %v1944
      %1946 = vmatmul.f32.gmra.mxu0 %v1830
      %v1947 = vpop.f32.mrf.mxu0
      %v1948 = vadd.f32 0.0, %v1947
      %1949 = vmatmul.f32.gmra.mxu0 %v1833
      %v1950 = vpop.f32.mrf.mxu0
      %v1951 = vadd.f32 0.0, %v1950
      %1952 = vmatmul.f32.gmra.mxu0 %v1836
      %v1953 = vpop.f32.mrf.mxu0
      %v1954 = vadd.f32 0.0, %v1953
      %1955 = vmatmul.f32.gmra.mxu0 %v1839
      %v1956 = vpop.f32.mrf.mxu0
      %v1957 = vadd.f32 0.0, %v1956
      %1958 = vdwg.mxu0
      %v1959 = vmax.f32 %v1863, %v1924
      %v1960 = vmax.f32 %v1866, %v1927
      %v1961 = vmax.f32 %v1869, %v1930
      %v1962 = vmax.f32 %v1872, %v1933
      %v1963 = vmax.f32 %v1875, %v1936
      %v1964 = vmax.f32 %v1878, %v1939
      %v1965 = vmax.f32 %v1881, %v1942
      %v1966 = vmax.f32 %v1884, %v1945
      %v1967 = vmax.f32 %v1887, %v1948
      %v1968 = vmax.f32 %v1890, %v1951
      %v1969 = vmax.f32 %v1893, %v1954
      %v1970 = vmax.f32 %v1896, %v1957
      %v1971 = vld [vmem:[%s6] sm:$0xff]
      %v1972 = vld [vmem:[%s6 + $0x8] sm:$0xff]
      %v1973 = vld [vmem:[%s6 + $0x10] sm:$0xff]
      %v1974 = vld [vmem:[%s6 + $0x18] sm:$0xff]
      %v1975 = vld [vmem:[%s6 + $0x20] sm:$0xff]
      %v1976 = vld [vmem:[%s6 + $0x28] sm:$0xff]
      %v1977 = vld [vmem:[%s6 + $0x30] sm:$0xff]
      %v1978 = vld [vmem:[%s6 + $0x38] sm:$0xff]
      %v1979 = vld [vmem:[%s6 + $0x40] sm:$0xff]
      %v1980 = vld [vmem:[%s6 + $0x48] sm:$0xff]
      %v1981 = vld [vmem:[%s6 + $0x50] sm:$0xff]
      %v1982 = vld [vmem:[%s6 + $0x58] sm:$0xff]
      %v1983 = vld [vmem:[%s6 + $0x60] sm:$0xff]
      %v1984 = vld [vmem:[%s6 + $0x68] sm:$0xff]
      %v1985 = vld [vmem:[%s6 + $0x70] sm:$0xff]
      %v1986 = vld [vmem:[%s6 + $0x78] sm:$0xff]
      %v1987 = vld [vmem:[%s6 + $0x80] sm:$0xff]
      %v1988 = vld [vmem:[%s6 + $0x88] sm:$0xff]
      %v1989 = vld [vmem:[%s6 + $0x90] sm:$0xff]
      %v1990 = vld [vmem:[%s6 + $0x98] sm:$0xff]
      %v1991 = vld [vmem:[%s6 + $0xa0] sm:$0xff]
      %v1992 = vld [vmem:[%s6 + $0xa8] sm:$0xff]
      %v1993 = vld [vmem:[%s6 + $0xb0] sm:$0xff]
      %v1994 = vld [vmem:[%s6 + $0xb8] sm:$0xff]
      %v1995 = vld [vmem:[%s6 + $0xc0] sm:$0xff]
      %v1996 = vld [vmem:[%s6 + $0xc8] sm:$0xff]
      %v1997 = vld [vmem:[%s5] sm:$0xff]
      %v1998 = vld [vmem:[%s5 + $0x8] sm:$0xff]
      %v1999 = vld [vmem:[%s5 + $0x10] sm:$0xff]
      %v2000 = vld [vmem:[%s5 + $0x18] sm:$0xff]
      %v2001 = vld [vmem:[%s5 + $0x20] sm:$0xff]
      %v2002 = vld [vmem:[%s5 + $0x28] sm:$0xff]
      %v2003 = vld [vmem:[%s5 + $0x30] sm:$0xff]
      %v2004 = vld [vmem:[%s5 + $0x38] sm:$0xff]
      %v2005 = vld [vmem:[%s5 + $0x40] sm:$0xff]
      %v2006 = vld [vmem:[%s5 + $0x48] sm:$0xff]
      %v2007 = vld [vmem:[%s5 + $0x50] sm:$0xff]
      %v2008 = vld [vmem:[%s5 + $0x58] sm:$0xff]
      %v2009 = vld [vmem:[%s5 + $0x60] sm:$0xff]
      %v2010 = vld [vmem:[%s5 + $0x68] sm:$0xff]
      %v2011 = vld [vmem:[%s5 + $0x70] sm:$0xff]
      %v2012 = vld [vmem:[%s5 + $0x78] sm:$0xff]
      %v2013 = vld [vmem:[%s5 + $0x80] sm:$0xff]
      %v2014 = vld [vmem:[%s5 + $0x88] sm:$0xff]
      %v2015 = vld [vmem:[%s5 + $0x90] sm:$0xff]
      %v2016 = vld [vmem:[%s5 + $0x98] sm:$0xff]
      %v2017 = vld [vmem:[%s5 + $0xa0] sm:$0xff]
      %v2018 = vld [vmem:[%s5 + $0xa8] sm:$0xff]
      %v2019 = vld [vmem:[%s5 + $0xb0] sm:$0xff]
      %v2020 = vld [vmem:[%s5 + $0xb8] sm:$0xff]
      %v2021 = vld [vmem:[%s5 + $0xc0] sm:$0xff]
      %v2022 = vld [vmem:[%s5 + $0xc8] sm:$0xff]
      %vm2023 = vcmask 736256
      %v2025 = vsel %vm2023, %v1997, 0
      %v2028 = vsel %vm2023, %v1998, 0
      %v2031 = vsel %vm2023, %v1999, 0
      %v2034 = vsel %vm2023, %v2000, 0
      %v2037 = vsel %vm2023, %v2001, 0
      %v2040 = vsel %vm2023, %v2002, 0
      %v2043 = vsel %vm2023, %v2003, 0
      %v2046 = vsel %vm2023, %v2004, 0
      %v2049 = vsel %vm2023, %v2005, 0
      %v2052 = vsel %vm2023, %v2006, 0
      %v2055 = vsel %vm2023, %v2007, 0
      %v2058 = vsel %vm2023, %v2008, 0
      %v2061 = vsel %vm2023, %v2009, 0
      %v2064 = vsel %vm2023, %v2010, 0
      %v2067 = vsel %vm2023, %v2011, 0
      %v2070 = vsel %vm2023, %v2012, 0
      %v2073 = vsel %vm2023, %v2013, 0
      %v2076 = vsel %vm2023, %v2014, 0
      %v2079 = vsel %vm2023, %v2015, 0
      %v2082 = vsel %vm2023, %v2016, 0
      %v2085 = vsel %vm2023, %v2017, 0
      %v2088 = vsel %vm2023, %v2018, 0
      %v2091 = vsel %vm2023, %v2019, 0
      %v2094 = vsel %vm2023, %v2020, 0
      %v2097 = vsel %vm2023, %v2021, 0
      %v2100 = vsel %vm2023, %v2022, 0
      %vm2102 = vcmask 1041408
      %v2104 = vsel %vm2102, %v1970, 0
      %2106 = vmatpush.msra.mxu0 0.0
      %2107 = vmatpush.msra.mxu0 0.0
      %2108 = vmatpush.msra.mxu0 0.0
      %2109 = vmatpush.msra.mxu0 0.0
      %2110 = vmatpush.msra.mxu0 %v2104
      %2111 = vmatpush.msra.mxu0 %v1969
      %2112 = vmatpush.msra.mxu0 %v1968
      %2113 = vmatpush.msra.mxu0 %v1967
      %2114 = vmatpush.msra.mxu0 %v1966
      %2115 = vmatpush.msra.mxu0 %v1965
      %2116 = vmatpush.msra.mxu0 %v1964
      %2117 = vmatpush.msra.mxu0 %v1963
      %2118 = vmatpush.msra.mxu0 %v1962
      %2119 = vmatpush.msra.mxu0 %v1961
      %2120 = vmatpush.msra.mxu0 %v1960
      %2121 = vmatpush.msra.mxu0 %v1959
      %2122 = vmatmul.f32.gmra.mxu0 %v2025
      %v2123 = vpop.f32.mrf.mxu0
      %v2124 = vadd.f32 0.0, %v2123
      %2125 = vmatmul.f32.gmra.mxu0 %v2028
      %v2126 = vpop.f32.mrf.mxu0
      %v2127 = vadd.f32 0.0, %v2126
      %2128 = vmatmul.f32.gmra.mxu0 %v2031
      %v2129 = vpop.f32.mrf.mxu0
      %v2130 = vadd.f32 0.0, %v2129
      %2131 = vmatmul.f32.gmra.mxu0 %v2034
      %v2132 = vpop.f32.mrf.mxu0
      %v2133 = vadd.f32 0.0, %v2132
      %2134 = vmatmul.f32.gmra.mxu0 %v2037
      %v2135 = vpop.f32.mrf.mxu0
      %v2136 = vadd.f32 0.0, %v2135
      %2137 = vmatmul.f32.gmra.mxu0 %v2040
      %v2138 = vpop.f32.mrf.mxu0
      %v2139 = vadd.f32 0.0, %v2138
      %2140 = vmatmul.f32.gmra.mxu0 %v2043
      %v2141 = vpop.f32.mrf.mxu0
      %v2142 = vadd.f32 0.0, %v2141
      %2143 = vmatmul.f32.gmra.mxu0 %v2046
      %v2144 = vpop.f32.mrf.mxu0
      %v2145 = vadd.f32 0.0, %v2144
      %2146 = vmatmul.f32.gmra.mxu0 %v2049
      %v2147 = vpop.f32.mrf.mxu0
      %v2148 = vadd.f32 0.0, %v2147
      %2149 = vmatmul.f32.gmra.mxu0 %v2052
      %v2150 = vpop.f32.mrf.mxu0
      %v2151 = vadd.f32 0.0, %v2150
      %2152 = vmatmul.f32.gmra.mxu0 %v2055
      %v2153 = vpop.f32.mrf.mxu0
      %v2154 = vadd.f32 0.0, %v2153
      %2155 = vmatmul.f32.gmra.mxu0 %v2058
      %v2156 = vpop.f32.mrf.mxu0
      %v2157 = vadd.f32 0.0, %v2156
      %2158 = vmatmul.f32.gmra.mxu0 %v2061
      %v2159 = vpop.f32.mrf.mxu0
      %v2160 = vadd.f32 0.0, %v2159
      %2161 = vmatmul.f32.gmra.mxu0 %v2064
      %v2162 = vpop.f32.mrf.mxu0
      %v2163 = vadd.f32 0.0, %v2162
      %2164 = vmatmul.f32.gmra.mxu0 %v2067
      %v2165 = vpop.f32.mrf.mxu0
      %v2166 = vadd.f32 0.0, %v2165
      %2167 = vmatmul.f32.gmra.mxu0 %v2070
      %v2168 = vpop.f32.mrf.mxu0
      %v2169 = vadd.f32 0.0, %v2168
      %2170 = vmatmul.f32.gmra.mxu0 %v2073
      %v2171 = vpop.f32.mrf.mxu0
      %v2172 = vadd.f32 0.0, %v2171
      %2173 = vmatmul.f32.gmra.mxu0 %v2076
      %v2174 = vpop.f32.mrf.mxu0
      %v2175 = vadd.f32 0.0, %v2174
      %2176 = vmatmul.f32.gmra.mxu0 %v2079
      %v2177 = vpop.f32.mrf.mxu0
      %v2178 = vadd.f32 0.0, %v2177
      %2179 = vmatmul.f32.gmra.mxu0 %v2082
      %v2180 = vpop.f32.mrf.mxu0
      %v2181 = vadd.f32 0.0, %v2180
      %2182 = vmatmul.f32.gmra.mxu0 %v2085
      %v2183 = vpop.f32.mrf.mxu0
      %v2184 = vadd.f32 0.0, %v2183
      %2185 = vmatmul.f32.gmra.mxu0 %v2088
      %v2186 = vpop.f32.mrf.mxu0
      %v2187 = vadd.f32 0.0, %v2186
      %2188 = vmatmul.f32.gmra.mxu0 %v2091
      %v2189 = vpop.f32.mrf.mxu0
      %v2190 = vadd.f32 0.0, %v2189
      %2191 = vmatmul.f32.gmra.mxu0 %v2094
      %v2192 = vpop.f32.mrf.mxu0
      %v2193 = vadd.f32 0.0, %v2192
      %2194 = vmatmul.f32.gmra.mxu0 %v2097
      %v2195 = vpop.f32.mrf.mxu0
      %v2196 = vadd.f32 0.0, %v2195
      %2197 = vmatmul.f32.gmra.mxu0 %v2100
      %v2198 = vpop.f32.mrf.mxu0
      %v2199 = vadd.f32 0.0, %v2198
      %2200 = vdwg.mxu0
      %2202 = vset.pattern.permute.xlu0 0
      %2203 = vperm.xlu0 %2202, %v1971
      %v2204 = vpop.permute.xlu0 %2203
      %2207 = vset.pattern.permute.xlu0 0
      %2208 = vperm.xlu0 %2207, %v1972
      %v2209 = vpop.permute.xlu0 %2208
      %2212 = vset.pattern.permute.xlu0 0
      %2213 = vperm.xlu0 %2212, %v1973
      %v2214 = vpop.permute.xlu0 %2213
      %2217 = vset.pattern.permute.xlu0 0
      %2218 = vperm.xlu0 %2217, %v1974
      %v2219 = vpop.permute.xlu0 %2218
      %2222 = vset.pattern.permute.xlu0 0
      %2223 = vperm.xlu0 %2222, %v1975
      %v2224 = vpop.permute.xlu0 %2223
      %2227 = vset.pattern.permute.xlu0 0
      %2228 = vperm.xlu0 %2227, %v1976
      %v2229 = vpop.permute.xlu0 %2228
      %2232 = vset.pattern.permute.xlu0 0
      %2233 = vperm.xlu0 %2232, %v1977
      %v2234 = vpop.permute.xlu0 %2233
      %2237 = vset.pattern.permute.xlu0 0
      %2238 = vperm.xlu0 %2237, %v1978
      %v2239 = vpop.permute.xlu0 %2238
      %2242 = vset.pattern.permute.xlu0 0
      %2243 = vperm.xlu0 %2242, %v1979
      %v2244 = vpop.permute.xlu0 %2243
      %2247 = vset.pattern.permute.xlu0 0
      %2248 = vperm.xlu0 %2247, %v1980
      %v2249 = vpop.permute.xlu0 %2248
      %2252 = vset.pattern.permute.xlu0 0
      %2253 = vperm.xlu0 %2252, %v1981
      %v2254 = vpop.permute.xlu0 %2253
      %2257 = vset.pattern.permute.xlu0 0
      %2258 = vperm.xlu0 %2257, %v1982
      %v2259 = vpop.permute.xlu0 %2258
      %2262 = vset.pattern.permute.xlu0 0
      %2263 = vperm.xlu0 %2262, %v1983
      %v2264 = vpop.permute.xlu0 %2263
      %2267 = vset.pattern.permute.xlu0 0
      %2268 = vperm.xlu0 %2267, %v1984
      %v2269 = vpop.permute.xlu0 %2268
      %2272 = vset.pattern.permute.xlu0 0
      %2273 = vperm.xlu0 %2272, %v1985
      %v2274 = vpop.permute.xlu0 %2273
      %2277 = vset.pattern.permute.xlu0 0
      %2278 = vperm.xlu0 %2277, %v1986
      %v2279 = vpop.permute.xlu0 %2278
      %2282 = vset.pattern.permute.xlu0 0
      %2283 = vperm.xlu0 %2282, %v1987
      %v2284 = vpop.permute.xlu0 %2283
      %2287 = vset.pattern.permute.xlu0 0
      %2288 = vperm.xlu0 %2287, %v1988
      %v2289 = vpop.permute.xlu0 %2288
      %2292 = vset.pattern.permute.xlu0 0
      %2293 = vperm.xlu0 %2292, %v1989
      %v2294 = vpop.permute.xlu0 %2293
      %2297 = vset.pattern.permute.xlu0 0
      %2298 = vperm.xlu0 %2297, %v1990
      %v2299 = vpop.permute.xlu0 %2298
      %2302 = vset.pattern.permute.xlu0 0
      %2303 = vperm.xlu0 %2302, %v1991
      %v2304 = vpop.permute.xlu0 %2303
      %2307 = vset.pattern.permute.xlu0 0
      %2308 = vperm.xlu0 %2307, %v1992
      %v2309 = vpop.permute.xlu0 %2308
      %2312 = vset.pattern.permute.xlu0 0
      %2313 = vperm.xlu0 %2312, %v1993
      %v2314 = vpop.permute.xlu0 %2313
      %2317 = vset.pattern.permute.xlu0 0
      %2318 = vperm.xlu0 %2317, %v1994
      %v2319 = vpop.permute.xlu0 %2318
      %2322 = vset.pattern.permute.xlu0 0
      %2323 = vperm.xlu0 %2322, %v1995
      %v2324 = vpop.permute.xlu0 %2323
      %2327 = vset.pattern.permute.xlu0 0
      %2328 = vperm.xlu0 %2327, %v1996
      %v2329 = vpop.permute.xlu0 %2328
      %v2331 = vadd.f32 %v2204, %v2124
      %v2332 = vadd.f32 %v2209, %v2127
      %v2333 = vadd.f32 %v2214, %v2130
      %v2334 = vadd.f32 %v2219, %v2133
      %v2335 = vadd.f32 %v2224, %v2136
      %v2336 = vadd.f32 %v2229, %v2139
      %v2337 = vadd.f32 %v2234, %v2142
      %v2338 = vadd.f32 %v2239, %v2145
      %v2339 = vadd.f32 %v2244, %v2148
      %v2340 = vadd.f32 %v2249, %v2151
      %v2341 = vadd.f32 %v2254, %v2154
      %v2342 = vadd.f32 %v2259, %v2157
      %v2343 = vadd.f32 %v2264, %v2160
      %v2344 = vadd.f32 %v2269, %v2163
      %v2345 = vadd.f32 %v2274, %v2166
      %v2346 = vadd.f32 %v2279, %v2169
      %v2347 = vadd.f32 %v2284, %v2172
      %v2348 = vadd.f32 %v2289, %v2175
      %v2349 = vadd.f32 %v2294, %v2178
      %v2350 = vadd.f32 %v2299, %v2181
      %v2351 = vadd.f32 %v2304, %v2184
      %v2352 = vadd.f32 %v2309, %v2187
      %v2353 = vadd.f32 %v2314, %v2190
      %v2354 = vadd.f32 %v2319, %v2193
      %v2355 = vadd.f32 %v2324, %v2196
      %v2356 = vadd.f32 %v2329, %v2199
      %s2357 = scalar_lea.vmem %s5, 208
      %v2358 = vld [vmem:[%s2357] sm:$0xff]
      %v2359 = vld [vmem:[%s2357 + $0x8] sm:$0xff]
      %v2360 = vld [vmem:[%s2357 + $0x10] sm:$0xff]
      %v2361 = vld [vmem:[%s2357 + $0x18] sm:$0xff]
      %v2362 = vld [vmem:[%s2357 + $0x20] sm:$0xff]
      %v2363 = vld [vmem:[%s2357 + $0x28] sm:$0xff]
      %v2364 = vld [vmem:[%s2357 + $0x30] sm:$0xff]
      %v2365 = vld [vmem:[%s2357 + $0x38] sm:$0xff]
      %v2366 = vld [vmem:[%s2357 + $0x40] sm:$0xff]
      %v2367 = vld [vmem:[%s2357 + $0x48] sm:$0xff]
      %v2368 = vld [vmem:[%s2357 + $0x50] sm:$0xff]
      %v2369 = vld [vmem:[%s2357 + $0x58] sm:$0xff]
      %v2370 = vld [vmem:[%s2357 + $0x60] sm:$0xff]
      %v2371 = vld [vmem:[%s2357 + $0x68] sm:$0xff]
      %v2372 = vld [vmem:[%s2357 + $0x70] sm:$0xff]
      %v2373 = vld [vmem:[%s2357 + $0x78] sm:$0xff]
      %v2374 = vld [vmem:[%s2357 + $0x80] sm:$0xff]
      %v2375 = vld [vmem:[%s2357 + $0x88] sm:$0xff]
      %v2376 = vld [vmem:[%s2357 + $0x90] sm:$0xff]
      %v2377 = vld [vmem:[%s2357 + $0x98] sm:$0xff]
      %v2378 = vld [vmem:[%s2357 + $0xa0] sm:$0xff]
      %v2379 = vld [vmem:[%s2357 + $0xa8] sm:$0xff]
      %v2380 = vld [vmem:[%s2357 + $0xb0] sm:$0xff]
      %v2381 = vld [vmem:[%s2357 + $0xb8] sm:$0xff]
      %v2382 = vld [vmem:[%s2357 + $0xc0] sm:$0xff]
      %v2383 = vld [vmem:[%s2357 + $0xc8] sm:$0xff]
      %v2385 = vsel %vm2023, %v2358, 0
      %v2388 = vsel %vm2023, %v2359, 0
      %v2391 = vsel %vm2023, %v2360, 0
      %v2394 = vsel %vm2023, %v2361, 0
      %v2397 = vsel %vm2023, %v2362, 0
      %v2400 = vsel %vm2023, %v2363, 0
      %v2403 = vsel %vm2023, %v2364, 0
      %v2406 = vsel %vm2023, %v2365, 0
      %v2409 = vsel %vm2023, %v2366, 0
      %v2412 = vsel %vm2023, %v2367, 0
      %v2415 = vsel %vm2023, %v2368, 0
      %v2418 = vsel %vm2023, %v2369, 0
      %v2421 = vsel %vm2023, %v2370, 0
      %v2424 = vsel %vm2023, %v2371, 0
      %v2427 = vsel %vm2023, %v2372, 0
      %v2430 = vsel %vm2023, %v2373, 0
      %v2433 = vsel %vm2023, %v2374, 0
      %v2436 = vsel %vm2023, %v2375, 0
      %v2439 = vsel %vm2023, %v2376, 0
      %v2442 = vsel %vm2023, %v2377, 0
      %v2445 = vsel %vm2023, %v2378, 0
      %v2448 = vsel %vm2023, %v2379, 0
      %v2451 = vsel %vm2023, %v2380, 0
      %v2454 = vsel %vm2023, %v2381, 0
      %v2457 = vsel %vm2023, %v2382, 0
      %v2460 = vsel %vm2023, %v2383, 0
      %2462 = vmatpush.msra.mxu0 0.0
      %2463 = vmatpush.msra.mxu0 0.0
      %2464 = vmatpush.msra.mxu0 0.0
      %2465 = vmatpush.msra.mxu0 0.0
      %2466 = vmatpush.msra.mxu0 %v2104
      %2467 = vmatpush.msra.mxu0 %v1969
      %2468 = vmatpush.msra.mxu0 %v1968
      %2469 = vmatpush.msra.mxu0 %v1967
      %2470 = vmatpush.msra.mxu0 %v1966
      %2471 = vmatpush.msra.mxu0 %v1965
      %2472 = vmatpush.msra.mxu0 %v1964
      %2473 = vmatpush.msra.mxu0 %v1963
      %2474 = vmatpush.msra.mxu0 %v1962
      %2475 = vmatpush.msra.mxu0 %v1961
      %2476 = vmatpush.msra.mxu0 %v1960
      %2477 = vmatpush.msra.mxu0 %v1959
      %2478 = vmatmul.f32.gmra.mxu0 %v2385
      %v2479 = vpop.f32.mrf.mxu0
      %v2480 = vadd.f32 0.0, %v2479
      %2481 = vmatmul.f32.gmra.mxu0 %v2388
      %v2482 = vpop.f32.mrf.mxu0
      %v2483 = vadd.f32 0.0, %v2482
      %2484 = vmatmul.f32.gmra.mxu0 %v2391
      %v2485 = vpop.f32.mrf.mxu0
      %v2486 = vadd.f32 0.0, %v2485
      %2487 = vmatmul.f32.gmra.mxu0 %v2394
      %v2488 = vpop.f32.mrf.mxu0
      %v2489 = vadd.f32 0.0, %v2488
      %2490 = vmatmul.f32.gmra.mxu0 %v2397
      %v2491 = vpop.f32.mrf.mxu0
      %v2492 = vadd.f32 0.0, %v2491
      %2493 = vmatmul.f32.gmra.mxu0 %v2400
      %v2494 = vpop.f32.mrf.mxu0
      %v2495 = vadd.f32 0.0, %v2494
      %2496 = vmatmul.f32.gmra.mxu0 %v2403
      %v2497 = vpop.f32.mrf.mxu0
      %v2498 = vadd.f32 0.0, %v2497
      %2499 = vmatmul.f32.gmra.mxu0 %v2406
      %v2500 = vpop.f32.mrf.mxu0
      %v2501 = vadd.f32 0.0, %v2500
      %2502 = vmatmul.f32.gmra.mxu0 %v2409
      %v2503 = vpop.f32.mrf.mxu0
      %v2504 = vadd.f32 0.0, %v2503
      %2505 = vmatmul.f32.gmra.mxu0 %v2412
      %v2506 = vpop.f32.mrf.mxu0
      %v2507 = vadd.f32 0.0, %v2506
      %2508 = vmatmul.f32.gmra.mxu0 %v2415
      %v2509 = vpop.f32.mrf.mxu0
      %v2510 = vadd.f32 0.0, %v2509
      %2511 = vmatmul.f32.gmra.mxu0 %v2418
      %v2512 = vpop.f32.mrf.mxu0
      %v2513 = vadd.f32 0.0, %v2512
      %2514 = vmatmul.f32.gmra.mxu0 %v2421
      %v2515 = vpop.f32.mrf.mxu0
      %v2516 = vadd.f32 0.0, %v2515
      %2517 = vmatmul.f32.gmra.mxu0 %v2424
      %v2518 = vpop.f32.mrf.mxu0
      %v2519 = vadd.f32 0.0, %v2518
      %2520 = vmatmul.f32.gmra.mxu0 %v2427
      %v2521 = vpop.f32.mrf.mxu0
      %v2522 = vadd.f32 0.0, %v2521
      %2523 = vmatmul.f32.gmra.mxu0 %v2430
      %v2524 = vpop.f32.mrf.mxu0
      %v2525 = vadd.f32 0.0, %v2524
      %2526 = vmatmul.f32.gmra.mxu0 %v2433
      %v2527 = vpop.f32.mrf.mxu0
      %v2528 = vadd.f32 0.0, %v2527
      %2529 = vmatmul.f32.gmra.mxu0 %v2436
      %v2530 = vpop.f32.mrf.mxu0
      %v2531 = vadd.f32 0.0, %v2530
      %2532 = vmatmul.f32.gmra.mxu0 %v2439
      %v2533 = vpop.f32.mrf.mxu0
      %v2534 = vadd.f32 0.0, %v2533
      %2535 = vmatmul.f32.gmra.mxu0 %v2442
      %v2536 = vpop.f32.mrf.mxu0
      %v2537 = vadd.f32 0.0, %v2536
      %2538 = vmatmul.f32.gmra.mxu0 %v2445
      %v2539 = vpop.f32.mrf.mxu0
      %v2540 = vadd.f32 0.0, %v2539
      %2541 = vmatmul.f32.gmra.mxu0 %v2448
      %v2542 = vpop.f32.mrf.mxu0
      %v2543 = vadd.f32 0.0, %v2542
      %2544 = vmatmul.f32.gmra.mxu0 %v2451
      %v2545 = vpop.f32.mrf.mxu0
      %v2546 = vadd.f32 0.0, %v2545
      %2547 = vmatmul.f32.gmra.mxu0 %v2454
      %v2548 = vpop.f32.mrf.mxu0
      %v2549 = vadd.f32 0.0, %v2548
      %2550 = vmatmul.f32.gmra.mxu0 %v2457
      %v2551 = vpop.f32.mrf.mxu0
      %v2552 = vadd.f32 0.0, %v2551
      %2553 = vmatmul.f32.gmra.mxu0 %v2460
      %v2554 = vpop.f32.mrf.mxu0
      %v2555 = vadd.f32 0.0, %v2554
      %2556 = vdwg.mxu0
      %2583 = vrot.lane.b32.xlu0 %v2480, 127
      %v2584 = vpop.permute.xlu0 %2583
      %2585 = vrot.lane.b32.xlu0 %v2483, 127
      %v2586 = vpop.permute.xlu0 %2585
      %2587 = vrot.lane.b32.xlu0 %v2486, 127
      %v2588 = vpop.permute.xlu0 %2587
      %2589 = vrot.lane.b32.xlu0 %v2489, 127
      %v2590 = vpop.permute.xlu0 %2589
      %2591 = vrot.lane.b32.xlu0 %v2492, 127
      %v2592 = vpop.permute.xlu0 %2591
      %2593 = vrot.lane.b32.xlu0 %v2495, 127
      %v2594 = vpop.permute.xlu0 %2593
      %2595 = vrot.lane.b32.xlu0 %v2498, 127
      %v2596 = vpop.permute.xlu0 %2595
      %2597 = vrot.lane.b32.xlu0 %v2501, 127
      %v2598 = vpop.permute.xlu0 %2597
      %2599 = vrot.lane.b32.xlu0 %v2504, 127
      %v2600 = vpop.permute.xlu0 %2599
      %2601 = vrot.lane.b32.xlu0 %v2507, 127
      %v2602 = vpop.permute.xlu0 %2601
      %2603 = vrot.lane.b32.xlu0 %v2510, 127
      %v2604 = vpop.permute.xlu0 %2603
      %2605 = vrot.lane.b32.xlu0 %v2513, 127
      %v2606 = vpop.permute.xlu0 %2605
      %2607 = vrot.lane.b32.xlu0 %v2516, 127
      %v2608 = vpop.permute.xlu0 %2607
      %2609 = vrot.lane.b32.xlu0 %v2519, 127
      %v2610 = vpop.permute.xlu0 %2609
      %2611 = vrot.lane.b32.xlu0 %v2522, 127
      %v2612 = vpop.permute.xlu0 %2611
      %2613 = vrot.lane.b32.xlu0 %v2525, 127
      %v2614 = vpop.permute.xlu0 %2613
      %2615 = vrot.lane.b32.xlu0 %v2528, 127
      %v2616 = vpop.permute.xlu0 %2615
      %2617 = vrot.lane.b32.xlu0 %v2531, 127
      %v2618 = vpop.permute.xlu0 %2617
      %2619 = vrot.lane.b32.xlu0 %v2534, 127
      %v2620 = vpop.permute.xlu0 %2619
      %2621 = vrot.lane.b32.xlu0 %v2537, 127
      %v2622 = vpop.permute.xlu0 %2621
      %2623 = vrot.lane.b32.xlu0 %v2540, 127
      %v2624 = vpop.permute.xlu0 %2623
      %2625 = vrot.lane.b32.xlu0 %v2543, 127
      %v2626 = vpop.permute.xlu0 %2625
      %2627 = vrot.lane.b32.xlu0 %v2546, 127
      %v2628 = vpop.permute.xlu0 %2627
      %2629 = vrot.lane.b32.xlu0 %v2549, 127
      %v2630 = vpop.permute.xlu0 %2629
      %2631 = vrot.lane.b32.xlu0 %v2552, 127
      %v2632 = vpop.permute.xlu0 %2631
      %2633 = vrot.lane.b32.xlu0 %v2555, 127
      %v2634 = vpop.permute.xlu0 %2633
      %v2661 = vadd.f32 %v2331, %v2584
      %v2662 = vadd.f32 %v2332, %v2586
      %v2663 = vadd.f32 %v2333, %v2588
      %v2664 = vadd.f32 %v2334, %v2590
      %v2665 = vadd.f32 %v2335, %v2592
      %v2666 = vadd.f32 %v2336, %v2594
      %v2667 = vadd.f32 %v2337, %v2596
      %v2668 = vadd.f32 %v2338, %v2598
      %v2669 = vadd.f32 %v2339, %v2600
      %v2670 = vadd.f32 %v2340, %v2602
      %v2671 = vadd.f32 %v2341, %v2604
      %v2672 = vadd.f32 %v2342, %v2606
      %v2673 = vadd.f32 %v2343, %v2608
      %v2674 = vadd.f32 %v2344, %v2610
      %v2675 = vadd.f32 %v2345, %v2612
      %v2676 = vadd.f32 %v2346, %v2614
      %v2677 = vadd.f32 %v2347, %v2616
      %v2678 = vadd.f32 %v2348, %v2618
      %v2679 = vadd.f32 %v2349, %v2620
      %v2680 = vadd.f32 %v2350, %v2622
      %v2681 = vadd.f32 %v2351, %v2624
      %v2682 = vadd.f32 %v2352, %v2626
      %v2683 = vadd.f32 %v2353, %v2628
      %v2684 = vadd.f32 %v2354, %v2630
      %v2685 = vadd.f32 %v2355, %v2632
      %v2686 = vadd.f32 %v2356, %v2634
      %s2687 = scalar_lea.vmem %s5, 416
      %v2688 = vld [vmem:[%s2687] sm:$0xff]
      %v2689 = vld [vmem:[%s2687 + $0x8] sm:$0xff]
      %v2690 = vld [vmem:[%s2687 + $0x10] sm:$0xff]
      %v2691 = vld [vmem:[%s2687 + $0x18] sm:$0xff]
      %v2692 = vld [vmem:[%s2687 + $0x20] sm:$0xff]
      %v2693 = vld [vmem:[%s2687 + $0x28] sm:$0xff]
      %v2694 = vld [vmem:[%s2687 + $0x30] sm:$0xff]
      %v2695 = vld [vmem:[%s2687 + $0x38] sm:$0xff]
      %v2696 = vld [vmem:[%s2687 + $0x40] sm:$0xff]
      %v2697 = vld [vmem:[%s2687 + $0x48] sm:$0xff]
      %v2698 = vld [vmem:[%s2687 + $0x50] sm:$0xff]
      %v2699 = vld [vmem:[%s2687 + $0x58] sm:$0xff]
      %v2700 = vld [vmem:[%s2687 + $0x60] sm:$0xff]
      %v2701 = vld [vmem:[%s2687 + $0x68] sm:$0xff]
      %v2702 = vld [vmem:[%s2687 + $0x70] sm:$0xff]
      %v2703 = vld [vmem:[%s2687 + $0x78] sm:$0xff]
      %v2704 = vld [vmem:[%s2687 + $0x80] sm:$0xff]
      %v2705 = vld [vmem:[%s2687 + $0x88] sm:$0xff]
      %v2706 = vld [vmem:[%s2687 + $0x90] sm:$0xff]
      %v2707 = vld [vmem:[%s2687 + $0x98] sm:$0xff]
      %v2708 = vld [vmem:[%s2687 + $0xa0] sm:$0xff]
      %v2709 = vld [vmem:[%s2687 + $0xa8] sm:$0xff]
      %v2710 = vld [vmem:[%s2687 + $0xb0] sm:$0xff]
      %v2711 = vld [vmem:[%s2687 + $0xb8] sm:$0xff]
      %v2712 = vld [vmem:[%s2687 + $0xc0] sm:$0xff]
      %v2713 = vld [vmem:[%s2687 + $0xc8] sm:$0xff]
      %v2715 = vsel %vm2023, %v2688, 0
      %v2718 = vsel %vm2023, %v2689, 0
      %v2721 = vsel %vm2023, %v2690, 0
      %v2724 = vsel %vm2023, %v2691, 0
      %v2727 = vsel %vm2023, %v2692, 0
      %v2730 = vsel %vm2023, %v2693, 0
      %v2733 = vsel %vm2023, %v2694, 0
      %v2736 = vsel %vm2023, %v2695, 0
      %v2739 = vsel %vm2023, %v2696, 0
      %v2742 = vsel %vm2023, %v2697, 0
      %v2745 = vsel %vm2023, %v2698, 0
      %v2748 = vsel %vm2023, %v2699, 0
      %v2751 = vsel %vm2023, %v2700, 0
      %v2754 = vsel %vm2023, %v2701, 0
      %v2757 = vsel %vm2023, %v2702, 0
      %v2760 = vsel %vm2023, %v2703, 0
      %v2763 = vsel %vm2023, %v2704, 0
      %v2766 = vsel %vm2023, %v2705, 0
      %v2769 = vsel %vm2023, %v2706, 0
      %v2772 = vsel %vm2023, %v2707, 0
      %v2775 = vsel %vm2023, %v2708, 0
      %v2778 = vsel %vm2023, %v2709, 0
      %v2781 = vsel %vm2023, %v2710, 0
      %v2784 = vsel %vm2023, %v2711, 0
      %v2787 = vsel %vm2023, %v2712, 0
      %v2790 = vsel %vm2023, %v2713, 0
      %2792 = vmatpush.msra.mxu0 0.0
      %2793 = vmatpush.msra.mxu0 0.0
      %2794 = vmatpush.msra.mxu0 0.0
      %2795 = vmatpush.msra.mxu0 0.0
      %2796 = vmatpush.msra.mxu0 %v2104
      %2797 = vmatpush.msra.mxu0 %v1969
      %2798 = vmatpush.msra.mxu0 %v1968
      %2799 = vmatpush.msra.mxu0 %v1967
      %2800 = vmatpush.msra.mxu0 %v1966
      %2801 = vmatpush.msra.mxu0 %v1965
      %2802 = vmatpush.msra.mxu0 %v1964
      %2803 = vmatpush.msra.mxu0 %v1963
      %2804 = vmatpush.msra.mxu0 %v1962
      %2805 = vmatpush.msra.mxu0 %v1961
      %2806 = vmatpush.msra.mxu0 %v1960
      %2807 = vmatpush.msra.mxu0 %v1959
      %2808 = vmatmul.f32.gmra.mxu0 %v2715
      %v2809 = vpop.f32.mrf.mxu0
      %v2810 = vadd.f32 0.0, %v2809
      %2811 = vmatmul.f32.gmra.mxu0 %v2718
      %v2812 = vpop.f32.mrf.mxu0
      %v2813 = vadd.f32 0.0, %v2812
      %2814 = vmatmul.f32.gmra.mxu0 %v2721
      %v2815 = vpop.f32.mrf.mxu0
      %v2816 = vadd.f32 0.0, %v2815
      %2817 = vmatmul.f32.gmra.mxu0 %v2724
      %v2818 = vpop.f32.mrf.mxu0
      %v2819 = vadd.f32 0.0, %v2818
      %2820 = vmatmul.f32.gmra.mxu0 %v2727
      %v2821 = vpop.f32.mrf.mxu0
      %v2822 = vadd.f32 0.0, %v2821
      %2823 = vmatmul.f32.gmra.mxu0 %v2730
      %v2824 = vpop.f32.mrf.mxu0
      %v2825 = vadd.f32 0.0, %v2824
      %2826 = vmatmul.f32.gmra.mxu0 %v2733
      %v2827 = vpop.f32.mrf.mxu0
      %v2828 = vadd.f32 0.0, %v2827
      %2829 = vmatmul.f32.gmra.mxu0 %v2736
      %v2830 = vpop.f32.mrf.mxu0
      %v2831 = vadd.f32 0.0, %v2830
      %2832 = vmatmul.f32.gmra.mxu0 %v2739
      %v2833 = vpop.f32.mrf.mxu0
      %v2834 = vadd.f32 0.0, %v2833
      %2835 = vmatmul.f32.gmra.mxu0 %v2742
      %v2836 = vpop.f32.mrf.mxu0
      %v2837 = vadd.f32 0.0, %v2836
      %2838 = vmatmul.f32.gmra.mxu0 %v2745
      %v2839 = vpop.f32.mrf.mxu0
      %v2840 = vadd.f32 0.0, %v2839
      %2841 = vmatmul.f32.gmra.mxu0 %v2748
      %v2842 = vpop.f32.mrf.mxu0
      %v2843 = vadd.f32 0.0, %v2842
      %2844 = vmatmul.f32.gmra.mxu0 %v2751
      %v2845 = vpop.f32.mrf.mxu0
      %v2846 = vadd.f32 0.0, %v2845
      %2847 = vmatmul.f32.gmra.mxu0 %v2754
      %v2848 = vpop.f32.mrf.mxu0
      %v2849 = vadd.f32 0.0, %v2848
      %2850 = vmatmul.f32.gmra.mxu0 %v2757
      %v2851 = vpop.f32.mrf.mxu0
      %v2852 = vadd.f32 0.0, %v2851
      %2853 = vmatmul.f32.gmra.mxu0 %v2760
      %v2854 = vpop.f32.mrf.mxu0
      %v2855 = vadd.f32 0.0, %v2854
      %2856 = vmatmul.f32.gmra.mxu0 %v2763
      %v2857 = vpop.f32.mrf.mxu0
      %v2858 = vadd.f32 0.0, %v2857
      %2859 = vmatmul.f32.gmra.mxu0 %v2766
      %v2860 = vpop.f32.mrf.mxu0
      %v2861 = vadd.f32 0.0, %v2860
      %2862 = vmatmul.f32.gmra.mxu0 %v2769
      %v2863 = vpop.f32.mrf.mxu0
      %v2864 = vadd.f32 0.0, %v2863
      %2865 = vmatmul.f32.gmra.mxu0 %v2772
      %v2866 = vpop.f32.mrf.mxu0
      %v2867 = vadd.f32 0.0, %v2866
      %2868 = vmatmul.f32.gmra.mxu0 %v2775
      %v2869 = vpop.f32.mrf.mxu0
      %v2870 = vadd.f32 0.0, %v2869
      %2871 = vmatmul.f32.gmra.mxu0 %v2778
      %v2872 = vpop.f32.mrf.mxu0
      %v2873 = vadd.f32 0.0, %v2872
      %2874 = vmatmul.f32.gmra.mxu0 %v2781
      %v2875 = vpop.f32.mrf.mxu0
      %v2876 = vadd.f32 0.0, %v2875
      %2877 = vmatmul.f32.gmra.mxu0 %v2784
      %v2878 = vpop.f32.mrf.mxu0
      %v2879 = vadd.f32 0.0, %v2878
      %2880 = vmatmul.f32.gmra.mxu0 %v2787
      %v2881 = vpop.f32.mrf.mxu0
      %v2882 = vadd.f32 0.0, %v2881
      %2883 = vmatmul.f32.gmra.mxu0 %v2790
      %v2884 = vpop.f32.mrf.mxu0
      %v2885 = vadd.f32 0.0, %v2884
      %2886 = vdwg.mxu0
      %2913 = vrot.lane.b32.xlu0 %v2810, 126
      %v2914 = vpop.permute.xlu0 %2913
      %2915 = vrot.lane.b32.xlu0 %v2813, 126
      %v2916 = vpop.permute.xlu0 %2915
      %2917 = vrot.lane.b32.xlu0 %v2816, 126
      %v2918 = vpop.permute.xlu0 %2917
      %2919 = vrot.lane.b32.xlu0 %v2819, 126
      %v2920 = vpop.permute.xlu0 %2919
      %2921 = vrot.lane.b32.xlu0 %v2822, 126
      %v2922 = vpop.permute.xlu0 %2921
      %2923 = vrot.lane.b32.xlu0 %v2825, 126
      %v2924 = vpop.permute.xlu0 %2923
      %2925 = vrot.lane.b32.xlu0 %v2828, 126
      %v2926 = vpop.permute.xlu0 %2925
      %2927 = vrot.lane.b32.xlu0 %v2831, 126
      %v2928 = vpop.permute.xlu0 %2927
      %2929 = vrot.lane.b32.xlu0 %v2834, 126
      %v2930 = vpop.permute.xlu0 %2929
      %2931 = vrot.lane.b32.xlu0 %v2837, 126
      %v2932 = vpop.permute.xlu0 %2931
      %2933 = vrot.lane.b32.xlu0 %v2840, 126
      %v2934 = vpop.permute.xlu0 %2933
      %2935 = vrot.lane.b32.xlu0 %v2843, 126
      %v2936 = vpop.permute.xlu0 %2935
      %2937 = vrot.lane.b32.xlu0 %v2846, 126
      %v2938 = vpop.permute.xlu0 %2937
      %2939 = vrot.lane.b32.xlu0 %v2849, 126
      %v2940 = vpop.permute.xlu0 %2939
      %2941 = vrot.lane.b32.xlu0 %v2852, 126
      %v2942 = vpop.permute.xlu0 %2941
      %2943 = vrot.lane.b32.xlu0 %v2855, 126
      %v2944 = vpop.permute.xlu0 %2943
      %2945 = vrot.lane.b32.xlu0 %v2858, 126
      %v2946 = vpop.permute.xlu0 %2945
      %2947 = vrot.lane.b32.xlu0 %v2861, 126
      %v2948 = vpop.permute.xlu0 %2947
      %2949 = vrot.lane.b32.xlu0 %v2864, 126
      %v2950 = vpop.permute.xlu0 %2949
      %2951 = vrot.lane.b32.xlu0 %v2867, 126
      %v2952 = vpop.permute.xlu0 %2951
      %2953 = vrot.lane.b32.xlu0 %v2870, 126
      %v2954 = vpop.permute.xlu0 %2953
      %2955 = vrot.lane.b32.xlu0 %v2873, 126
      %v2956 = vpop.permute.xlu0 %2955
      %2957 = vrot.lane.b32.xlu0 %v2876, 126
      %v2958 = vpop.permute.xlu0 %2957
      %2959 = vrot.lane.b32.xlu0 %v2879, 126
      %v2960 = vpop.permute.xlu0 %2959
      %2961 = vrot.lane.b32.xlu0 %v2882, 126
      %v2962 = vpop.permute.xlu0 %2961
      %2963 = vrot.lane.b32.xlu0 %v2885, 126
      %v2964 = vpop.permute.xlu0 %2963
      %v2991 = vadd.f32 %v2661, %v2914
      %v2992 = vadd.f32 %v2662, %v2916
      %v2993 = vadd.f32 %v2663, %v2918
      %v2994 = vadd.f32 %v2664, %v2920
      %v2995 = vadd.f32 %v2665, %v2922
      %v2996 = vadd.f32 %v2666, %v2924
      %v2997 = vadd.f32 %v2667, %v2926
      %v2998 = vadd.f32 %v2668, %v2928
      %v2999 = vadd.f32 %v2669, %v2930
      %v3000 = vadd.f32 %v2670, %v2932
      %v3001 = vadd.f32 %v2671, %v2934
      %v3002 = vadd.f32 %v2672, %v2936
      %v3003 = vadd.f32 %v2673, %v2938
      %v3004 = vadd.f32 %v2674, %v2940
      %v3005 = vadd.f32 %v2675, %v2942
      %v3006 = vadd.f32 %v2676, %v2944
      %v3007 = vadd.f32 %v2677, %v2946
      %v3008 = vadd.f32 %v2678, %v2948
      %v3009 = vadd.f32 %v2679, %v2950
      %v3010 = vadd.f32 %v2680, %v2952
      %v3011 = vadd.f32 %v2681, %v2954
      %v3012 = vadd.f32 %v2682, %v2956
      %v3013 = vadd.f32 %v2683, %v2958
      %v3014 = vadd.f32 %v2684, %v2960
      %v3015 = vadd.f32 %v2685, %v2962
      %v3016 = vadd.f32 %v2686, %v2964
      %v3017 = vmax.f32 %v2991, 0.0
      %v3018 = vmax.f32 %v2992, 0.0
      %v3019 = vmax.f32 %v2993, 0.0
      %v3020 = vmax.f32 %v2994, 0.0
      %v3021 = vmax.f32 %v2995, 0.0
      %v3022 = vmax.f32 %v2996, 0.0
      %v3023 = vmax.f32 %v2997, 0.0
      %v3024 = vmax.f32 %v2998, 0.0
      %v3025 = vmax.f32 %v2999, 0.0
      %v3026 = vmax.f32 %v3000, 0.0
      %v3027 = vmax.f32 %v3001, 0.0
      %v3028 = vmax.f32 %v3002, 0.0
      %v3029 = vmax.f32 %v3003, 0.0
      %v3030 = vmax.f32 %v3004, 0.0
      %v3031 = vmax.f32 %v3005, 0.0
      %v3032 = vmax.f32 %v3006, 0.0
      %v3033 = vmax.f32 %v3007, 0.0
      %v3034 = vmax.f32 %v3008, 0.0
      %v3035 = vmax.f32 %v3009, 0.0
      %v3036 = vmax.f32 %v3010, 0.0
      %v3037 = vmax.f32 %v3011, 0.0
      %v3038 = vmax.f32 %v3012, 0.0
      %v3039 = vmax.f32 %v3013, 0.0
      %v3040 = vmax.f32 %v3014, 0.0
      %v3041 = vmax.f32 %v3015, 0.0
      %v3042 = vmax.f32 %v3016, 0.0
      %v3043 = vld [vmem:[%s7] sm:$0xff]
      %v3044 = vld [vmem:[%s7 + $0x8] sm:$0xff]
      %v3045 = vld [vmem:[%s7 + $0x10] sm:$0xff]
      %v3046 = vld [vmem:[%s7 + $0x18] sm:$0xff]
      %v3047 = vld [vmem:[%s7 + $0x20] sm:$0xff]
      %v3048 = vld [vmem:[%s7 + $0x28] sm:$0xff]
      %v3049 = vld [vmem:[%s7 + $0x30] sm:$0xff]
      %v3050 = vld [vmem:[%s7 + $0x38] sm:$0xff]
      %v3051 = vld [vmem:[%s7 + $0x40] sm:$0xff]
      %v3052 = vld [vmem:[%s7 + $0x48] sm:$0xff]
      %v3053 = vld [vmem:[%s7 + $0x50] sm:$0xff]
      %v3054 = vld [vmem:[%s7 + $0x58] sm:$0xff]
      %v3055 = vld [vmem:[%s7 + $0x60] sm:$0xff]
      %v3056 = vld [vmem:[%s7 + $0x68] sm:$0xff]
      %v3057 = vld [vmem:[%s7 + $0x70] sm:$0xff]
      %v3058 = vld [vmem:[%s7 + $0x78] sm:$0xff]
      %v3059 = vld [vmem:[%s7 + $0x80] sm:$0xff]
      %v3060 = vld [vmem:[%s7 + $0x88] sm:$0xff]
      %v3061 = vld [vmem:[%s7 + $0x90] sm:$0xff]
      %v3062 = vld [vmem:[%s7 + $0x98] sm:$0xff]
      %v3063 = vld [vmem:[%s7 + $0xa0] sm:$0xff]
      %v3064 = vld [vmem:[%s7 + $0xa8] sm:$0xff]
      %v3065 = vld [vmem:[%s7 + $0xb0] sm:$0xff]
      %v3066 = vld [vmem:[%s7 + $0xb8] sm:$0xff]
      %vm3067 = vcmask 654336
      %v3069 = vsel %vm3067, %v3044, 0
      %v3072 = vsel %vm3067, %v3046, 0
      %v3075 = vsel %vm3067, %v3048, 0
      %v3078 = vsel %vm3067, %v3050, 0
      %v3081 = vsel %vm3067, %v3052, 0
      %v3084 = vsel %vm3067, %v3054, 0
      %v3087 = vsel %vm3067, %v3056, 0
      %v3090 = vsel %vm3067, %v3058, 0
      %v3093 = vsel %vm3067, %v3060, 0
      %v3096 = vsel %vm3067, %v3062, 0
      %v3099 = vsel %vm3067, %v3064, 0
      %v3102 = vsel %vm3067, %v3066, 0
      %3104 = vmatpush.msra.mxu0 %v3032
      %3105 = vmatpush.msra.mxu0 %v3031
      %3106 = vmatpush.msra.mxu0 %v3030
      %3107 = vmatpush.msra.mxu0 %v3029
      %3108 = vmatpush.msra.mxu0 %v3028
      %3109 = vmatpush.msra.mxu0 %v3027
      %3110 = vmatpush.msra.mxu0 %v3026
      %3111 = vmatpush.msra.mxu0 %v3025
      %3112 = vmatpush.msra.mxu0 %v3024
      %3113 = vmatpush.msra.mxu0 %v3023
      %3114 = vmatpush.msra.mxu0 %v3022
      %3115 = vmatpush.msra.mxu0 %v3021
      %3116 = vmatpush.msra.mxu0 %v3020
      %3117 = vmatpush.msra.mxu0 %v3019
      %3118 = vmatpush.msra.mxu0 %v3018
      %3119 = vmatpush.msra.mxu0 %v3017
      %3120 = vmatmul.f32.gmra.mxu0 %v3043
      %v3121 = vpop.f32.mrf.mxu0
      %v3122 = vadd.f32 0.0, %v3121
      %3123 = vmatmul.f32.gmra.mxu0 %v3045
      %v3124 = vpop.f32.mrf.mxu0
      %v3125 = vadd.f32 0.0, %v3124
      %3126 = vmatmul.f32.gmra.mxu0 %v3047
      %v3127 = vpop.f32.mrf.mxu0
      %v3128 = vadd.f32 0.0, %v3127
      %3129 = vmatmul.f32.gmra.mxu0 %v3049
      %v3130 = vpop.f32.mrf.mxu0
      %v3131 = vadd.f32 0.0, %v3130
      %3132 = vmatmul.f32.gmra.mxu0 %v3051
      %v3133 = vpop.f32.mrf.mxu0
      %v3134 = vadd.f32 0.0, %v3133
      %3135 = vmatmul.f32.gmra.mxu0 %v3053
      %v3136 = vpop.f32.mrf.mxu0
      %v3137 = vadd.f32 0.0, %v3136
      %3138 = vmatmul.f32.gmra.mxu0 %v3055
      %v3139 = vpop.f32.mrf.mxu0
      %v3140 = vadd.f32 0.0, %v3139
      %3141 = vmatmul.f32.gmra.mxu0 %v3057
      %v3142 = vpop.f32.mrf.mxu0
      %v3143 = vadd.f32 0.0, %v3142
      %3144 = vmatmul.f32.gmra.mxu0 %v3059
      %v3145 = vpop.f32.mrf.mxu0
      %v3146 = vadd.f32 0.0, %v3145
      %3147 = vmatmul.f32.gmra.mxu0 %v3061
      %v3148 = vpop.f32.mrf.mxu0
      %v3149 = vadd.f32 0.0, %v3148
      %3150 = vmatmul.f32.gmra.mxu0 %v3063
      %v3151 = vpop.f32.mrf.mxu0
      %v3152 = vadd.f32 0.0, %v3151
      %3153 = vmatmul.f32.gmra.mxu0 %v3065
      %v3154 = vpop.f32.mrf.mxu0
      %v3155 = vadd.f32 0.0, %v3154
      %3156 = vdwg.mxu0
      %3157 = vmatpush.msra.mxu0 0.0
      %3158 = vmatpush.msra.mxu0 0.0
      %3159 = vmatpush.msra.mxu0 0.0
      %3160 = vmatpush.msra.mxu0 0.0
      %3161 = vmatpush.msra.mxu0 0.0
      %3162 = vmatpush.msra.mxu0 0.0
      %3163 = vmatpush.msra.mxu0 %v3042
      %3164 = vmatpush.msra.mxu0 %v3041
      %3165 = vmatpush.msra.mxu0 %v3040
      %3166 = vmatpush.msra.mxu0 %v3039
      %3167 = vmatpush.msra.mxu0 %v3038
      %3168 = vmatpush.msra.mxu0 %v3037
      %3169 = vmatpush.msra.mxu0 %v3036
      %3170 = vmatpush.msra.mxu0 %v3035
      %3171 = vmatpush.msra.mxu0 %v3034
      %3172 = vmatpush.msra.mxu0 %v3033
      %3173 = vmatmul.f32.gmra.mxu0 %v3069
      %v3174 = vpop.f32.mrf.mxu0
      %v3175 = vadd.f32 %v3122, %v3174
      %3176 = vmatmul.f32.gmra.mxu0 %v3072
      %v3177 = vpop.f32.mrf.mxu0
      %v3178 = vadd.f32 %v3125, %v3177
      %3179 = vmatmul.f32.gmra.mxu0 %v3075
      %v3180 = vpop.f32.mrf.mxu0
      %v3181 = vadd.f32 %v3128, %v3180
      %3182 = vmatmul.f32.gmra.mxu0 %v3078
      %v3183 = vpop.f32.mrf.mxu0
      %v3184 = vadd.f32 %v3131, %v3183
      %3185 = vmatmul.f32.gmra.mxu0 %v3081
      %v3186 = vpop.f32.mrf.mxu0
      %v3187 = vadd.f32 %v3134, %v3186
      %3188 = vmatmul.f32.gmra.mxu0 %v3084
      %v3189 = vpop.f32.mrf.mxu0
      %v3190 = vadd.f32 %v3137, %v3189
      %3191 = vmatmul.f32.gmra.mxu0 %v3087
      %v3192 = vpop.f32.mrf.mxu0
      %v3193 = vadd.f32 %v3140, %v3192
      %3194 = vmatmul.f32.gmra.mxu0 %v3090
      %v3195 = vpop.f32.mrf.mxu0
      %v3196 = vadd.f32 %v3143, %v3195
      %3197 = vmatmul.f32.gmra.mxu0 %v3093
      %v3198 = vpop.f32.mrf.mxu0
      %v3199 = vadd.f32 %v3146, %v3198
      %3200 = vmatmul.f32.gmra.mxu0 %v3096
      %v3201 = vpop.f32.mrf.mxu0
      %v3202 = vadd.f32 %v3149, %v3201
      %3203 = vmatmul.f32.gmra.mxu0 %v3099
      %v3204 = vpop.f32.mrf.mxu0
      %v3205 = vadd.f32 %v3152, %v3204
      %3206 = vmatmul.f32.gmra.mxu0 %v3102
      %v3207 = vpop.f32.mrf.mxu0
      %v3208 = vadd.f32 %v3155, %v3207
      %3209 = vdwg.mxu0
      %s3210 = scalar_lea.vmem %s7, 192
      %v3211 = vld [vmem:[%s3210] sm:$0xff]
      %v3212 = vld [vmem:[%s3210 + $0x8] sm:$0xff]
      %v3213 = vld [vmem:[%s3210 + $0x10] sm:$0xff]
      %v3214 = vld [vmem:[%s3210 + $0x18] sm:$0xff]
      %v3215 = vld [vmem:[%s3210 + $0x20] sm:$0xff]
      %v3216 = vld [vmem:[%s3210 + $0x28] sm:$0xff]
      %v3217 = vld [vmem:[%s3210 + $0x30] sm:$0xff]
      %v3218 = vld [vmem:[%s3210 + $0x38] sm:$0xff]
      %v3219 = vld [vmem:[%s3210 + $0x40] sm:$0xff]
      %v3220 = vld [vmem:[%s3210 + $0x48] sm:$0xff]
      %v3221 = vld [vmem:[%s3210 + $0x50] sm:$0xff]
      %v3222 = vld [vmem:[%s3210 + $0x58] sm:$0xff]
      %v3223 = vld [vmem:[%s3210 + $0x60] sm:$0xff]
      %v3224 = vld [vmem:[%s3210 + $0x68] sm:$0xff]
      %v3225 = vld [vmem:[%s3210 + $0x70] sm:$0xff]
      %v3226 = vld [vmem:[%s3210 + $0x78] sm:$0xff]
      %v3227 = vld [vmem:[%s3210 + $0x80] sm:$0xff]
      %v3228 = vld [vmem:[%s3210 + $0x88] sm:$0xff]
      %v3229 = vld [vmem:[%s3210 + $0x90] sm:$0xff]
      %v3230 = vld [vmem:[%s3210 + $0x98] sm:$0xff]
      %v3231 = vld [vmem:[%s3210 + $0xa0] sm:$0xff]
      %v3232 = vld [vmem:[%s3210 + $0xa8] sm:$0xff]
      %v3233 = vld [vmem:[%s3210 + $0xb0] sm:$0xff]
      %v3234 = vld [vmem:[%s3210 + $0xb8] sm:$0xff]
      %v3236 = vsel %vm3067, %v3212, 0
      %v3239 = vsel %vm3067, %v3214, 0
      %v3242 = vsel %vm3067, %v3216, 0
      %v3245 = vsel %vm3067, %v3218, 0
      %v3248 = vsel %vm3067, %v3220, 0
      %v3251 = vsel %vm3067, %v3222, 0
      %v3254 = vsel %vm3067, %v3224, 0
      %v3257 = vsel %vm3067, %v3226, 0
      %v3260 = vsel %vm3067, %v3228, 0
      %v3263 = vsel %vm3067, %v3230, 0
      %v3266 = vsel %vm3067, %v3232, 0
      %v3269 = vsel %vm3067, %v3234, 0
      %3271 = vmatpush.msra.mxu0 %v3032
      %3272 = vmatpush.msra.mxu0 %v3031
      %3273 = vmatpush.msra.mxu0 %v3030
      %3274 = vmatpush.msra.mxu0 %v3029
      %3275 = vmatpush.msra.mxu0 %v3028
      %3276 = vmatpush.msra.mxu0 %v3027
      %3277 = vmatpush.msra.mxu0 %v3026
      %3278 = vmatpush.msra.mxu0 %v3025
      %3279 = vmatpush.msra.mxu0 %v3024
      %3280 = vmatpush.msra.mxu0 %v3023
      %3281 = vmatpush.msra.mxu0 %v3022
      %3282 = vmatpush.msra.mxu0 %v3021
      %3283 = vmatpush.msra.mxu0 %v3020
      %3284 = vmatpush.msra.mxu0 %v3019
      %3285 = vmatpush.msra.mxu0 %v3018
      %3286 = vmatpush.msra.mxu0 %v3017
      %3287 = vmatmul.f32.gmra.mxu0 %v3211
      %v3288 = vpop.f32.mrf.mxu0
      %v3289 = vadd.f32 0.0, %v3288
      %3290 = vmatmul.f32.gmra.mxu0 %v3213
      %v3291 = vpop.f32.mrf.mxu0
      %v3292 = vadd.f32 0.0, %v3291
      %3293 = vmatmul.f32.gmra.mxu0 %v3215
      %v3294 = vpop.f32.mrf.mxu0
      %v3295 = vadd.f32 0.0, %v3294
      %3296 = vmatmul.f32.gmra.mxu0 %v3217
      %v3297 = vpop.f32.mrf.mxu0
      %v3298 = vadd.f32 0.0, %v3297
      %3299 = vmatmul.f32.gmra.mxu0 %v3219
      %v3300 = vpop.f32.mrf.mxu0
      %v3301 = vadd.f32 0.0, %v3300
      %3302 = vmatmul.f32.gmra.mxu0 %v3221
      %v3303 = vpop.f32.mrf.mxu0
      %v3304 = vadd.f32 0.0, %v3303
      %3305 = vmatmul.f32.gmra.mxu0 %v3223
      %v3306 = vpop.f32.mrf.mxu0
      %v3307 = vadd.f32 0.0, %v3306
      %3308 = vmatmul.f32.gmra.mxu0 %v3225
      %v3309 = vpop.f32.mrf.mxu0
      %v3310 = vadd.f32 0.0, %v3309
      %3311 = vmatmul.f32.gmra.mxu0 %v3227
      %v3312 = vpop.f32.mrf.mxu0
      %v3313 = vadd.f32 0.0, %v3312
      %3314 = vmatmul.f32.gmra.mxu0 %v3229
      %v3315 = vpop.f32.mrf.mxu0
      %v3316 = vadd.f32 0.0, %v3315
      %3317 = vmatmul.f32.gmra.mxu0 %v3231
      %v3318 = vpop.f32.mrf.mxu0
      %v3319 = vadd.f32 0.0, %v3318
      %3320 = vmatmul.f32.gmra.mxu0 %v3233
      %v3321 = vpop.f32.mrf.mxu0
      %v3322 = vadd.f32 0.0, %v3321
      %3323 = vdwg.mxu0
      %3324 = vmatpush.msra.mxu0 0.0
      %3325 = vmatpush.msra.mxu0 0.0
      %3326 = vmatpush.msra.mxu0 0.0
      %3327 = vmatpush.msra.mxu0 0.0
      %3328 = vmatpush.msra.mxu0 0.0
      %3329 = vmatpush.msra.mxu0 0.0
      %3330 = vmatpush.msra.mxu0 %v3042
      %3331 = vmatpush.msra.mxu0 %v3041
      %3332 = vmatpush.msra.mxu0 %v3040
      %3333 = vmatpush.msra.mxu0 %v3039
      %3334 = vmatpush.msra.mxu0 %v3038
      %3335 = vmatpush.msra.mxu0 %v3037
      %3336 = vmatpush.msra.mxu0 %v3036
      %3337 = vmatpush.msra.mxu0 %v3035
      %3338 = vmatpush.msra.mxu0 %v3034
      %3339 = vmatpush.msra.mxu0 %v3033
      %3340 = vmatmul.f32.gmra.mxu0 %v3236
      %v3341 = vpop.f32.mrf.mxu0
      %v3342 = vadd.f32 %v3289, %v3341
      %3343 = vmatmul.f32.gmra.mxu0 %v3239
      %v3344 = vpop.f32.mrf.mxu0
      %v3345 = vadd.f32 %v3292, %v3344
      %3346 = vmatmul.f32.gmra.mxu0 %v3242
      %v3347 = vpop.f32.mrf.mxu0
      %v3348 = vadd.f32 %v3295, %v3347
      %3349 = vmatmul.f32.gmra.mxu0 %v3245
      %v3350 = vpop.f32.mrf.mxu0
      %v3351 = vadd.f32 %v3298, %v3350
      %3352 = vmatmul.f32.gmra.mxu0 %v3248
      %v3353 = vpop.f32.mrf.mxu0
      %v3354 = vadd.f32 %v3301, %v3353
      %3355 = vmatmul.f32.gmra.mxu0 %v3251
      %v3356 = vpop.f32.mrf.mxu0
      %v3357 = vadd.f32 %v3304, %v3356
      %3358 = vmatmul.f32.gmra.mxu0 %v3254
      %v3359 = vpop.f32.mrf.mxu0
      %v3360 = vadd.f32 %v3307, %v3359
      %3361 = vmatmul.f32.gmra.mxu0 %v3257
      %v3362 = vpop.f32.mrf.mxu0
      %v3363 = vadd.f32 %v3310, %v3362
      %3364 = vmatmul.f32.gmra.mxu0 %v3260
      %v3365 = vpop.f32.mrf.mxu0
      %v3366 = vadd.f32 %v3313, %v3365
      %3367 = vmatmul.f32.gmra.mxu0 %v3263
      %v3368 = vpop.f32.mrf.mxu0
      %v3369 = vadd.f32 %v3316, %v3368
      %3370 = vmatmul.f32.gmra.mxu0 %v3266
      %v3371 = vpop.f32.mrf.mxu0
      %v3372 = vadd.f32 %v3319, %v3371
      %3373 = vmatmul.f32.gmra.mxu0 %v3269
      %v3374 = vpop.f32.mrf.mxu0
      %v3375 = vadd.f32 %v3322, %v3374
      %3376 = vdwg.mxu0
      %v3377 = vmax.f32 %v3175, %v3342
      %v3378 = vmax.f32 %v3178, %v3345
      %v3379 = vmax.f32 %v3181, %v3348
      %v3380 = vmax.f32 %v3184, %v3351
      %v3381 = vmax.f32 %v3187, %v3354
      %v3382 = vmax.f32 %v3190, %v3357
      %v3383 = vmax.f32 %v3193, %v3360
      %v3384 = vmax.f32 %v3196, %v3363
      %v3385 = vmax.f32 %v3199, %v3366
      %v3386 = vmax.f32 %v3202, %v3369
      %v3387 = vmax.f32 %v3205, %v3372
      %v3388 = vmax.f32 %v3208, %v3375
      %v3389 = vld [vmem:[%s8] sm:$0xff]
      %v3390 = vld [vmem:[%s8 + $0x8] sm:$0x1f]
      %vm3391 = vcmask 105472
      %v3393 = vsel %vm3391, %v3377, 0
      %v3396 = vsel %vm3391, %v3378, 0
      %v3399 = vsel %vm3391, %v3379, 0
      %v3402 = vsel %vm3391, %v3380, 0
      %v3405 = vsel %vm3391, %v3381, 0
      %v3408 = vsel %vm3391, %v3382, 0
      %v3411 = vsel %vm3391, %v3383, 0
      %v3414 = vsel %vm3391, %v3384, 0
      %v3417 = vsel %vm3391, %v3385, 0
      %v3420 = vsel %vm3391, %v3386, 0
      %v3423 = vsel %vm3391, %v3387, 0
      %v3426 = vsel %vm3391, %v3388, 0
      %vm3428 = vcmask 1044480
      %v3430 = vsel %vm3428, %v3390, 0
      %3432 = vmatpush.msra.mxu0 0.0
      %3433 = vmatpush.msra.mxu0 0.0
      %3434 = vmatpush.msra.mxu0 0.0
      %3435 = vmatpush.msra.mxu0 0.0
      %3436 = vmatpush.msra.mxu0 0.0
      %3437 = vmatpush.msra.mxu0 0.0
      %3438 = vmatpush.msra.mxu0 0.0
      %3439 = vmatpush.msra.mxu0 0.0
      %3440 = vmatpush.msra.mxu0 0.0
      %3441 = vmatpush.msra.mxu0 0.0
      %3442 = vmatpush.msra.mxu0 0.0
      %3443 = vmatpush.msra.mxu0 0.0
      %3444 = vmatpush.msra.mxu0 0.0
      %3445 = vmatpush.msra.mxu0 0.0
      %3446 = vmatpush.msra.mxu0 %v3430
      %3447 = vmatpush.msra.mxu0 %v3389
      %3448 = vmatmul.f32.gmra.mxu0 %v3393
      %v3449 = vpop.f32.mrf.mxu0
      %v3450 = vadd.f32 0.0, %v3449
      %3451 = vmatmul.f32.gmra.mxu0 %v3396
      %v3452 = vpop.f32.mrf.mxu0
      %v3453 = vadd.f32 0.0, %v3452
      %3454 = vmatmul.f32.gmra.mxu0 %v3399
      %v3455 = vpop.f32.mrf.mxu0
      %v3456 = vadd.f32 0.0, %v3455
      %3457 = vmatmul.f32.gmra.mxu0 %v3402
      %v3458 = vpop.f32.mrf.mxu0
      %v3459 = vadd.f32 0.0, %v3458
      %3460 = vmatmul.f32.gmra.mxu0 %v3405
      %v3461 = vpop.f32.mrf.mxu0
      %v3462 = vadd.f32 0.0, %v3461
      %3463 = vmatmul.f32.gmra.mxu0 %v3408
      %v3464 = vpop.f32.mrf.mxu0
      %v3465 = vadd.f32 0.0, %v3464
      %3466 = vmatmul.f32.gmra.mxu0 %v3411
      %v3467 = vpop.f32.mrf.mxu0
      %v3468 = vadd.f32 0.0, %v3467
      %3469 = vmatmul.f32.gmra.mxu0 %v3414
      %v3470 = vpop.f32.mrf.mxu0
      %v3471 = vadd.f32 0.0, %v3470
      %3472 = vmatmul.f32.gmra.mxu0 %v3417
      %v3473 = vpop.f32.mrf.mxu0
      %v3474 = vadd.f32 0.0, %v3473
      %3475 = vmatmul.f32.gmra.mxu0 %v3420
      %v3476 = vpop.f32.mrf.mxu0
      %v3477 = vadd.f32 0.0, %v3476
      %3478 = vmatmul.f32.gmra.mxu0 %v3423
      %v3479 = vpop.f32.mrf.mxu0
      %v3480 = vadd.f32 0.0, %v3479
      %3481 = vmatmul.f32.gmra.mxu0 %v3426
      %v3482 = vpop.f32.mrf.mxu0
      %v3483 = vadd.f32 0.0, %v3482
      %3484 = vdwg.mxu0
      %s3485 = scalar_lea.vmem %s8, 16
      %v3486 = vld [vmem:[%s3485] sm:$0xff]
      %v3487 = vld [vmem:[%s3485 + $0x8] sm:$0x1f]
      %v3489 = vsel %vm3428, %v3487, 0
      %3491 = vmatpush.msra.mxu0 0.0
      %3492 = vmatpush.msra.mxu0 0.0
      %3493 = vmatpush.msra.mxu0 0.0
      %3494 = vmatpush.msra.mxu0 0.0
      %3495 = vmatpush.msra.mxu0 0.0
      %3496 = vmatpush.msra.mxu0 0.0
      %3497 = vmatpush.msra.mxu0 0.0
      %3498 = vmatpush.msra.mxu0 0.0
      %3499 = vmatpush.msra.mxu0 0.0
      %3500 = vmatpush.msra.mxu0 0.0
      %3501 = vmatpush.msra.mxu0 0.0
      %3502 = vmatpush.msra.mxu0 0.0
      %3503 = vmatpush.msra.mxu0 0.0
      %3504 = vmatpush.msra.mxu0 0.0
      %3505 = vmatpush.msra.mxu0 %v3489
      %3506 = vmatpush.msra.mxu0 %v3486
      %3507 = vmatmul.f32.gmra.mxu0 %v3393
      %v3508 = vpop.f32.mrf.mxu0
      %v3509 = vadd.f32 0.0, %v3508
      %3510 = vmatmul.f32.gmra.mxu0 %v3396
      %v3511 = vpop.f32.mrf.mxu0
      %v3512 = vadd.f32 0.0, %v3511
      %3513 = vmatmul.f32.gmra.mxu0 %v3399
      %v3514 = vpop.f32.mrf.mxu0
      %v3515 = vadd.f32 0.0, %v3514
      %3516 = vmatmul.f32.gmra.mxu0 %v3402
      %v3517 = vpop.f32.mrf.mxu0
      %v3518 = vadd.f32 0.0, %v3517
      %3519 = vmatmul.f32.gmra.mxu0 %v3405
      %v3520 = vpop.f32.mrf.mxu0
      %v3521 = vadd.f32 0.0, %v3520
      %3522 = vmatmul.f32.gmra.mxu0 %v3408
      %v3523 = vpop.f32.mrf.mxu0
      %v3524 = vadd.f32 0.0, %v3523
      %3525 = vmatmul.f32.gmra.mxu0 %v3411
      %v3526 = vpop.f32.mrf.mxu0
      %v3527 = vadd.f32 0.0, %v3526
      %3528 = vmatmul.f32.gmra.mxu0 %v3414
      %v3529 = vpop.f32.mrf.mxu0
      %v3530 = vadd.f32 0.0, %v3529
      %3531 = vmatmul.f32.gmra.mxu0 %v3417
      %v3532 = vpop.f32.mrf.mxu0
      %v3533 = vadd.f32 0.0, %v3532
      %3534 = vmatmul.f32.gmra.mxu0 %v3420
      %v3535 = vpop.f32.mrf.mxu0
      %v3536 = vadd.f32 0.0, %v3535
      %3537 = vmatmul.f32.gmra.mxu0 %v3423
      %v3538 = vpop.f32.mrf.mxu0
      %v3539 = vadd.f32 0.0, %v3538
      %3540 = vmatmul.f32.gmra.mxu0 %v3426
      %v3541 = vpop.f32.mrf.mxu0
      %v3542 = vadd.f32 0.0, %v3541
      %3543 = vdwg.mxu0
      %v3544 = vmax.f32 %v3450, %v3509
      %v3545 = vmax.f32 %v3453, %v3512
      %v3546 = vmax.f32 %v3456, %v3515
      %v3547 = vmax.f32 %v3459, %v3518
      %v3548 = vmax.f32 %v3462, %v3521
      %v3549 = vmax.f32 %v3465, %v3524
      %v3550 = vmax.f32 %v3468, %v3527
      %v3551 = vmax.f32 %v3471, %v3530
      %v3552 = vmax.f32 %v3474, %v3533
      %v3553 = vmax.f32 %v3477, %v3536
      %v3554 = vmax.f32 %v3480, %v3539
      %v3555 = vmax.f32 %v3483, %v3542
      %v3556 = vld [vmem:[%s10] sm:$0xff]
      %v3557 = vld [vmem:[%s10 + $0x8] sm:$0xff]
      %v3558 = vld [vmem:[%s10 + $0x10] sm:$0xff]
      %v3559 = vld [vmem:[%s10 + $0x18] sm:$0xff]
      %v3560 = vld [vmem:[%s10 + $0x20] sm:$0xff]
      %v3561 = vld [vmem:[%s10 + $0x28] sm:$0xff]
      %v3562 = vld [vmem:[%s10 + $0x30] sm:$0xff]
      %v3563 = vld [vmem:[%s10 + $0x38] sm:$0xff]
      %v3564 = vld [vmem:[%s10 + $0x40] sm:$0xff]
      %v3565 = vld [vmem:[%s10 + $0x48] sm:$0xff]
      %v3566 = vld [vmem:[%s10 + $0x50] sm:$0xff]
      %v3567 = vld [vmem:[%s10 + $0x58] sm:$0xff]
      %v3568 = vld [vmem:[%s10 + $0x60] sm:$0xff]
      %v3569 = vld [vmem:[%s10 + $0x68] sm:$0xff]
      %v3570 = vld [vmem:[%s10 + $0x70] sm:$0xff]
      %v3571 = vld [vmem:[%s9] sm:$0xff]
      %v3572 = vld [vmem:[%s9 + $0x8] sm:$0xff]
      %v3573 = vld [vmem:[%s9 + $0x10] sm:$0xff]
      %v3574 = vld [vmem:[%s9 + $0x18] sm:$0xff]
      %v3575 = vld [vmem:[%s9 + $0x20] sm:$0xff]
      %v3576 = vld [vmem:[%s9 + $0x28] sm:$0xff]
      %v3577 = vld [vmem:[%s9 + $0x30] sm:$0xff]
      %v3578 = vld [vmem:[%s9 + $0x38] sm:$0xff]
      %v3579 = vld [vmem:[%s9 + $0x40] sm:$0xff]
      %v3580 = vld [vmem:[%s9 + $0x48] sm:$0xff]
      %v3581 = vld [vmem:[%s9 + $0x50] sm:$0xff]
      %v3582 = vld [vmem:[%s9 + $0x58] sm:$0xff]
      %v3583 = vld [vmem:[%s9 + $0x60] sm:$0xff]
      %v3584 = vld [vmem:[%s9 + $0x68] sm:$0xff]
      %v3585 = vld [vmem:[%s9 + $0x70] sm:$0xff]
      %vm3586 = vcmask 785408
      %v3588 = vsel %vm3586, %v3571, 0
      %v3591 = vsel %vm3586, %v3572, 0
      %v3594 = vsel %vm3586, %v3573, 0
      %v3597 = vsel %vm3586, %v3574, 0
      %v3600 = vsel %vm3586, %v3575, 0
      %v3603 = vsel %vm3586, %v3576, 0
      %v3606 = vsel %vm3586, %v3577, 0
      %v3609 = vsel %vm3586, %v3578, 0
      %v3612 = vsel %vm3586, %v3579, 0
      %v3615 = vsel %vm3586, %v3580, 0
      %v3618 = vsel %vm3586, %v3581, 0
      %v3621 = vsel %vm3586, %v3582, 0
      %v3624 = vsel %vm3586, %v3583, 0
      %v3627 = vsel %vm3586, %v3584, 0
      %v3630 = vsel %vm3586, %v3585, 0
      %3632 = vmatpush.msra.mxu0 0.0
      %3633 = vmatpush.msra.mxu0 0.0
      %3634 = vmatpush.msra.mxu0 0.0
      %3635 = vmatpush.msra.mxu0 0.0
      %3636 = vmatpush.msra.mxu0 %v3555
      %3637 = vmatpush.msra.mxu0 %v3554
      %3638 = vmatpush.msra.mxu0 %v3553
      %3639 = vmatpush.msra.mxu0 %v3552
      %3640 = vmatpush.msra.mxu0 %v3551
      %3641 = vmatpush.msra.mxu0 %v3550
      %3642 = vmatpush.msra.mxu0 %v3549
      %3643 = vmatpush.msra.mxu0 %v3548
      %3644 = vmatpush.msra.mxu0 %v3547
      %3645 = vmatpush.msra.mxu0 %v3546
      %3646 = vmatpush.msra.mxu0 %v3545
      %3647 = vmatpush.msra.mxu0 %v3544
      %3648 = vmatmul.f32.gmra.mxu0 %v3588
      %v3649 = vpop.f32.mrf.mxu0
      %v3650 = vadd.f32 0.0, %v3649
      %3651 = vmatmul.f32.gmra.mxu0 %v3591
      %v3652 = vpop.f32.mrf.mxu0
      %v3653 = vadd.f32 0.0, %v3652
      %3654 = vmatmul.f32.gmra.mxu0 %v3594
      %v3655 = vpop.f32.mrf.mxu0
      %v3656 = vadd.f32 0.0, %v3655
      %3657 = vmatmul.f32.gmra.mxu0 %v3597
      %v3658 = vpop.f32.mrf.mxu0
      %v3659 = vadd.f32 0.0, %v3658
      %3660 = vmatmul.f32.gmra.mxu0 %v3600
      %v3661 = vpop.f32.mrf.mxu0
      %v3662 = vadd.f32 0.0, %v3661
      %3663 = vmatmul.f32.gmra.mxu0 %v3603
      %v3664 = vpop.f32.mrf.mxu0
      %v3665 = vadd.f32 0.0, %v3664
      %3666 = vmatmul.f32.gmra.mxu0 %v3606
      %v3667 = vpop.f32.mrf.mxu0
      %v3668 = vadd.f32 0.0, %v3667
      %3669 = vmatmul.f32.gmra.mxu0 %v3609
      %v3670 = vpop.f32.mrf.mxu0
      %v3671 = vadd.f32 0.0, %v3670
      %3672 = vmatmul.f32.gmra.mxu0 %v3612
      %v3673 = vpop.f32.mrf.mxu0
      %v3674 = vadd.f32 0.0, %v3673
      %3675 = vmatmul.f32.gmra.mxu0 %v3615
      %v3676 = vpop.f32.mrf.mxu0
      %v3677 = vadd.f32 0.0, %v3676
      %3678 = vmatmul.f32.gmra.mxu0 %v3618
      %v3679 = vpop.f32.mrf.mxu0
      %v3680 = vadd.f32 0.0, %v3679
      %3681 = vmatmul.f32.gmra.mxu0 %v3621
      %v3682 = vpop.f32.mrf.mxu0
      %v3683 = vadd.f32 0.0, %v3682
      %3684 = vmatmul.f32.gmra.mxu0 %v3624
      %v3685 = vpop.f32.mrf.mxu0
      %v3686 = vadd.f32 0.0, %v3685
      %3687 = vmatmul.f32.gmra.mxu0 %v3627
      %v3688 = vpop.f32.mrf.mxu0
      %v3689 = vadd.f32 0.0, %v3688
      %3690 = vmatmul.f32.gmra.mxu0 %v3630
      %v3691 = vpop.f32.mrf.mxu0
      %v3692 = vadd.f32 0.0, %v3691
      %3693 = vdwg.mxu0
      %v3694 = vadd.f32 %v3556, %v3650
      %v3695 = vadd.f32 %v3557, %v3653
      %v3696 = vadd.f32 %v3558, %v3656
      %v3697 = vadd.f32 %v3559, %v3659
      %v3698 = vadd.f32 %v3560, %v3662
      %v3699 = vadd.f32 %v3561, %v3665
      %v3700 = vadd.f32 %v3562, %v3668
      %v3701 = vadd.f32 %v3563, %v3671
      %v3702 = vadd.f32 %v3564, %v3674
      %v3703 = vadd.f32 %v3565, %v3677
      %v3704 = vadd.f32 %v3566, %v3680
      %v3705 = vadd.f32 %v3567, %v3683
      %v3706 = vadd.f32 %v3568, %v3686
      %v3707 = vadd.f32 %v3569, %v3689
      %v3708 = vadd.f32 %v3570, %v3692
      %s3709 = scalar_lea.vmem %s9, 120
      %v3710 = vld [vmem:[%s3709] sm:$0xff]
      %v3711 = vld [vmem:[%s3709 + $0x8] sm:$0xff]
      %v3712 = vld [vmem:[%s3709 + $0x10] sm:$0xff]
      %v3713 = vld [vmem:[%s3709 + $0x18] sm:$0xff]
      %v3714 = vld [vmem:[%s3709 + $0x20] sm:$0xff]
      %v3715 = vld [vmem:[%s3709 + $0x28] sm:$0xff]
      %v3716 = vld [vmem:[%s3709 + $0x30] sm:$0xff]
      %v3717 = vld [vmem:[%s3709 + $0x38] sm:$0xff]
      %v3718 = vld [vmem:[%s3709 + $0x40] sm:$0xff]
      %v3719 = vld [vmem:[%s3709 + $0x48] sm:$0xff]
      %v3720 = vld [vmem:[%s3709 + $0x50] sm:$0xff]
      %v3721 = vld [vmem:[%s3709 + $0x58] sm:$0xff]
      %v3722 = vld [vmem:[%s3709 + $0x60] sm:$0xff]
      %v3723 = vld [vmem:[%s3709 + $0x68] sm:$0xff]
      %v3724 = vld [vmem:[%s3709 + $0x70] sm:$0xff]
      %3737 = vrot.lane.b32.xlu0 %v3544, 127
      %v3738 = vpop.permute.xlu0 %3737
      %3739 = vrot.lane.b32.xlu0 %v3545, 127
      %v3740 = vpop.permute.xlu0 %3739
      %3741 = vrot.lane.b32.xlu0 %v3546, 127
      %v3742 = vpop.permute.xlu0 %3741
      %3743 = vrot.lane.b32.xlu0 %v3547, 127
      %v3744 = vpop.permute.xlu0 %3743
      %3745 = vrot.lane.b32.xlu0 %v3548, 127
      %v3746 = vpop.permute.xlu0 %3745
      %3747 = vrot.lane.b32.xlu0 %v3549, 127
      %v3748 = vpop.permute.xlu0 %3747
      %3749 = vrot.lane.b32.xlu0 %v3550, 127
      %v3750 = vpop.permute.xlu0 %3749
      %3751 = vrot.lane.b32.xlu0 %v3551, 127
      %v3752 = vpop.permute.xlu0 %3751
      %3753 = vrot.lane.b32.xlu0 %v3552, 127
      %v3754 = vpop.permute.xlu0 %3753
      %3755 = vrot.lane.b32.xlu0 %v3553, 127
      %v3756 = vpop.permute.xlu0 %3755
      %3757 = vrot.lane.b32.xlu0 %v3554, 127
      %v3758 = vpop.permute.xlu0 %3757
      %3759 = vrot.lane.b32.xlu0 %v3555, 127
      %v3760 = vpop.permute.xlu0 %3759
      %v3774 = vsel %vm3586, %v3710, 0
      %v3777 = vsel %vm3586, %v3711, 0
      %v3780 = vsel %vm3586, %v3712, 0
      %v3783 = vsel %vm3586, %v3713, 0
      %v3786 = vsel %vm3586, %v3714, 0
      %v3789 = vsel %vm3586, %v3715, 0
      %v3792 = vsel %vm3586, %v3716, 0
      %v3795 = vsel %vm3586, %v3717, 0
      %v3798 = vsel %vm3586, %v3718, 0
      %v3801 = vsel %vm3586, %v3719, 0
      %v3804 = vsel %vm3586, %v3720, 0
      %v3807 = vsel %vm3586, %v3721, 0
      %v3810 = vsel %vm3586, %v3722, 0
      %v3813 = vsel %vm3586, %v3723, 0
      %v3816 = vsel %vm3586, %v3724, 0
      %3818 = vmatpush.msra.mxu0 0.0
      %3819 = vmatpush.msra.mxu0 0.0
      %3820 = vmatpush.msra.mxu0 0.0
      %3821 = vmatpush.msra.mxu0 0.0
      %3822 = vmatpush.msra.mxu0 %v3760
      %3823 = vmatpush.msra.mxu0 %v3758
      %3824 = vmatpush.msra.mxu0 %v3756
      %3825 = vmatpush.msra.mxu0 %v3754
      %3826 = vmatpush.msra.mxu0 %v3752
      %3827 = vmatpush.msra.mxu0 %v3750
      %3828 = vmatpush.msra.mxu0 %v3748
      %3829 = vmatpush.msra.mxu0 %v3746
      %3830 = vmatpush.msra.mxu0 %v3744
      %3831 = vmatpush.msra.mxu0 %v3742
      %3832 = vmatpush.msra.mxu0 %v3740
      %3833 = vmatpush.msra.mxu0 %v3738
      %3834 = vmatmul.f32.gmra.mxu0 %v3774
      %v3835 = vpop.f32.mrf.mxu0
      %v3836 = vadd.f32 0.0, %v3835
      %3837 = vmatmul.f32.gmra.mxu0 %v3777
      %v3838 = vpop.f32.mrf.mxu0
      %v3839 = vadd.f32 0.0, %v3838
      %3840 = vmatmul.f32.gmra.mxu0 %v3780
      %v3841 = vpop.f32.mrf.mxu0
      %v3842 = vadd.f32 0.0, %v3841
      %3843 = vmatmul.f32.gmra.mxu0 %v3783
      %v3844 = vpop.f32.mrf.mxu0
      %v3845 = vadd.f32 0.0, %v3844
      %3846 = vmatmul.f32.gmra.mxu0 %v3786
      %v3847 = vpop.f32.mrf.mxu0
      %v3848 = vadd.f32 0.0, %v3847
      %3849 = vmatmul.f32.gmra.mxu0 %v3789
      %v3850 = vpop.f32.mrf.mxu0
      %v3851 = vadd.f32 0.0, %v3850
      %3852 = vmatmul.f32.gmra.mxu0 %v3792
      %v3853 = vpop.f32.mrf.mxu0
      %v3854 = vadd.f32 0.0, %v3853
      %3855 = vmatmul.f32.gmra.mxu0 %v3795
      %v3856 = vpop.f32.mrf.mxu0
      %v3857 = vadd.f32 0.0, %v3856
      %3858 = vmatmul.f32.gmra.mxu0 %v3798
      %v3859 = vpop.f32.mrf.mxu0
      %v3860 = vadd.f32 0.0, %v3859
      %3861 = vmatmul.f32.gmra.mxu0 %v3801
      %v3862 = vpop.f32.mrf.mxu0
      %v3863 = vadd.f32 0.0, %v3862
      %3864 = vmatmul.f32.gmra.mxu0 %v3804
      %v3865 = vpop.f32.mrf.mxu0
      %v3866 = vadd.f32 0.0, %v3865
      %3867 = vmatmul.f32.gmra.mxu0 %v3807
      %v3868 = vpop.f32.mrf.mxu0
      %v3869 = vadd.f32 0.0, %v3868
      %3870 = vmatmul.f32.gmra.mxu0 %v3810
      %v3871 = vpop.f32.mrf.mxu0
      %v3872 = vadd.f32 0.0, %v3871
      %3873 = vmatmul.f32.gmra.mxu0 %v3813
      %v3874 = vpop.f32.mrf.mxu0
      %v3875 = vadd.f32 0.0, %v3874
      %3876 = vmatmul.f32.gmra.mxu0 %v3816
      %v3877 = vpop.f32.mrf.mxu0
      %v3878 = vadd.f32 0.0, %v3877
      %3879 = vdwg.mxu0
      %v3880 = vadd.f32 %v3694, %v3836
      %v3881 = vadd.f32 %v3695, %v3839
      %v3882 = vadd.f32 %v3696, %v3842
      %v3883 = vadd.f32 %v3697, %v3845
      %v3884 = vadd.f32 %v3698, %v3848
      %v3885 = vadd.f32 %v3699, %v3851
      %v3886 = vadd.f32 %v3700, %v3854
      %v3887 = vadd.f32 %v3701, %v3857
      %v3888 = vadd.f32 %v3702, %v3860
      %v3889 = vadd.f32 %v3703, %v3863
      %v3890 = vadd.f32 %v3704, %v3866
      %v3891 = vadd.f32 %v3705, %v3869
      %v3892 = vadd.f32 %v3706, %v3872
      %v3893 = vadd.f32 %v3707, %v3875
      %v3894 = vadd.f32 %v3708, %v3878
      %s3895 = scalar_lea.vmem %s9, 240
      %v3896 = vld [vmem:[%s3895] sm:$0xff]
      %v3897 = vld [vmem:[%s3895 + $0x8] sm:$0xff]
      %v3898 = vld [vmem:[%s3895 + $0x10] sm:$0xff]
      %v3899 = vld [vmem:[%s3895 + $0x18] sm:$0xff]
      %v3900 = vld [vmem:[%s3895 + $0x20] sm:$0xff]
      %v3901 = vld [vmem:[%s3895 + $0x28] sm:$0xff]
      %v3902 = vld [vmem:[%s3895 + $0x30] sm:$0xff]
      %v3903 = vld [vmem:[%s3895 + $0x38] sm:$0xff]
      %v3904 = vld [vmem:[%s3895 + $0x40] sm:$0xff]
      %v3905 = vld [vmem:[%s3895 + $0x48] sm:$0xff]
      %v3906 = vld [vmem:[%s3895 + $0x50] sm:$0xff]
      %v3907 = vld [vmem:[%s3895 + $0x58] sm:$0xff]
      %v3908 = vld [vmem:[%s3895 + $0x60] sm:$0xff]
      %v3909 = vld [vmem:[%s3895 + $0x68] sm:$0xff]
      %v3910 = vld [vmem:[%s3895 + $0x70] sm:$0xff]
      %3911 = vrot.lane.b32.xlu0 %v3544, 126
      %v3912 = vpop.permute.xlu0 %3911
      %3913 = vrot.lane.b32.xlu0 %v3545, 126
      %v3914 = vpop.permute.xlu0 %3913
      %3915 = vrot.lane.b32.xlu0 %v3546, 126
      %v3916 = vpop.permute.xlu0 %3915
      %3917 = vrot.lane.b32.xlu0 %v3547, 126
      %v3918 = vpop.permute.xlu0 %3917
      %3919 = vrot.lane.b32.xlu0 %v3548, 126
      %v3920 = vpop.permute.xlu0 %3919
      %3921 = vrot.lane.b32.xlu0 %v3549, 126
      %v3922 = vpop.permute.xlu0 %3921
      %3923 = vrot.lane.b32.xlu0 %v3550, 126
      %v3924 = vpop.permute.xlu0 %3923
      %3925 = vrot.lane.b32.xlu0 %v3551, 126
      %v3926 = vpop.permute.xlu0 %3925
      %3927 = vrot.lane.b32.xlu0 %v3552, 126
      %v3928 = vpop.permute.xlu0 %3927
      %3929 = vrot.lane.b32.xlu0 %v3553, 126
      %v3930 = vpop.permute.xlu0 %3929
      %3931 = vrot.lane.b32.xlu0 %v3554, 126
      %v3932 = vpop.permute.xlu0 %3931
      %3933 = vrot.lane.b32.xlu0 %v3555, 126
      %v3934 = vpop.permute.xlu0 %3933
      %v3948 = vsel %vm3586, %v3896, 0
      %v3951 = vsel %vm3586, %v3897, 0
      %v3954 = vsel %vm3586, %v3898, 0
      %v3957 = vsel %vm3586, %v3899, 0
      %v3960 = vsel %vm3586, %v3900, 0
      %v3963 = vsel %vm3586, %v3901, 0
      %v3966 = vsel %vm3586, %v3902, 0
      %v3969 = vsel %vm3586, %v3903, 0
      %v3972 = vsel %vm3586, %v3904, 0
      %v3975 = vsel %vm3586, %v3905, 0
      %v3978 = vsel %vm3586, %v3906, 0
      %v3981 = vsel %vm3586, %v3907, 0
      %v3984 = vsel %vm3586, %v3908, 0
      %v3987 = vsel %vm3586, %v3909, 0
      %v3990 = vsel %vm3586, %v3910, 0
      %3992 = vmatpush.msra.mxu0 0.0
      %3993 = vmatpush.msra.mxu0 0.0
      %3994 = vmatpush.msra.mxu0 0.0
      %3995 = vmatpush.msra.mxu0 0.0
      %3996 = vmatpush.msra.mxu0 %v3934
      %3997 = vmatpush.msra.mxu0 %v3932
      %3998 = vmatpush.msra.mxu0 %v3930
      %3999 = vmatpush.msra.mxu0 %v3928
      %4000 = vmatpush.msra.mxu0 %v3926
      %4001 = vmatpush.msra.mxu0 %v3924
      %4002 = vmatpush.msra.mxu0 %v3922
      %4003 = vmatpush.msra.mxu0 %v3920
      %4004 = vmatpush.msra.mxu0 %v3918
      %4005 = vmatpush.msra.mxu0 %v3916
      %4006 = vmatpush.msra.mxu0 %v3914
      %4007 = vmatpush.msra.mxu0 %v3912
      %4008 = vmatmul.f32.gmra.mxu0 %v3948
      %v4009 = vpop.f32.mrf.mxu0
      %v4010 = vadd.f32 0.0, %v4009
      %4011 = vmatmul.f32.gmra.mxu0 %v3951
      %v4012 = vpop.f32.mrf.mxu0
      %v4013 = vadd.f32 0.0, %v4012
      %4014 = vmatmul.f32.gmra.mxu0 %v3954
      %v4015 = vpop.f32.mrf.mxu0
      %v4016 = vadd.f32 0.0, %v4015
      %4017 = vmatmul.f32.gmra.mxu0 %v3957
      %v4018 = vpop.f32.mrf.mxu0
      %v4019 = vadd.f32 0.0, %v4018
      %4020 = vmatmul.f32.gmra.mxu0 %v3960
      %v4021 = vpop.f32.mrf.mxu0
      %v4022 = vadd.f32 0.0, %v4021
      %4023 = vmatmul.f32.gmra.mxu0 %v3963
      %v4024 = vpop.f32.mrf.mxu0
      %v4025 = vadd.f32 0.0, %v4024
      %4026 = vmatmul.f32.gmra.mxu0 %v3966
      %v4027 = vpop.f32.mrf.mxu0
      %v4028 = vadd.f32 0.0, %v4027
      %4029 = vmatmul.f32.gmra.mxu0 %v3969
      %v4030 = vpop.f32.mrf.mxu0
      %v4031 = vadd.f32 0.0, %v4030
      %4032 = vmatmul.f32.gmra.mxu0 %v3972
      %v4033 = vpop.f32.mrf.mxu0
      %v4034 = vadd.f32 0.0, %v4033
      %4035 = vmatmul.f32.gmra.mxu0 %v3975
      %v4036 = vpop.f32.mrf.mxu0
      %v4037 = vadd.f32 0.0, %v4036
      %4038 = vmatmul.f32.gmra.mxu0 %v3978
      %v4039 = vpop.f32.mrf.mxu0
      %v4040 = vadd.f32 0.0, %v4039
      %4041 = vmatmul.f32.gmra.mxu0 %v3981
      %v4042 = vpop.f32.mrf.mxu0
      %v4043 = vadd.f32 0.0, %v4042
      %4044 = vmatmul.f32.gmra.mxu0 %v3984
      %v4045 = vpop.f32.mrf.mxu0
      %v4046 = vadd.f32 0.0, %v4045
      %4047 = vmatmul.f32.gmra.mxu0 %v3987
      %v4048 = vpop.f32.mrf.mxu0
      %v4049 = vadd.f32 0.0, %v4048
      %4050 = vmatmul.f32.gmra.mxu0 %v3990
      %v4051 = vpop.f32.mrf.mxu0
      %v4052 = vadd.f32 0.0, %v4051
      %4053 = vdwg.mxu0
      %v4054 = vadd.f32 %v3880, %v4010
      %v4055 = vadd.f32 %v3881, %v4013
      %v4056 = vadd.f32 %v3882, %v4016
      %v4057 = vadd.f32 %v3883, %v4019
      %v4058 = vadd.f32 %v3884, %v4022
      %v4059 = vadd.f32 %v3885, %v4025
      %v4060 = vadd.f32 %v3886, %v4028
      %v4061 = vadd.f32 %v3887, %v4031
      %v4062 = vadd.f32 %v3888, %v4034
      %v4063 = vadd.f32 %v3889, %v4037
      %v4064 = vadd.f32 %v3890, %v4040
      %v4065 = vadd.f32 %v3891, %v4043
      %v4066 = vadd.f32 %v3892, %v4046
      %v4067 = vadd.f32 %v3893, %v4049
      %v4068 = vadd.f32 %v3894, %v4052
      %s4069 = scalar_lea.vmem %s9, 360
      %v4070 = vld [vmem:[%s4069] sm:$0xff]
      %v4071 = vld [vmem:[%s4069 + $0x8] sm:$0xff]
      %v4072 = vld [vmem:[%s4069 + $0x10] sm:$0xff]
      %v4073 = vld [vmem:[%s4069 + $0x18] sm:$0xff]
      %v4074 = vld [vmem:[%s4069 + $0x20] sm:$0xff]
      %v4075 = vld [vmem:[%s4069 + $0x28] sm:$0xff]
      %v4076 = vld [vmem:[%s4069 + $0x30] sm:$0xff]
      %v4077 = vld [vmem:[%s4069 + $0x38] sm:$0xff]
      %v4078 = vld [vmem:[%s4069 + $0x40] sm:$0xff]
      %v4079 = vld [vmem:[%s4069 + $0x48] sm:$0xff]
      %v4080 = vld [vmem:[%s4069 + $0x50] sm:$0xff]
      %v4081 = vld [vmem:[%s4069 + $0x58] sm:$0xff]
      %v4082 = vld [vmem:[%s4069 + $0x60] sm:$0xff]
      %v4083 = vld [vmem:[%s4069 + $0x68] sm:$0xff]
      %v4084 = vld [vmem:[%s4069 + $0x70] sm:$0xff]
      %4085 = vrot.lane.b32.xlu0 %v3544, 125
      %v4086 = vpop.permute.xlu0 %4085
      %4087 = vrot.lane.b32.xlu0 %v3545, 125
      %v4088 = vpop.permute.xlu0 %4087
      %4089 = vrot.lane.b32.xlu0 %v3546, 125
      %v4090 = vpop.permute.xlu0 %4089
      %4091 = vrot.lane.b32.xlu0 %v3547, 125
      %v4092 = vpop.permute.xlu0 %4091
      %4093 = vrot.lane.b32.xlu0 %v3548, 125
      %v4094 = vpop.permute.xlu0 %4093
      %4095 = vrot.lane.b32.xlu0 %v3549, 125
      %v4096 = vpop.permute.xlu0 %4095
      %4097 = vrot.lane.b32.xlu0 %v3550, 125
      %v4098 = vpop.permute.xlu0 %4097
      %4099 = vrot.lane.b32.xlu0 %v3551, 125
      %v4100 = vpop.permute.xlu0 %4099
      %4101 = vrot.lane.b32.xlu0 %v3552, 125
      %v4102 = vpop.permute.xlu0 %4101
      %4103 = vrot.lane.b32.xlu0 %v3553, 125
      %v4104 = vpop.permute.xlu0 %4103
      %4105 = vrot.lane.b32.xlu0 %v3554, 125
      %v4106 = vpop.permute.xlu0 %4105
      %4107 = vrot.lane.b32.xlu0 %v3555, 125
      %v4108 = vpop.permute.xlu0 %4107
      %v4122 = vsel %vm3586, %v4070, 0
      %v4125 = vsel %vm3586, %v4071, 0
      %v4128 = vsel %vm3586, %v4072, 0
      %v4131 = vsel %vm3586, %v4073, 0
      %v4134 = vsel %vm3586, %v4074, 0
      %v4137 = vsel %vm3586, %v4075, 0
      %v4140 = vsel %vm3586, %v4076, 0
      %v4143 = vsel %vm3586, %v4077, 0
      %v4146 = vsel %vm3586, %v4078, 0
      %v4149 = vsel %vm3586, %v4079, 0
      %v4152 = vsel %vm3586, %v4080, 0
      %v4155 = vsel %vm3586, %v4081, 0
      %v4158 = vsel %vm3586, %v4082, 0
      %v4161 = vsel %vm3586, %v4083, 0
      %v4164 = vsel %vm3586, %v4084, 0
      %4166 = vmatpush.msra.mxu0 0.0
      %4167 = vmatpush.msra.mxu0 0.0
      %4168 = vmatpush.msra.mxu0 0.0
      %4169 = vmatpush.msra.mxu0 0.0
      %4170 = vmatpush.msra.mxu0 %v4108
      %4171 = vmatpush.msra.mxu0 %v4106
      %4172 = vmatpush.msra.mxu0 %v4104
      %4173 = vmatpush.msra.mxu0 %v4102
      %4174 = vmatpush.msra.mxu0 %v4100
      %4175 = vmatpush.msra.mxu0 %v4098
      %4176 = vmatpush.msra.mxu0 %v4096
      %4177 = vmatpush.msra.mxu0 %v4094
      %4178 = vmatpush.msra.mxu0 %v4092
      %4179 = vmatpush.msra.mxu0 %v4090
      %4180 = vmatpush.msra.mxu0 %v4088
      %4181 = vmatpush.msra.mxu0 %v4086
      %4182 = vmatmul.f32.gmra.mxu0 %v4122
      %v4183 = vpop.f32.mrf.mxu0
      %v4184 = vadd.f32 0.0, %v4183
      %4185 = vmatmul.f32.gmra.mxu0 %v4125
      %v4186 = vpop.f32.mrf.mxu0
      %v4187 = vadd.f32 0.0, %v4186
      %4188 = vmatmul.f32.gmra.mxu0 %v4128
      %v4189 = vpop.f32.mrf.mxu0
      %v4190 = vadd.f32 0.0, %v4189
      %4191 = vmatmul.f32.gmra.mxu0 %v4131
      %v4192 = vpop.f32.mrf.mxu0
      %v4193 = vadd.f32 0.0, %v4192
      %4194 = vmatmul.f32.gmra.mxu0 %v4134
      %v4195 = vpop.f32.mrf.mxu0
      %v4196 = vadd.f32 0.0, %v4195
      %4197 = vmatmul.f32.gmra.mxu0 %v4137
      %v4198 = vpop.f32.mrf.mxu0
      %v4199 = vadd.f32 0.0, %v4198
      %4200 = vmatmul.f32.gmra.mxu0 %v4140
      %v4201 = vpop.f32.mrf.mxu0
      %v4202 = vadd.f32 0.0, %v4201
      %4203 = vmatmul.f32.gmra.mxu0 %v4143
      %v4204 = vpop.f32.mrf.mxu0
      %v4205 = vadd.f32 0.0, %v4204
      %4206 = vmatmul.f32.gmra.mxu0 %v4146
      %v4207 = vpop.f32.mrf.mxu0
      %v4208 = vadd.f32 0.0, %v4207
      %4209 = vmatmul.f32.gmra.mxu0 %v4149
      %v4210 = vpop.f32.mrf.mxu0
      %v4211 = vadd.f32 0.0, %v4210
      %4212 = vmatmul.f32.gmra.mxu0 %v4152
      %v4213 = vpop.f32.mrf.mxu0
      %v4214 = vadd.f32 0.0, %v4213
      %4215 = vmatmul.f32.gmra.mxu0 %v4155
      %v4216 = vpop.f32.mrf.mxu0
      %v4217 = vadd.f32 0.0, %v4216
      %4218 = vmatmul.f32.gmra.mxu0 %v4158
      %v4219 = vpop.f32.mrf.mxu0
      %v4220 = vadd.f32 0.0, %v4219
      %4221 = vmatmul.f32.gmra.mxu0 %v4161
      %v4222 = vpop.f32.mrf.mxu0
      %v4223 = vadd.f32 0.0, %v4222
      %4224 = vmatmul.f32.gmra.mxu0 %v4164
      %v4225 = vpop.f32.mrf.mxu0
      %v4226 = vadd.f32 0.0, %v4225
      %4227 = vdwg.mxu0
      %v4228 = vadd.f32 %v4054, %v4184
      %v4229 = vadd.f32 %v4055, %v4187
      %v4230 = vadd.f32 %v4056, %v4190
      %v4231 = vadd.f32 %v4057, %v4193
      %v4232 = vadd.f32 %v4058, %v4196
      %v4233 = vadd.f32 %v4059, %v4199
      %v4234 = vadd.f32 %v4060, %v4202
      %v4235 = vadd.f32 %v4061, %v4205
      %v4236 = vadd.f32 %v4062, %v4208
      %v4237 = vadd.f32 %v4063, %v4211
      %v4238 = vadd.f32 %v4064, %v4214
      %v4239 = vadd.f32 %v4065, %v4217
      %v4240 = vadd.f32 %v4066, %v4220
      %v4241 = vadd.f32 %v4067, %v4223
      %v4242 = vadd.f32 %v4068, %v4226
      %s4243 = scalar_lea.vmem %s9, 480
      %v4244 = vld [vmem:[%s4243] sm:$0xff]
      %v4245 = vld [vmem:[%s4243 + $0x8] sm:$0xff]
      %v4246 = vld [vmem:[%s4243 + $0x10] sm:$0xff]
      %v4247 = vld [vmem:[%s4243 + $0x18] sm:$0xff]
      %v4248 = vld [vmem:[%s4243 + $0x20] sm:$0xff]
      %v4249 = vld [vmem:[%s4243 + $0x28] sm:$0xff]
      %v4250 = vld [vmem:[%s4243 + $0x30] sm:$0xff]
      %v4251 = vld [vmem:[%s4243 + $0x38] sm:$0xff]
      %v4252 = vld [vmem:[%s4243 + $0x40] sm:$0xff]
      %v4253 = vld [vmem:[%s4243 + $0x48] sm:$0xff]
      %v4254 = vld [vmem:[%s4243 + $0x50] sm:$0xff]
      %v4255 = vld [vmem:[%s4243 + $0x58] sm:$0xff]
      %v4256 = vld [vmem:[%s4243 + $0x60] sm:$0xff]
      %v4257 = vld [vmem:[%s4243 + $0x68] sm:$0xff]
      %v4258 = vld [vmem:[%s4243 + $0x70] sm:$0xff]
      %4259 = vrot.lane.b32.xlu0 %v3544, 124
      %v4260 = vpop.permute.xlu0 %4259
      %4261 = vrot.lane.b32.xlu0 %v3545, 124
      %v4262 = vpop.permute.xlu0 %4261
      %4263 = vrot.lane.b32.xlu0 %v3546, 124
      %v4264 = vpop.permute.xlu0 %4263
      %4265 = vrot.lane.b32.xlu0 %v3547, 124
      %v4266 = vpop.permute.xlu0 %4265
      %4267 = vrot.lane.b32.xlu0 %v3548, 124
      %v4268 = vpop.permute.xlu0 %4267
      %4269 = vrot.lane.b32.xlu0 %v3549, 124
      %v4270 = vpop.permute.xlu0 %4269
      %4271 = vrot.lane.b32.xlu0 %v3550, 124
      %v4272 = vpop.permute.xlu0 %4271
      %4273 = vrot.lane.b32.xlu0 %v3551, 124
      %v4274 = vpop.permute.xlu0 %4273
      %4275 = vrot.lane.b32.xlu0 %v3552, 124
      %v4276 = vpop.permute.xlu0 %4275
      %4277 = vrot.lane.b32.xlu0 %v3553, 124
      %v4278 = vpop.permute.xlu0 %4277
      %4279 = vrot.lane.b32.xlu0 %v3554, 124
      %v4280 = vpop.permute.xlu0 %4279
      %4281 = vrot.lane.b32.xlu0 %v3555, 124
      %v4282 = vpop.permute.xlu0 %4281
      %v4296 = vsel %vm3586, %v4244, 0
      %v4299 = vsel %vm3586, %v4245, 0
      %v4302 = vsel %vm3586, %v4246, 0
      %v4305 = vsel %vm3586, %v4247, 0
      %v4308 = vsel %vm3586, %v4248, 0
      %v4311 = vsel %vm3586, %v4249, 0
      %v4314 = vsel %vm3586, %v4250, 0
      %v4317 = vsel %vm3586, %v4251, 0
      %v4320 = vsel %vm3586, %v4252, 0
      %v4323 = vsel %vm3586, %v4253, 0
      %v4326 = vsel %vm3586, %v4254, 0
      %v4329 = vsel %vm3586, %v4255, 0
      %v4332 = vsel %vm3586, %v4256, 0
      %v4335 = vsel %vm3586, %v4257, 0
      %v4338 = vsel %vm3586, %v4258, 0
      %4340 = vmatpush.msra.mxu0 0.0
      %4341 = vmatpush.msra.mxu0 0.0
      %4342 = vmatpush.msra.mxu0 0.0
      %4343 = vmatpush.msra.mxu0 0.0
      %4344 = vmatpush.msra.mxu0 %v4282
      %4345 = vmatpush.msra.mxu0 %v4280
      %4346 = vmatpush.msra.mxu0 %v4278
      %4347 = vmatpush.msra.mxu0 %v4276
      %4348 = vmatpush.msra.mxu0 %v4274
      %4349 = vmatpush.msra.mxu0 %v4272
      %4350 = vmatpush.msra.mxu0 %v4270
      %4351 = vmatpush.msra.mxu0 %v4268
      %4352 = vmatpush.msra.mxu0 %v4266
      %4353 = vmatpush.msra.mxu0 %v4264
      %4354 = vmatpush.msra.mxu0 %v4262
      %4355 = vmatpush.msra.mxu0 %v4260
      %4356 = vmatmul.f32.gmra.mxu0 %v4296
      %v4357 = vpop.f32.mrf.mxu0
      %v4358 = vadd.f32 0.0, %v4357
      %4359 = vmatmul.f32.gmra.mxu0 %v4299
      %v4360 = vpop.f32.mrf.mxu0
      %v4361 = vadd.f32 0.0, %v4360
      %4362 = vmatmul.f32.gmra.mxu0 %v4302
      %v4363 = vpop.f32.mrf.mxu0
      %v4364 = vadd.f32 0.0, %v4363
      %4365 = vmatmul.f32.gmra.mxu0 %v4305
      %v4366 = vpop.f32.mrf.mxu0
      %v4367 = vadd.f32 0.0, %v4366
      %4368 = vmatmul.f32.gmra.mxu0 %v4308
      %v4369 = vpop.f32.mrf.mxu0
      %v4370 = vadd.f32 0.0, %v4369
      %4371 = vmatmul.f32.gmra.mxu0 %v4311
      %v4372 = vpop.f32.mrf.mxu0
      %v4373 = vadd.f32 0.0, %v4372
      %4374 = vmatmul.f32.gmra.mxu0 %v4314
      %v4375 = vpop.f32.mrf.mxu0
      %v4376 = vadd.f32 0.0, %v4375
      %4377 = vmatmul.f32.gmra.mxu0 %v4317
      %v4378 = vpop.f32.mrf.mxu0
      %v4379 = vadd.f32 0.0, %v4378
      %4380 = vmatmul.f32.gmra.mxu0 %v4320
      %v4381 = vpop.f32.mrf.mxu0
      %v4382 = vadd.f32 0.0, %v4381
      %4383 = vmatmul.f32.gmra.mxu0 %v4323
      %v4384 = vpop.f32.mrf.mxu0
      %v4385 = vadd.f32 0.0, %v4384
      %4386 = vmatmul.f32.gmra.mxu0 %v4326
      %v4387 = vpop.f32.mrf.mxu0
      %v4388 = vadd.f32 0.0, %v4387
      %4389 = vmatmul.f32.gmra.mxu0 %v4329
      %v4390 = vpop.f32.mrf.mxu0
      %v4391 = vadd.f32 0.0, %v4390
      %4392 = vmatmul.f32.gmra.mxu0 %v4332
      %v4393 = vpop.f32.mrf.mxu0
      %v4394 = vadd.f32 0.0, %v4393
      %4395 = vmatmul.f32.gmra.mxu0 %v4335
      %v4396 = vpop.f32.mrf.mxu0
      %v4397 = vadd.f32 0.0, %v4396
      %4398 = vmatmul.f32.gmra.mxu0 %v4338
      %v4399 = vpop.f32.mrf.mxu0
      %v4400 = vadd.f32 0.0, %v4399
      %4401 = vdwg.mxu0
      %v4402 = vadd.f32 %v4228, %v4358
      %v4403 = vadd.f32 %v4229, %v4361
      %v4404 = vadd.f32 %v4230, %v4364
      %v4405 = vadd.f32 %v4231, %v4367
      %v4406 = vadd.f32 %v4232, %v4370
      %v4407 = vadd.f32 %v4233, %v4373
      %v4408 = vadd.f32 %v4234, %v4376
      %v4409 = vadd.f32 %v4235, %v4379
      %v4410 = vadd.f32 %v4236, %v4382
      %v4411 = vadd.f32 %v4237, %v4385
      %v4412 = vadd.f32 %v4238, %v4388
      %v4413 = vadd.f32 %v4239, %v4391
      %v4414 = vadd.f32 %v4240, %v4394
      %v4415 = vadd.f32 %v4241, %v4397
      %v4416 = vadd.f32 %v4242, %v4400
      %s4417 = scalar_lea.vmem %s9, 600
      %v4418 = vld [vmem:[%s4417] sm:$0xff]
      %v4419 = vld [vmem:[%s4417 + $0x8] sm:$0xff]
      %v4420 = vld [vmem:[%s4417 + $0x10] sm:$0xff]
      %v4421 = vld [vmem:[%s4417 + $0x18] sm:$0xff]
      %v4422 = vld [vmem:[%s4417 + $0x20] sm:$0xff]
      %v4423 = vld [vmem:[%s4417 + $0x28] sm:$0xff]
      %v4424 = vld [vmem:[%s4417 + $0x30] sm:$0xff]
      %v4425 = vld [vmem:[%s4417 + $0x38] sm:$0xff]
      %v4426 = vld [vmem:[%s4417 + $0x40] sm:$0xff]
      %v4427 = vld [vmem:[%s4417 + $0x48] sm:$0xff]
      %v4428 = vld [vmem:[%s4417 + $0x50] sm:$0xff]
      %v4429 = vld [vmem:[%s4417 + $0x58] sm:$0xff]
      %v4430 = vld [vmem:[%s4417 + $0x60] sm:$0xff]
      %v4431 = vld [vmem:[%s4417 + $0x68] sm:$0xff]
      %v4432 = vld [vmem:[%s4417 + $0x70] sm:$0xff]
      %4433 = vrot.lane.b32.xlu0 %v3544, 123
      %v4434 = vpop.permute.xlu0 %4433
      %4435 = vrot.lane.b32.xlu0 %v3545, 123
      %v4436 = vpop.permute.xlu0 %4435
      %4437 = vrot.lane.b32.xlu0 %v3546, 123
      %v4438 = vpop.permute.xlu0 %4437
      %4439 = vrot.lane.b32.xlu0 %v3547, 123
      %v4440 = vpop.permute.xlu0 %4439
      %4441 = vrot.lane.b32.xlu0 %v3548, 123
      %v4442 = vpop.permute.xlu0 %4441
      %4443 = vrot.lane.b32.xlu0 %v3549, 123
      %v4444 = vpop.permute.xlu0 %4443
      %4445 = vrot.lane.b32.xlu0 %v3550, 123
      %v4446 = vpop.permute.xlu0 %4445
      %4447 = vrot.lane.b32.xlu0 %v3551, 123
      %v4448 = vpop.permute.xlu0 %4447
      %4449 = vrot.lane.b32.xlu0 %v3552, 123
      %v4450 = vpop.permute.xlu0 %4449
      %4451 = vrot.lane.b32.xlu0 %v3553, 123
      %v4452 = vpop.permute.xlu0 %4451
      %4453 = vrot.lane.b32.xlu0 %v3554, 123
      %v4454 = vpop.permute.xlu0 %4453
      %4455 = vrot.lane.b32.xlu0 %v3555, 123
      %v4456 = vpop.permute.xlu0 %4455
      %v4470 = vsel %vm3586, %v4418, 0
      %v4473 = vsel %vm3586, %v4419, 0
      %v4476 = vsel %vm3586, %v4420, 0
      %v4479 = vsel %vm3586, %v4421, 0
      %v4482 = vsel %vm3586, %v4422, 0
      %v4485 = vsel %vm3586, %v4423, 0
      %v4488 = vsel %vm3586, %v4424, 0
      %v4491 = vsel %vm3586, %v4425, 0
      %v4494 = vsel %vm3586, %v4426, 0
      %v4497 = vsel %vm3586, %v4427, 0
      %v4500 = vsel %vm3586, %v4428, 0
      %v4503 = vsel %vm3586, %v4429, 0
      %v4506 = vsel %vm3586, %v4430, 0
      %v4509 = vsel %vm3586, %v4431, 0
      %v4512 = vsel %vm3586, %v4432, 0
      %4514 = vmatpush.msra.mxu0 0.0
      %4515 = vmatpush.msra.mxu0 0.0
      %4516 = vmatpush.msra.mxu0 0.0
      %4517 = vmatpush.msra.mxu0 0.0
      %4518 = vmatpush.msra.mxu0 %v4456
      %4519 = vmatpush.msra.mxu0 %v4454
      %4520 = vmatpush.msra.mxu0 %v4452
      %4521 = vmatpush.msra.mxu0 %v4450
      %4522 = vmatpush.msra.mxu0 %v4448
      %4523 = vmatpush.msra.mxu0 %v4446
      %4524 = vmatpush.msra.mxu0 %v4444
      %4525 = vmatpush.msra.mxu0 %v4442
      %4526 = vmatpush.msra.mxu0 %v4440
      %4527 = vmatpush.msra.mxu0 %v4438
      %4528 = vmatpush.msra.mxu0 %v4436
      %4529 = vmatpush.msra.mxu0 %v4434
      %4530 = vmatmul.f32.gmra.mxu0 %v4470
      %v4531 = vpop.f32.mrf.mxu0
      %v4532 = vadd.f32 0.0, %v4531
      %4533 = vmatmul.f32.gmra.mxu0 %v4473
      %v4534 = vpop.f32.mrf.mxu0
      %v4535 = vadd.f32 0.0, %v4534
      %4536 = vmatmul.f32.gmra.mxu0 %v4476
      %v4537 = vpop.f32.mrf.mxu0
      %v4538 = vadd.f32 0.0, %v4537
      %4539 = vmatmul.f32.gmra.mxu0 %v4479
      %v4540 = vpop.f32.mrf.mxu0
      %v4541 = vadd.f32 0.0, %v4540
      %4542 = vmatmul.f32.gmra.mxu0 %v4482
      %v4543 = vpop.f32.mrf.mxu0
      %v4544 = vadd.f32 0.0, %v4543
      %4545 = vmatmul.f32.gmra.mxu0 %v4485
      %v4546 = vpop.f32.mrf.mxu0
      %v4547 = vadd.f32 0.0, %v4546
      %4548 = vmatmul.f32.gmra.mxu0 %v4488
      %v4549 = vpop.f32.mrf.mxu0
      %v4550 = vadd.f32 0.0, %v4549
      %4551 = vmatmul.f32.gmra.mxu0 %v4491
      %v4552 = vpop.f32.mrf.mxu0
      %v4553 = vadd.f32 0.0, %v4552
      %4554 = vmatmul.f32.gmra.mxu0 %v4494
      %v4555 = vpop.f32.mrf.mxu0
      %v4556 = vadd.f32 0.0, %v4555
      %4557 = vmatmul.f32.gmra.mxu0 %v4497
      %v4558 = vpop.f32.mrf.mxu0
      %v4559 = vadd.f32 0.0, %v4558
      %4560 = vmatmul.f32.gmra.mxu0 %v4500
      %v4561 = vpop.f32.mrf.mxu0
      %v4562 = vadd.f32 0.0, %v4561
      %4563 = vmatmul.f32.gmra.mxu0 %v4503
      %v4564 = vpop.f32.mrf.mxu0
      %v4565 = vadd.f32 0.0, %v4564
      %4566 = vmatmul.f32.gmra.mxu0 %v4506
      %v4567 = vpop.f32.mrf.mxu0
      %v4568 = vadd.f32 0.0, %v4567
      %4569 = vmatmul.f32.gmra.mxu0 %v4509
      %v4570 = vpop.f32.mrf.mxu0
      %v4571 = vadd.f32 0.0, %v4570
      %4572 = vmatmul.f32.gmra.mxu0 %v4512
      %v4573 = vpop.f32.mrf.mxu0
      %v4574 = vadd.f32 0.0, %v4573
      %4575 = vdwg.mxu0
      %v4576 = vadd.f32 %v4402, %v4532
      %v4577 = vadd.f32 %v4403, %v4535
      %v4578 = vadd.f32 %v4404, %v4538
      %v4579 = vadd.f32 %v4405, %v4541
      %v4580 = vadd.f32 %v4406, %v4544
      %v4581 = vadd.f32 %v4407, %v4547
      %v4582 = vadd.f32 %v4408, %v4550
      %v4583 = vadd.f32 %v4409, %v4553
      %v4584 = vadd.f32 %v4410, %v4556
      %v4585 = vadd.f32 %v4411, %v4559
      %v4586 = vadd.f32 %v4412, %v4562
      %v4587 = vadd.f32 %v4413, %v4565
      %v4588 = vadd.f32 %v4414, %v4568
      %v4589 = vadd.f32 %v4415, %v4571
      %v4590 = vadd.f32 %v4416, %v4574
      %v4591 = vmax.f32 %v4576, 0.0
      %v4592 = vmax.f32 %v4577, 0.0
      %v4593 = vmax.f32 %v4578, 0.0
      %v4594 = vmax.f32 %v4579, 0.0
      %v4595 = vmax.f32 %v4580, 0.0
      %v4596 = vmax.f32 %v4581, 0.0
      %v4597 = vmax.f32 %v4582, 0.0
      %v4598 = vmax.f32 %v4583, 0.0
      %v4599 = vmax.f32 %v4584, 0.0
      %v4600 = vmax.f32 %v4585, 0.0
      %v4601 = vmax.f32 %v4586, 0.0
      %v4602 = vmax.f32 %v4587, 0.0
      %v4603 = vmax.f32 %v4588, 0.0
      %v4604 = vmax.f32 %v4589, 0.0
      %v4605 = vmax.f32 %v4590, 0.0
      %v4606 = vld [vmem:[%s12] sm:$0xff]
      %v4607 = vld [vmem:[%s12 + $0x8] sm:$0xff]
      %v4608 = vld [vmem:[%s12 + $0x10] sm:$0xff]
      %v4609 = vld [vmem:[%s12 + $0x18] sm:$0xff]
      %v4610 = vld [vmem:[%s12 + $0x20] sm:$0xff]
      %v4611 = vld [vmem:[%s12 + $0x28] sm:$0xff]
      %v4612 = vld [vmem:[%s12 + $0x30] sm:$0xff]
      %v4613 = vld [vmem:[%s12 + $0x38] sm:$0xff]
      %v4614 = vld [vmem:[%s12 + $0x40] sm:$0xff]
      %v4615 = vld [vmem:[%s12 + $0x48] sm:$0xff]
      %v4616 = vld [vmem:[%s12 + $0x50] sm:$0xf]
      %v4617 = vld [vmem:[%s11] sm:$0xff]
      %v4618 = vld [vmem:[%s11 + $0x8] sm:$0xff]
      %v4619 = vld [vmem:[%s11 + $0x10] sm:$0xff]
      %v4620 = vld [vmem:[%s11 + $0x18] sm:$0xff]
      %v4621 = vld [vmem:[%s11 + $0x20] sm:$0xff]
      %v4622 = vld [vmem:[%s11 + $0x28] sm:$0xff]
      %v4623 = vld [vmem:[%s11 + $0x30] sm:$0xff]
      %v4624 = vld [vmem:[%s11 + $0x38] sm:$0xff]
      %v4625 = vld [vmem:[%s11 + $0x40] sm:$0xff]
      %v4626 = vld [vmem:[%s11 + $0x48] sm:$0xff]
      %v4627 = vld [vmem:[%s11 + $0x50] sm:$0xf]
      %vm4628 = vcmask 982016
      %v4630 = vsel %vm4628, %v4617, 0
      %v4633 = vsel %vm4628, %v4618, 0
      %v4636 = vsel %vm4628, %v4619, 0
      %v4639 = vsel %vm4628, %v4620, 0
      %v4642 = vsel %vm4628, %v4621, 0
      %v4645 = vsel %vm4628, %v4622, 0
      %v4648 = vsel %vm4628, %v4623, 0
      %v4651 = vsel %vm4628, %v4624, 0
      %v4654 = vsel %vm4628, %v4625, 0
      %v4657 = vsel %vm4628, %v4626, 0
      %v4660 = vsel %vm4628, %v4627, 0
      %4662 = vmatpush.msra.mxu0 0.0
      %4663 = vmatpush.msra.mxu0 %v4605
      %4664 = vmatpush.msra.mxu0 %v4604
      %4665 = vmatpush.msra.mxu0 %v4603
      %4666 = vmatpush.msra.mxu0 %v4602
      %4667 = vmatpush.msra.mxu0 %v4601
      %4668 = vmatpush.msra.mxu0 %v4600
      %4669 = vmatpush.msra.mxu0 %v4599
      %4670 = vmatpush.msra.mxu0 %v4598
      %4671 = vmatpush.msra.mxu0 %v4597
      %4672 = vmatpush.msra.mxu0 %v4596
      %4673 = vmatpush.msra.mxu0 %v4595
      %4674 = vmatpush.msra.mxu0 %v4594
      %4675 = vmatpush.msra.mxu0 %v4593
      %4676 = vmatpush.msra.mxu0 %v4592
      %4677 = vmatpush.msra.mxu0 %v4591
      %4678 = vmatmul.f32.gmra.mxu0 %v4630
      %v4679 = vpop.f32.mrf.mxu0
      %v4680 = vadd.f32 0.0, %v4679
      %4681 = vmatmul.f32.gmra.mxu0 %v4633
      %v4682 = vpop.f32.mrf.mxu0
      %v4683 = vadd.f32 0.0, %v4682
      %4684 = vmatmul.f32.gmra.mxu0 %v4636
      %v4685 = vpop.f32.mrf.mxu0
      %v4686 = vadd.f32 0.0, %v4685
      %4687 = vmatmul.f32.gmra.mxu0 %v4639
      %v4688 = vpop.f32.mrf.mxu0
      %v4689 = vadd.f32 0.0, %v4688
      %4690 = vmatmul.f32.gmra.mxu0 %v4642
      %v4691 = vpop.f32.mrf.mxu0
      %v4692 = vadd.f32 0.0, %v4691
      %4693 = vmatmul.f32.gmra.mxu0 %v4645
      %v4694 = vpop.f32.mrf.mxu0
      %v4695 = vadd.f32 0.0, %v4694
      %4696 = vmatmul.f32.gmra.mxu0 %v4648
      %v4697 = vpop.f32.mrf.mxu0
      %v4698 = vadd.f32 0.0, %v4697
      %4699 = vmatmul.f32.gmra.mxu0 %v4651
      %v4700 = vpop.f32.mrf.mxu0
      %v4701 = vadd.f32 0.0, %v4700
      %4702 = vmatmul.f32.gmra.mxu0 %v4654
      %v4703 = vpop.f32.mrf.mxu0
      %v4704 = vadd.f32 0.0, %v4703
      %4705 = vmatmul.f32.gmra.mxu0 %v4657
      %v4706 = vpop.f32.mrf.mxu0
      %v4707 = vadd.f32 0.0, %v4706
      %4708 = vmatmul.f32.gmra.mxu0 %v4660
      %v4709 = vpop.f32.mrf.mxu0
      %v4710 = vadd.f32 0.0, %v4709
      %4711 = vdwg.mxu0
      %v4712 = vadd.f32 %v4606, %v4680
      %v4713 = vadd.f32 %v4607, %v4683
      %v4714 = vadd.f32 %v4608, %v4686
      %v4715 = vadd.f32 %v4609, %v4689
      %v4716 = vadd.f32 %v4610, %v4692
      %v4717 = vadd.f32 %v4611, %v4695
      %v4718 = vadd.f32 %v4612, %v4698
      %v4719 = vadd.f32 %v4613, %v4701
      %v4720 = vadd.f32 %v4614, %v4704
      %v4721 = vadd.f32 %v4615, %v4707
      %v4722 = vadd.f32 %v4616, %v4710
      %v4723 = vmax.f32 %v4712, 0.0
      %v4724 = vmax.f32 %v4713, 0.0
      %v4725 = vmax.f32 %v4714, 0.0
      %v4726 = vmax.f32 %v4715, 0.0
      %v4727 = vmax.f32 %v4716, 0.0
      %v4728 = vmax.f32 %v4717, 0.0
      %v4729 = vmax.f32 %v4718, 0.0
      %v4730 = vmax.f32 %v4719, 0.0
      %v4731 = vmax.f32 %v4720, 0.0
      %v4732 = vmax.f32 %v4721, 0.0
      %v4733 = vmax.f32 %v4722, 0.0
      %v4734 = vld [vmem:[%s14] sm:$0xff]
      %v4735 = vld [vmem:[%s14 + $0x8] sm:$0x3]
      %v4736 = vld [vmem:[%s13] sm:$0xff]
      %v4737 = vld [vmem:[%s13 + $0x8] sm:$0x3]
      %vm4738 = vcmask 687104
      %v4740 = vsel %vm4738, %v4736, 0
      %v4743 = vsel %vm4738, %v4737, 0
      %v4746 = vsel %vm1511, %v4733, 0
      %4748 = vmatpush.msra.mxu0 0.0
      %4749 = vmatpush.msra.mxu0 0.0
      %4750 = vmatpush.msra.mxu0 0.0
      %4751 = vmatpush.msra.mxu0 0.0
      %4752 = vmatpush.msra.mxu0 0.0
      %4753 = vmatpush.msra.mxu0 %v4746
      %4754 = vmatpush.msra.mxu0 %v4732
      %4755 = vmatpush.msra.mxu0 %v4731
      %4756 = vmatpush.msra.mxu0 %v4730
      %4757 = vmatpush.msra.mxu0 %v4729
      %4758 = vmatpush.msra.mxu0 %v4728
      %4759 = vmatpush.msra.mxu0 %v4727
      %4760 = vmatpush.msra.mxu0 %v4726
      %4761 = vmatpush.msra.mxu0 %v4725
      %4762 = vmatpush.msra.mxu0 %v4724
      %4763 = vmatpush.msra.mxu0 %v4723
      %4764 = vmatmul.f32.gmra.mxu0 %v4740
      %v4765 = vpop.f32.mrf.mxu0
      %v4766 = vadd.f32 0.0, %v4765
      %4767 = vmatmul.f32.gmra.mxu0 %v4743
      %v4768 = vpop.f32.mrf.mxu0
      %v4769 = vadd.f32 0.0, %v4768
      %4770 = vdwg.mxu0
      %v4771 = vadd.f32 %v4734, %v4766
      %v4772 = vadd.f32 %v4735, %v4769
      %vm4773 = vcmask 7168
      %4774 = vst.msk [vmem:[%s494] sm:$0xff] %vm4773, %v4771
      %vm4775 = vcmask 1024
      %4776 = vst.msk [vmem:[%s494 + $0x8] sm:$0x3] %vm4775, %v4772
      %p4777 = scmp.lt.s32.totalorder %s26, 1
      %s4778 = scalar_select %p4777, %s26, 1
      %s4779 = smul.addr %s4778, 2
      %s4780 = smul.addr %s4779, 8
      %s4781 = scalar_lea.vmem %s15, %s4780
      // Predicated region
      $region81: #{net_forward.1} parent=79 // pred_check
        %p4782 = pneg %p364
      $region82: #{net_forward.1} parent=79 // pred_check_branch
        %4784 = sbr.rel (%p4782) target = $region84
      $region83: #{net_forward.1} parent=79 // pred_region
        _
      $region84: #{net_forward.1} parent=79 // pred_fallthru
        _
    $region80: #{net_forward.1} parent=5 // pred_fallthru
      _
    %p4785 = scmp.le.s32.totalorder 2, %s21
    // Predicated region
    $region85: #{net_forward.1} parent=5 // pred_check
      %p4786 = pneg %p4785
    $region86: #{net_forward.1} parent=5 // pred_check_branch
      %4788 = sbr.rel (%p4786) target = $region88
    $region87: #{net_forward.1} parent=5 // pred_region
      %s4789 = ssub.s32 %s21, 2
      // Predicated region
      $region89: #{net_forward.1} parent=87 // pred_check
        %p4790 = pneg %p370
      $region90: #{net_forward.1} parent=87 // pred_check_branch
        %4792 = sbr.rel (%p4790) target = $region92
      $region91: #{net_forward.1} parent=87 // pred_region
        %p4793 = scmp.lt.s32.totalorder %s27, 1
        %s4794 = scalar_select %p4793, %s27, 1
        %s4795 = smul.addr %s4794, 2
        %s4796 = smul.addr %s4795, 8
        %s4797 = scalar_lea.vmem %s15, %s4796
      $region92: #{net_forward.1} parent=87 // pred_fallthru
        _
    $region88: #{net_forward.1} parent=5 // pred_fallthru
      _
  $region6: #{net_forward.1} parent=0 // loop_footer
    %s25 = sadd.s32 1, %s21
  $region7: #{net_forward.1} parent=0 // loop_footer_branch
    %20 = sbr.rel target = $region3
  $region8: #{net_forward.1} parent=0 // loop_exit
    _

</llo_original>
